<compile_context>
chip_gen: v7x
topology: tpu7x:2x2x1
jax: 0.10.0
libtpu: 0.0.40
codegen_flags: <defaults>
</compile_context>

<pallas_src>
import numpy as np

import jax
import jax.numpy as jnp
from jax import lax
from jax.experimental import pallas as pl
from jax.experimental.pallas import tpu as pltpu


# ------------------------------ Pallas kernel ------------------------------

def _lenet_kernel(x_ref, w1_ref, b1_ref, w2_ref, b2_ref,
                  wf1_ref, bf1_ref, wf2_ref, bf2_ref, wf3_ref, bf3_ref,
                  o_ref):
    # x_ref: (32, 96) = (H, W*C) packed input for one image.
    x = x_ref[...]

    # conv1 (5x5, 3->6) + bias + ReLU  ->  (28, 168) = (OH, OW*6)
    acc1 = jnp.zeros((28, 168), jnp.float32)
    for kh in range(5):
        acc1 = acc1 + jnp.dot(x[kh:kh + 28, :], w1_ref[kh],
                              preferred_element_type=jnp.float32)
    o1 = jnp.maximum(acc1 + b1_ref[...], 0.0)

    # 2x2 max-pool, kept sparse: valid entries at rows 2*ph, cols 12*pw + c
    m1 = jnp.maximum(o1[0:27, :], o1[1:28, :])       # pool over rows
    p1 = jnp.maximum(m1[:, 0:162], m1[:, 6:168])     # pool over packed width

    # conv2 (5x5, 6->16) + bias + ReLU -> (19, 160); valid at even rows
    acc2 = jnp.zeros((19, 160), jnp.float32)
    for kh in range(5):
        acc2 = acc2 + jnp.dot(p1[2 * kh:2 * kh + 19, :], w2_ref[kh],
                              preferred_element_type=jnp.float32)
    o2 = jnp.maximum(acc2 + b2_ref[...], 0.0)

    # 2x2 max-pool, sparse: valid entries at rows 4*ph, cols 32*pw + oc
    m2 = jnp.maximum(o2[0:17, :], o2[2:19, :])
    p2 = jnp.maximum(m2[:, 0:144], m2[:, 16:160])    # (17, 144)

    # fc1 (400->120) + ReLU: contract the 5 valid sparse rows
    f1 = bf1_ref[...]                                # (1, 120)
    for r in range(5):
        f1 = f1 + jnp.dot(p2[4 * r:4 * r + 1, :], wf1_ref[r],
                          preferred_element_type=jnp.float32)
    f1 = jnp.maximum(f1, 0.0)

    # fc2 (120->84) + ReLU, fc3 (84->10, zero-padded to 128 lanes)
    f2 = jnp.maximum(
        jnp.dot(f1, wf2_ref[...], preferred_element_type=jnp.float32)
        + bf2_ref[...], 0.0)
    f3 = (jnp.dot(f2, wf3_ref[...], preferred_element_type=jnp.float32)
          + bf3_ref[...])
    o_ref[...] = f3.astype(o_ref.dtype)              # (1, 128)


# ----------------------- weight preprocessing (wrapper) ---------------------

def _conv_toeplitz(w, in_cols, col_stride, out_w):
    """Toeplitz weights so conv == sum over kh of row-shifted 2-D matmuls.

    T[kh, col_stride*wi + c, OC*ow + oc] = w[oc, c, kh, wi - ow] when
    0 <= wi - ow < KW and c < C, else 0 (covers dead columns of the sparse
    post-pool layout).  Shape: (KH, in_cols, out_w*OC).
    """
    OC, C, KH, KW = w.shape
    i = np.arange(in_cols)[:, None]
    o = np.arange(out_w * OC)[None, :]
    c = i % col_stride
    wi = i // col_stride
    ow = o // OC
    oc = o % OC
    kw = wi - ow
    valid = (c < C) & (kw >= 0) & (kw < KW)
    c_i = np.where(valid, c, 0)
    kw_i = np.where(valid, kw, 0)
    oc_i = np.broadcast_to(oc, valid.shape)
    t = w[oc_i, c_i, :, kw_i]                        # (in_cols, out_cols, KH)
    t = jnp.where(jnp.asarray(valid)[:, :, None], t, 0.0)
    return jnp.transpose(t, (2, 0, 1)).astype(jnp.float32)


def _fc1_blocks(fc1_w):
    """(5, 144, 120): per sparse pool2 row p2h, column 32*p2w + oc maps to the
    PyTorch NCHW flatten index oc*25 + p2h*5 + p2w; dead columns are zero."""
    cols = np.arange(144)
    oc = cols % 32
    p2w = cols // 32
    valid = oc < 16
    oc_i = np.where(valid, oc, 0)
    blocks = []
    for p2h in range(5):
        flat = oc_i * 25 + p2h * 5 + p2w
        blk = fc1_w[:, flat].T                       # (144, 120)
        blocks.append(jnp.where(jnp.asarray(valid)[:, None], blk, 0.0))
    return jnp.stack(blocks, axis=0).astype(jnp.float32)


# --------------------------------- forward ---------------------------------

@jax.jit
def net_forward(params, x):
    n = x.shape[0]
    # Packed input layout: (N, H, W*C), channels innermost on the lane axis.
    x_lay = jnp.transpose(x, (0, 2, 3, 1)).reshape(n, 32, 32 * 3)

    # Weight-side preprocessing only (tiny; fused/CSE'd by XLA).
    w1 = _conv_toeplitz(params["conv1_w"], in_cols=96, col_stride=3, out_w=28)
    b1 = jnp.tile(params["conv1_b"], 28)[None, :]                 # (1, 168)
    w2 = _conv_toeplitz(params["conv2_w"], in_cols=162, col_stride=12, out_w=10)
    b2 = jnp.tile(params["conv2_b"], 10)[None, :]                 # (1, 160)
    wf1 = _fc1_blocks(params["fc1_w"])                            # (5, 144, 120)
    bf1 = params["fc1_b"][None, :]                                # (1, 120)
    wf2 = params["fc2_w"].T                                       # (120, 84)
    bf2 = params["fc2_b"][None, :]                                # (1, 84)
    wf3 = jnp.pad(params["fc3_w"].T, ((0, 0), (0, 118)))          # (84, 128)
    bf3 = jnp.pad(params["fc3_b"], (0, 118))[None, :]             # (1, 128)

    out = pl.pallas_call(
        _lenet_kernel,
        grid=(n,),
        in_specs=[
            pl.BlockSpec((None, 32, 96), lambda i: (i, 0, 0)),    # per-image x
            pl.BlockSpec((5, 96, 168), lambda i: (0, 0, 0)),      # conv1 (Toeplitz)
            pl.BlockSpec((1, 168), lambda i: (0, 0)),
            pl.BlockSpec((5, 162, 160), lambda i: (0, 0, 0)),     # conv2 (Toeplitz)
            pl.BlockSpec((1, 160), lambda i: (0, 0)),
            pl.BlockSpec((5, 144, 120), lambda i: (0, 0, 0)),     # fc1 (sparse rows)
            pl.BlockSpec((1, 120), lambda i: (0, 0)),
            pl.BlockSpec((120, 84), lambda i: (0, 0)),            # fc2
            pl.BlockSpec((1, 84), lambda i: (0, 0)),
            pl.BlockSpec((84, 128), lambda i: (0, 0)),            # fc3 (padded)
            pl.BlockSpec((1, 128), lambda i: (0, 0)),
        ],
        out_specs=pl.BlockSpec((None, 1, 128), lambda i: (i, 0, 0)),
        out_shape=jax.ShapeDtypeStruct((n, 1, 128), jnp.float32),
        compiler_params=pltpu.CompilerParams(
            dimension_semantics=("parallel",)),
    )(x_lay, w1, b1, w2, b2, wf1, bf1, wf2, bf2, wf3, bf3)
    return out[:, 0, :10]


# ------------------------------ init + reference ----------------------------

def init_params(key):
    """Deterministic init mimicking PyTorch default uniform(-1/sqrt(fan_in), .)."""
    def uni(k, shape, fan_in):
        bound = 1.0 / float(fan_in) ** 0.5
        return jax.random.uniform(k, shape, jnp.float32, -bound, bound)

    ks = jax.random.split(key, 10)
    return {
        "conv1_w": uni(ks[0], (6, 3, 5, 5), 3 * 5 * 5),
        "conv1_b": uni(ks[1], (6,), 3 * 5 * 5),
        "conv2_w": uni(ks[2], (16, 6, 5, 5), 6 * 5 * 5),
        "conv2_b": uni(ks[3], (16,), 6 * 5 * 5),
        "fc1_w": uni(ks[4], (120, 16 * 5 * 5), 16 * 5 * 5),
        "fc1_b": uni(ks[5], (120,), 16 * 5 * 5),
        "fc2_w": uni(ks[6], (84, 120), 120),
        "fc2_b": uni(ks[7], (84,), 120),
        "fc3_w": uni(ks[8], (10, 84), 84),
        "fc3_b": uni(ks[9], (10,), 84),
    }


def reference_forward(params, x):
    """Pure-JAX reference with the exact PyTorch semantics (for validation)."""
    dn = ("NCHW", "OIHW", "NCHW")
    y = lax.conv_general_dilated(x, params["conv1_w"], (1, 1), "VALID",
                                 dimension_numbers=dn)
    y = jnp.maximum(y + params["conv1_b"][None, :, None, None], 0.0)
    y = lax.reduce_window(y, -jnp.inf, lax.max, (1, 1, 2, 2), (1, 1, 2, 2), "VALID")
    y = lax.conv_general_dilated(y, params["conv2_w"], (1, 1), "VALID",
                                 dimension_numbers=dn)
    y = jnp.maximum(y + params["conv2_b"][None, :, None, None], 0.0)
    y = lax.reduce_window(y, -jnp.inf, lax.max, (1, 1, 2, 2), (1, 1, 2, 2), "VALID")
    y = y.reshape(y.shape[0], -1)
    y = jnp.maximum(y @ params["fc1_w"].T + params["fc1_b"], 0.0)
    y = jnp.maximum(y @ params["fc2_w"].T + params["fc2_b"], 0.0)
    return y @ params["fc3_w"].T + params["fc3_b"]


if __name__ == "__main__":
    key = jax.random.PRNGKey(0)
    pkey, xkey = jax.random.split(key)
    params = init_params(pkey)
    # The module's flatten (16*5*5) fixes the spatial size at 32x32; batch=2.
    x = jax.random.normal(xkey, (2, 3, 32, 32), jnp.float32)

    out = net_forward(params, x)
    jax.block_until_ready(out)
    assert out.shape == (2, 10) and out.dtype == jnp.float32

    ref = jax.jit(reference_forward)(params, x)
    np.testing.assert_allclose(np.asarray(out), np.asarray(ref),
                               rtol=2e-2, atol=2e-2)
    print("KERNEL_OK")
</pallas_src>

<mosaic_0001>
module attributes {stable_mosaic.version = 11 : i64} {
  func.func @_lenet_kernel(%arg0: i32, %arg1: memref<1x32x96xf32, #tpu.memory_space<vmem>>, %arg2: memref<5x96x168xf32, #tpu.memory_space<vmem>>, %arg3: memref<1x168xf32, #tpu.memory_space<vmem>>, %arg4: memref<5x162x160xf32, #tpu.memory_space<vmem>>, %arg5: memref<1x160xf32, #tpu.memory_space<vmem>>, %arg6: memref<5x144x120xf32, #tpu.memory_space<vmem>>, %arg7: memref<1x120xf32, #tpu.memory_space<vmem>>, %arg8: memref<120x84xf32, #tpu.memory_space<vmem>>, %arg9: memref<1x84xf32, #tpu.memory_space<vmem>>, %arg10: memref<84x128xf32, #tpu.memory_space<vmem>>, %arg11: memref<1x128xf32, #tpu.memory_space<vmem>>, %arg12: memref<1x1x128xf32, #tpu.memory_space<vmem>>) attributes {dimension_semantics = [#tpu.dimension_semantics<parallel>], iteration_bounds = array<i64: 2>, scalar_prefetch = 0 : i64, scratch_operands = 0 : i64, tpu.core_type = #tpu.core_type<tc>, window_params = [{transform_indices = @transform_0, window_bounds = array<i64: 1, 32, 96>}, {pipeline_mode = #tpu.pipeline_mode<synchronous>, transform_indices = @transform_1, window_bounds = array<i64: 5, 96, 168>}, {pipeline_mode = #tpu.pipeline_mode<synchronous>, transform_indices = @transform_2, window_bounds = array<i64: 1, 168>}, {pipeline_mode = #tpu.pipeline_mode<synchronous>, transform_indices = @transform_3, window_bounds = array<i64: 5, 162, 160>}, {pipeline_mode = #tpu.pipeline_mode<synchronous>, transform_indices = @transform_4, window_bounds = array<i64: 1, 160>}, {pipeline_mode = #tpu.pipeline_mode<synchronous>, transform_indices = @transform_5, window_bounds = array<i64: 5, 144, 120>}, {pipeline_mode = #tpu.pipeline_mode<synchronous>, transform_indices = @transform_6, window_bounds = array<i64: 1, 120>}, {pipeline_mode = #tpu.pipeline_mode<synchronous>, transform_indices = @transform_7, window_bounds = array<i64: 120, 84>}, {pipeline_mode = #tpu.pipeline_mode<synchronous>, transform_indices = @transform_8, window_bounds = array<i64: 1, 84>}, {pipeline_mode = #tpu.pipeline_mode<synchronous>, transform_indices = @transform_9, window_bounds = array<i64: 84, 128>}, {pipeline_mode = #tpu.pipeline_mode<synchronous>, transform_indices = @transform_10, window_bounds = array<i64: 1, 128>}, {transform_indices = @transform_11, window_bounds = array<i64: 1, 1, 128>}]} {
    %c0 = arith.constant 0 : index
    %c0_0 = arith.constant 0 : index
    %c0_1 = arith.constant 0 : index
    %0 = vector.load %arg1[%c0, %c0_0, %c0_1] : memref<1x32x96xf32, #tpu.memory_space<vmem>>, vector<1x32x96xf32>
    %1 = vector.shape_cast %0 : vector<1x32x96xf32> to vector<32x96xf32>
    %cst = arith.constant 0.000000e+00 : f32
    %2 = vector.broadcast %cst : f32 to vector<28x168xf32>
    %3 = vector.extract_strided_slice %1 {offsets = [0, 0], sizes = [28, 96], strides = [1, 1]} : vector<32x96xf32> to vector<28x96xf32>
    %c0_2 = arith.constant 0 : index
    %c0_3 = arith.constant 0 : index
    %c0_4 = arith.constant 0 : index
    %4 = vector.load %arg2[%c0_2, %c0_3, %c0_4] : memref<5x96x168xf32, #tpu.memory_space<vmem>>, vector<1x96x168xf32>
    %5 = vector.shape_cast %4 : vector<1x96x168xf32> to vector<96x168xf32>
    %cst_5 = arith.constant dense<0.000000e+00> : vector<28x168xf32>
    %6 = tpu.matmul %3, %5, %cst_5 {dimension_numbers = #tpu.dot_dimension_numbers<[1], [0], [0], [1], [0, 0, 1, 1], [], []>} : vector<28x96xf32>, vector<96x168xf32>, vector<28x168xf32> -> vector<28x168xf32>
    %7 = arith.addf %2, %6 : vector<28x168xf32>
    %8 = vector.extract_strided_slice %1 {offsets = [1, 0], sizes = [28, 96], strides = [1, 1]} : vector<32x96xf32> to vector<28x96xf32>
    %c1 = arith.constant 1 : index
    %c0_6 = arith.constant 0 : index
    %c0_7 = arith.constant 0 : index
    %9 = vector.load %arg2[%c1, %c0_6, %c0_7] : memref<5x96x168xf32, #tpu.memory_space<vmem>>, vector<1x96x168xf32>
    %10 = vector.shape_cast %9 : vector<1x96x168xf32> to vector<96x168xf32>
    %cst_8 = arith.constant dense<0.000000e+00> : vector<28x168xf32>
    %11 = tpu.matmul %8, %10, %cst_8 {dimension_numbers = #tpu.dot_dimension_numbers<[1], [0], [0], [1], [0, 0, 1, 1], [], []>} : vector<28x96xf32>, vector<96x168xf32>, vector<28x168xf32> -> vector<28x168xf32>
    %12 = arith.addf %7, %11 : vector<28x168xf32>
    %13 = vector.extract_strided_slice %1 {offsets = [2, 0], sizes = [28, 96], strides = [1, 1]} : vector<32x96xf32> to vector<28x96xf32>
    %c2 = arith.constant 2 : index
    %c0_9 = arith.constant 0 : index
    %c0_10 = arith.constant 0 : index
    %14 = vector.load %arg2[%c2, %c0_9, %c0_10] : memref<5x96x168xf32, #tpu.memory_space<vmem>>, vector<1x96x168xf32>
    %15 = vector.shape_cast %14 : vector<1x96x168xf32> to vector<96x168xf32>
    %cst_11 = arith.constant dense<0.000000e+00> : vector<28x168xf32>
    %16 = tpu.matmul %13, %15, %cst_11 {dimension_numbers = #tpu.dot_dimension_numbers<[1], [0], [0], [1], [0, 0, 1, 1], [], []>} : vector<28x96xf32>, vector<96x168xf32>, vector<28x168xf32> -> vector<28x168xf32>
    %17 = arith.addf %12, %16 : vector<28x168xf32>
    %18 = vector.extract_strided_slice %1 {offsets = [3, 0], sizes = [28, 96], strides = [1, 1]} : vector<32x96xf32> to vector<28x96xf32>
    %c3 = arith.constant 3 : index
    %c0_12 = arith.constant 0 : index
    %c0_13 = arith.constant 0 : index
    %19 = vector.load %arg2[%c3, %c0_12, %c0_13] : memref<5x96x168xf32, #tpu.memory_space<vmem>>, vector<1x96x168xf32>
    %20 = vector.shape_cast %19 : vector<1x96x168xf32> to vector<96x168xf32>
    %cst_14 = arith.constant dense<0.000000e+00> : vector<28x168xf32>
    %21 = tpu.matmul %18, %20, %cst_14 {dimension_numbers = #tpu.dot_dimension_numbers<[1], [0], [0], [1], [0, 0, 1, 1], [], []>} : vector<28x96xf32>, vector<96x168xf32>, vector<28x168xf32> -> vector<28x168xf32>
    %22 = arith.addf %17, %21 : vector<28x168xf32>
    %23 = vector.extract_strided_slice %1 {offsets = [4, 0], sizes = [28, 96], strides = [1, 1]} : vector<32x96xf32> to vector<28x96xf32>
    %c4 = arith.constant 4 : index
    %c0_15 = arith.constant 0 : index
    %c0_16 = arith.constant 0 : index
    %24 = vector.load %arg2[%c4, %c0_15, %c0_16] : memref<5x96x168xf32, #tpu.memory_space<vmem>>, vector<1x96x168xf32>
    %25 = vector.shape_cast %24 : vector<1x96x168xf32> to vector<96x168xf32>
    %cst_17 = arith.constant dense<0.000000e+00> : vector<28x168xf32>
    %26 = tpu.matmul %23, %25, %cst_17 {dimension_numbers = #tpu.dot_dimension_numbers<[1], [0], [0], [1], [0, 0, 1, 1], [], []>} : vector<28x96xf32>, vector<96x168xf32>, vector<28x168xf32> -> vector<28x168xf32>
    %27 = arith.addf %22, %26 : vector<28x168xf32>
    %c0_18 = arith.constant 0 : index
    %c0_19 = arith.constant 0 : index
    %28 = vector.load %arg3[%c0_18, %c0_19] : memref<1x168xf32, #tpu.memory_space<vmem>>, vector<1x168xf32>
    %29 = vector.broadcast %28 : vector<1x168xf32> to vector<28x168xf32>
    %30 = arith.addf %27, %29 : vector<28x168xf32>
    %cst_20 = arith.constant 0.000000e+00 : f32
    %31 = vector.broadcast %cst_20 : f32 to vector<28x168xf32>
    %32 = arith.maximumf %30, %31 : vector<28x168xf32>
    %33 = vector.extract_strided_slice %32 {offsets = [0, 0], sizes = [27, 168], strides = [1, 1]} : vector<28x168xf32> to vector<27x168xf32>
    %34 = vector.extract_strided_slice %32 {offsets = [1, 0], sizes = [27, 168], strides = [1, 1]} : vector<28x168xf32> to vector<27x168xf32>
    %35 = arith.maximumf %33, %34 : vector<27x168xf32>
    %36 = vector.extract_strided_slice %35 {offsets = [0, 0], sizes = [27, 162], strides = [1, 1]} : vector<27x168xf32> to vector<27x162xf32>
    %37 = vector.extract_strided_slice %35 {offsets = [0, 6], sizes = [27, 162], strides = [1, 1]} : vector<27x168xf32> to vector<27x162xf32>
    %38 = arith.maximumf %36, %37 : vector<27x162xf32>
    %cst_21 = arith.constant 0.000000e+00 : f32
    %39 = vector.broadcast %cst_21 : f32 to vector<19x160xf32>
    %40 = vector.extract_strided_slice %38 {offsets = [0, 0], sizes = [19, 162], strides = [1, 1]} : vector<27x162xf32> to vector<19x162xf32>
    %c0_22 = arith.constant 0 : index
    %c0_23 = arith.constant 0 : index
    %c0_24 = arith.constant 0 : index
    %41 = vector.load %arg4[%c0_22, %c0_23, %c0_24] : memref<5x162x160xf32, #tpu.memory_space<vmem>>, vector<1x162x160xf32>
    %42 = vector.shape_cast %41 : vector<1x162x160xf32> to vector<162x160xf32>
    %cst_25 = arith.constant dense<0.000000e+00> : vector<19x160xf32>
    %43 = tpu.matmul %40, %42, %cst_25 {dimension_numbers = #tpu.dot_dimension_numbers<[1], [0], [0], [1], [0, 0, 1, 1], [], []>} : vector<19x162xf32>, vector<162x160xf32>, vector<19x160xf32> -> vector<19x160xf32>
    %44 = arith.addf %39, %43 : vector<19x160xf32>
    %45 = vector.extract_strided_slice %38 {offsets = [2, 0], sizes = [19, 162], strides = [1, 1]} : vector<27x162xf32> to vector<19x162xf32>
    %c1_26 = arith.constant 1 : index
    %c0_27 = arith.constant 0 : index
    %c0_28 = arith.constant 0 : index
    %46 = vector.load %arg4[%c1_26, %c0_27, %c0_28] : memref<5x162x160xf32, #tpu.memory_space<vmem>>, vector<1x162x160xf32>
    %47 = vector.shape_cast %46 : vector<1x162x160xf32> to vector<162x160xf32>
    %cst_29 = arith.constant dense<0.000000e+00> : vector<19x160xf32>
    %48 = tpu.matmul %45, %47, %cst_29 {dimension_numbers = #tpu.dot_dimension_numbers<[1], [0], [0], [1], [0, 0, 1, 1], [], []>} : vector<19x162xf32>, vector<162x160xf32>, vector<19x160xf32> -> vector<19x160xf32>
    %49 = arith.addf %44, %48 : vector<19x160xf32>
    %50 = vector.extract_strided_slice %38 {offsets = [4, 0], sizes = [19, 162], strides = [1, 1]} : vector<27x162xf32> to vector<19x162xf32>
    %c2_30 = arith.constant 2 : index
    %c0_31 = arith.constant 0 : index
    %c0_32 = arith.constant 0 : index
    %51 = vector.load %arg4[%c2_30, %c0_31, %c0_32] : memref<5x162x160xf32, #tpu.memory_space<vmem>>, vector<1x162x160xf32>
    %52 = vector.shape_cast %51 : vector<1x162x160xf32> to vector<162x160xf32>
    %cst_33 = arith.constant dense<0.000000e+00> : vector<19x160xf32>
    %53 = tpu.matmul %50, %52, %cst_33 {dimension_numbers = #tpu.dot_dimension_numbers<[1], [0], [0], [1], [0, 0, 1, 1], [], []>} : vector<19x162xf32>, vector<162x160xf32>, vector<19x160xf32> -> vector<19x160xf32>
    %54 = arith.addf %49, %53 : vector<19x160xf32>
    %55 = vector.extract_strided_slice %38 {offsets = [6, 0], sizes = [19, 162], strides = [1, 1]} : vector<27x162xf32> to vector<19x162xf32>
    %c3_34 = arith.constant 3 : index
    %c0_35 = arith.constant 0 : index
    %c0_36 = arith.constant 0 : index
    %56 = vector.load %arg4[%c3_34, %c0_35, %c0_36] : memref<5x162x160xf32, #tpu.memory_space<vmem>>, vector<1x162x160xf32>
    %57 = vector.shape_cast %56 : vector<1x162x160xf32> to vector<162x160xf32>
    %cst_37 = arith.constant dense<0.000000e+00> : vector<19x160xf32>
    %58 = tpu.matmul %55, %57, %cst_37 {dimension_numbers = #tpu.dot_dimension_numbers<[1], [0], [0], [1], [0, 0, 1, 1], [], []>} : vector<19x162xf32>, vector<162x160xf32>, vector<19x160xf32> -> vector<19x160xf32>
    %59 = arith.addf %54, %58 : vector<19x160xf32>
    %60 = vector.extract_strided_slice %38 {offsets = [8, 0], sizes = [19, 162], strides = [1, 1]} : vector<27x162xf32> to vector<19x162xf32>
    %c4_38 = arith.constant 4 : index
    %c0_39 = arith.constant 0 : index
    %c0_40 = arith.constant 0 : index
    %61 = vector.load %arg4[%c4_38, %c0_39, %c0_40] : memref<5x162x160xf32, #tpu.memory_space<vmem>>, vector<1x162x160xf32>
    %62 = vector.shape_cast %61 : vector<1x162x160xf32> to vector<162x160xf32>
    %cst_41 = arith.constant dense<0.000000e+00> : vector<19x160xf32>
    %63 = tpu.matmul %60, %62, %cst_41 {dimension_numbers = #tpu.dot_dimension_numbers<[1], [0], [0], [1], [0, 0, 1, 1], [], []>} : vector<19x162xf32>, vector<162x160xf32>, vector<19x160xf32> -> vector<19x160xf32>
    %64 = arith.addf %59, %63 : vector<19x160xf32>
    %c0_42 = arith.constant 0 : index
    %c0_43 = arith.constant 0 : index
    %65 = vector.load %arg5[%c0_42, %c0_43] : memref<1x160xf32, #tpu.memory_space<vmem>>, vector<1x160xf32>
    %66 = vector.broadcast %65 : vector<1x160xf32> to vector<19x160xf32>
    %67 = arith.addf %64, %66 : vector<19x160xf32>
    %cst_44 = arith.constant 0.000000e+00 : f32
    %68 = vector.broadcast %cst_44 : f32 to vector<19x160xf32>
    %69 = arith.maximumf %67, %68 : vector<19x160xf32>
    %70 = vector.extract_strided_slice %69 {offsets = [0, 0], sizes = [17, 160], strides = [1, 1]} : vector<19x160xf32> to vector<17x160xf32>
    %71 = vector.extract_strided_slice %69 {offsets = [2, 0], sizes = [17, 160], strides = [1, 1]} : vector<19x160xf32> to vector<17x160xf32>
    %72 = arith.maximumf %70, %71 : vector<17x160xf32>
    %73 = vector.extract_strided_slice %72 {offsets = [0, 0], sizes = [17, 144], strides = [1, 1]} : vector<17x160xf32> to vector<17x144xf32>
    %74 = vector.extract_strided_slice %72 {offsets = [0, 16], sizes = [17, 144], strides = [1, 1]} : vector<17x160xf32> to vector<17x144xf32>
    %75 = arith.maximumf %73, %74 : vector<17x144xf32>
    %c0_45 = arith.constant 0 : index
    %c0_46 = arith.constant 0 : index
    %76 = vector.load %arg7[%c0_45, %c0_46] : memref<1x120xf32, #tpu.memory_space<vmem>>, vector<1x120xf32>
    %77 = vector.extract_strided_slice %75 {offsets = [0, 0], sizes = [1, 144], strides = [1, 1]} : vector<17x144xf32> to vector<1x144xf32>
    %c0_47 = arith.constant 0 : index
    %c0_48 = arith.constant 0 : index
    %c0_49 = arith.constant 0 : index
    %78 = vector.load %arg6[%c0_47, %c0_48, %c0_49] : memref<5x144x120xf32, #tpu.memory_space<vmem>>, vector<1x144x120xf32>
    %79 = vector.shape_cast %78 : vector<1x144x120xf32> to vector<144x120xf32>
    %cst_50 = arith.constant dense<0.000000e+00> : vector<1x120xf32>
    %80 = tpu.matmul %77, %79, %cst_50 {dimension_numbers = #tpu.dot_dimension_numbers<[1], [0], [0], [1], [0, 0, 1, 1], [], []>} : vector<1x144xf32>, vector<144x120xf32>, vector<1x120xf32> -> vector<1x120xf32>
    %81 = arith.addf %76, %80 : vector<1x120xf32>
    %82 = vector.extract_strided_slice %75 {offsets = [4, 0], sizes = [1, 144], strides = [1, 1]} : vector<17x144xf32> to vector<1x144xf32>
    %c1_51 = arith.constant 1 : index
    %c0_52 = arith.constant 0 : index
    %c0_53 = arith.constant 0 : index
    %83 = vector.load %arg6[%c1_51, %c0_52, %c0_53] : memref<5x144x120xf32, #tpu.memory_space<vmem>>, vector<1x144x120xf32>
    %84 = vector.shape_cast %83 : vector<1x144x120xf32> to vector<144x120xf32>
    %cst_54 = arith.constant dense<0.000000e+00> : vector<1x120xf32>
    %85 = tpu.matmul %82, %84, %cst_54 {dimension_numbers = #tpu.dot_dimension_numbers<[1], [0], [0], [1], [0, 0, 1, 1], [], []>} : vector<1x144xf32>, vector<144x120xf32>, vector<1x120xf32> -> vector<1x120xf32>
    %86 = arith.addf %81, %85 : vector<1x120xf32>
    %87 = vector.extract_strided_slice %75 {offsets = [8, 0], sizes = [1, 144], strides = [1, 1]} : vector<17x144xf32> to vector<1x144xf32>
    %c2_55 = arith.constant 2 : index
    %c0_56 = arith.constant 0 : index
    %c0_57 = arith.constant 0 : index
    %88 = vector.load %arg6[%c2_55, %c0_56, %c0_57] : memref<5x144x120xf32, #tpu.memory_space<vmem>>, vector<1x144x120xf32>
    %89 = vector.shape_cast %88 : vector<1x144x120xf32> to vector<144x120xf32>
    %cst_58 = arith.constant dense<0.000000e+00> : vector<1x120xf32>
    %90 = tpu.matmul %87, %89, %cst_58 {dimension_numbers = #tpu.dot_dimension_numbers<[1], [0], [0], [1], [0, 0, 1, 1], [], []>} : vector<1x144xf32>, vector<144x120xf32>, vector<1x120xf32> -> vector<1x120xf32>
    %91 = arith.addf %86, %90 : vector<1x120xf32>
    %92 = vector.extract_strided_slice %75 {offsets = [12, 0], sizes = [1, 144], strides = [1, 1]} : vector<17x144xf32> to vector<1x144xf32>
    %c3_59 = arith.constant 3 : index
    %c0_60 = arith.constant 0 : index
    %c0_61 = arith.constant 0 : index
    %93 = vector.load %arg6[%c3_59, %c0_60, %c0_61] : memref<5x144x120xf32, #tpu.memory_space<vmem>>, vector<1x144x120xf32>
    %94 = vector.shape_cast %93 : vector<1x144x120xf32> to vector<144x120xf32>
    %cst_62 = arith.constant dense<0.000000e+00> : vector<1x120xf32>
    %95 = tpu.matmul %92, %94, %cst_62 {dimension_numbers = #tpu.dot_dimension_numbers<[1], [0], [0], [1], [0, 0, 1, 1], [], []>} : vector<1x144xf32>, vector<144x120xf32>, vector<1x120xf32> -> vector<1x120xf32>
    %96 = arith.addf %91, %95 : vector<1x120xf32>
    %97 = vector.extract_strided_slice %75 {offsets = [16, 0], sizes = [1, 144], strides = [1, 1]} : vector<17x144xf32> to vector<1x144xf32>
    %c4_63 = arith.constant 4 : index
    %c0_64 = arith.constant 0 : index
    %c0_65 = arith.constant 0 : index
    %98 = vector.load %arg6[%c4_63, %c0_64, %c0_65] : memref<5x144x120xf32, #tpu.memory_space<vmem>>, vector<1x144x120xf32>
    %99 = vector.shape_cast %98 : vector<1x144x120xf32> to vector<144x120xf32>
    %cst_66 = arith.constant dense<0.000000e+00> : vector<1x120xf32>
    %100 = tpu.matmul %97, %99, %cst_66 {dimension_numbers = #tpu.dot_dimension_numbers<[1], [0], [0], [1], [0, 0, 1, 1], [], []>} : vector<1x144xf32>, vector<144x120xf32>, vector<1x120xf32> -> vector<1x120xf32>
    %101 = arith.addf %96, %100 : vector<1x120xf32>
    %cst_67 = arith.constant 0.000000e+00 : f32
    %102 = vector.broadcast %cst_67 : f32 to vector<1x120xf32>
    %103 = arith.maximumf %101, %102 : vector<1x120xf32>
    %c0_68 = arith.constant 0 : index
    %c0_69 = arith.constant 0 : index
    %104 = vector.load %arg8[%c0_68, %c0_69] : memref<120x84xf32, #tpu.memory_space<vmem>>, vector<120x84xf32>
    %cst_70 = arith.constant dense<0.000000e+00> : vector<1x84xf32>
    %105 = tpu.matmul %103, %104, %cst_70 {dimension_numbers = #tpu.dot_dimension_numbers<[1], [0], [0], [1], [0, 0, 1, 1], [], []>} : vector<1x120xf32>, vector<120x84xf32>, vector<1x84xf32> -> vector<1x84xf32>
    %c0_71 = arith.constant 0 : index
    %c0_72 = arith.constant 0 : index
    %106 = vector.load %arg9[%c0_71, %c0_72] : memref<1x84xf32, #tpu.memory_space<vmem>>, vector<1x84xf32>
    %107 = arith.addf %105, %106 : vector<1x84xf32>
    %cst_73 = arith.constant 0.000000e+00 : f32
    %108 = vector.broadcast %cst_73 : f32 to vector<1x84xf32>
    %109 = arith.maximumf %107, %108 : vector<1x84xf32>
    %c0_74 = arith.constant 0 : index
    %c0_75 = arith.constant 0 : index
    %110 = vector.load %arg10[%c0_74, %c0_75] : memref<84x128xf32, #tpu.memory_space<vmem>>, vector<84x128xf32>
    %cst_76 = arith.constant dense<0.000000e+00> : vector<1x128xf32>
    %111 = tpu.matmul %109, %110, %cst_76 {dimension_numbers = #tpu.dot_dimension_numbers<[1], [0], [0], [1], [0, 0, 1, 1], [], []>} : vector<1x84xf32>, vector<84x128xf32>, vector<1x128xf32> -> vector<1x128xf32>
    %c0_77 = arith.constant 0 : index
    %c0_78 = arith.constant 0 : index
    %112 = vector.load %arg11[%c0_77, %c0_78] : memref<1x128xf32, #tpu.memory_space<vmem>>, vector<1x128xf32>
    %113 = arith.addf %111, %112 : vector<1x128xf32>
    %c0_79 = arith.constant 0 : index
    %c0_80 = arith.constant 0 : index
    %c0_81 = arith.constant 0 : index
    %114 = vector.load %arg12[%c0_79, %c0_80, %c0_81] : memref<1x1x128xf32, #tpu.memory_space<vmem>>, vector<1x1x128xf32>
    %115 = vector.shape_cast %114 : vector<1x1x128xf32> to vector<1x128xf32>
    %116 = vector.shape_cast %113 : vector<1x128xf32> to vector<1x1x128xf32>
    tpu.vector_store %arg12[%c0_79, %c0_80, %c0_81], %116 {strides = array<i32>} : memref<1x1x128xf32, #tpu.memory_space<vmem>>, vector<1x1x128xf32>,
    return
  }
  func.func @transform_0(%arg0: i32) -> (i32, i32, i32) {
    %c0_i32 = arith.constant 0 : i32
    %c0_i32_0 = arith.constant 0 : i32
    %c0_i32_1 = arith.constant 0 : i32
    return %arg0, %c0_i32, %c0_i32_0 : i32, i32, i32
  }
  func.func @transform_1(%arg0: i32) -> (i32, i32, i32) {
    %c0_i32 = arith.constant 0 : i32
    %c0_i32_0 = arith.constant 0 : i32
    %c0_i32_1 = arith.constant 0 : i32
    %c0_i32_2 = arith.constant 0 : i32
    return %c0_i32, %c0_i32_0, %c0_i32_1 : i32, i32, i32
  }
  func.func @transform_2(%arg0: i32) -> (i32, i32) {
    %c0_i32 = arith.constant 0 : i32
    %c0_i32_0 = arith.constant 0 : i32
    %c0_i32_1 = arith.constant 0 : i32
    return %c0_i32, %c0_i32_0 : i32, i32
  }
  func.func @transform_3(%arg0: i32) -> (i32, i32, i32) {
    %c0_i32 = arith.constant 0 : i32
    %c0_i32_0 = arith.constant 0 : i32
    %c0_i32_1 = arith.constant 0 : i32
    %c0_i32_2 = arith.constant 0 : i32
    return %c0_i32, %c0_i32_0, %c0_i32_1 : i32, i32, i32
  }
  func.func @transform_4(%arg0: i32) -> (i32, i32) {
    %c0_i32 = arith.constant 0 : i32
    %c0_i32_0 = arith.constant 0 : i32
    %c0_i32_1 = arith.constant 0 : i32
    return %c0_i32, %c0_i32_0 : i32, i32
  }
  func.func @transform_5(%arg0: i32) -> (i32, i32, i32) {
    %c0_i32 = arith.constant 0 : i32
    %c0_i32_0 = arith.constant 0 : i32
    %c0_i32_1 = arith.constant 0 : i32
    %c0_i32_2 = arith.constant 0 : i32
    return %c0_i32, %c0_i32_0, %c0_i32_1 : i32, i32, i32
  }
  func.func @transform_6(%arg0: i32) -> (i32, i32) {
    %c0_i32 = arith.constant 0 : i32
    %c0_i32_0 = arith.constant 0 : i32
    %c0_i32_1 = arith.constant 0 : i32
    return %c0_i32, %c0_i32_0 : i32, i32
  }
  func.func @transform_7(%arg0: i32) -> (i32, i32) {
    %c0_i32 = arith.constant 0 : i32
    %c0_i32_0 = arith.constant 0 : i32
    %c0_i32_1 = arith.constant 0 : i32
    return %c0_i32, %c0_i32_0 : i32, i32
  }
  func.func @transform_8(%arg0: i32) -> (i32, i32) {
    %c0_i32 = arith.constant 0 : i32
    %c0_i32_0 = arith.constant 0 : i32
    %c0_i32_1 = arith.constant 0 : i32
    return %c0_i32, %c0_i32_0 : i32, i32
  }
  func.func @transform_9(%arg0: i32) -> (i32, i32) {
    %c0_i32 = arith.constant 0 : i32
    %c0_i32_0 = arith.constant 0 : i32
    %c0_i32_1 = arith.constant 0 : i32
    return %c0_i32, %c0_i32_0 : i32, i32
  }
  func.func @transform_10(%arg0: i32) -> (i32, i32) {
    %c0_i32 = arith.constant 0 : i32
    %c0_i32_0 = arith.constant 0 : i32
    %c0_i32_1 = arith.constant 0 : i32
    return %c0_i32, %c0_i32_0 : i32, i32
  }
  func.func @transform_11(%arg0: i32) -> (i32, i32, i32) {
    %c0_i32 = arith.constant 0 : i32
    %c0_i32_0 = arith.constant 0 : i32
    %c0_i32_1 = arith.constant 0 : i32
    return %arg0, %c0_i32, %c0_i32_0 : i32, i32, i32
  }
}

</mosaic_0001>

<llo_original>
// kernel: tile.13
$region0: #{tile.13}
  #allocation0 [shape = 's32[1]{0}', space=sflag, size = 0x4, scoped, tag = 'scoped memory for tile.13']
  %s0 = inlined_call_operand.vmem [shape: f32[6], index: 0, kind: input, shape index: {}]
  %s1 = inlined_call_operand.vmem [shape: f32[28,6], index: 1, kind: output, shape index: {}]
  // Predicated region
  $region2: #{tile.13} parent=0 // pred_check
    _
  $region3: #{tile.13} parent=0 // pred_check_branch
    %3 = sbr.rel (0) target = $region5
  $region4: #{tile.13} parent=0 // pred_region
    _
  $region5: #{tile.13} parent=0 // pred_fallthru
    _
  %v4 = vld [vmem:[%s0] ss:$0 sm:$0xff]
  %5 = vst [vmem:[%s1] sm:$0xff] %v4
  %s6 = scalar_lea.vmem %s1, 8
  %7 = vst [vmem:[%s6] sm:$0xff] %v4
  %s8 = scalar_lea.vmem %s1, 16
  %9 = vst [vmem:[%s8] sm:$0xff] %v4
  %s10 = scalar_lea.vmem %s1, 24
  %11 = vst [vmem:[%s10] sm:$0xff] %v4

// kernel: tile.18
$region0: #{tile.18}
  #allocation0 [shape = 's32[1]{0}', space=sflag, size = 0x4, scoped, tag = 'scoped memory for tile.18']
  %s0 = inlined_call_operand.vmem [shape: f32[16], index: 0, kind: input, shape index: {}]
  %s1 = inlined_call_operand.vmem [shape: f32[10,16], index: 1, kind: output, shape index: {}]
  // Predicated region
  $region2: #{tile.18} parent=0 // pred_check
    _
  $region3: #{tile.18} parent=0 // pred_check_branch
    %3 = sbr.rel (0) target = $region5
  $region4: #{tile.18} parent=0 // pred_region
    _
  $region5: #{tile.18} parent=0 // pred_fallthru
    _
  %v4 = vld [vmem:[%s0] ss:$0 sm:$0xff]
  %5 = vst [vmem:[%s1] sm:$0xff] %v4
  %s6 = scalar_lea.vmem %s1, 8
  %7 = vst [vmem:[%s6] sm:$0xff] %v4

// kernel: tile.14
$region0: #{tile.14}
  %s0 = inlined_call_operand.vmem [shape: f32[28,6], index: 0, kind: input, shape index: {}]
  %s1 = inlined_call_operand.vmem [shape: f32[1,168], index: 1, kind: output, shape index: {}]
  $region1: #{tile.14} parent=0
    #allocation0 [shape = 'u8[8192]{0}', space=vmem, size = 0x2000, scoped, tag = 'scoped mem for output reshape']
    %v2 = vld [vmem:[%s0] sm:$0x1]
    %vm3 = vcmask 48128
    %4 = vst.msk [vmem:[#allocation0] sm:$0x1] %vm3, %v2
    %s5 = scalar_lea.vmem %s0, 21
    %v6 = vld [vmem:[%s5] sm:$0x1]
    %s7 = scalar_lea.vmem %s0, 21
    %v8 = vld [vmem:[%s7] sm:$0x1]
    %vm9 = vcmask 15360
    %v10 = vsel %vm9, %v8, %v6
    %11 = vrot.lane.b32.xlu0 %v10, 126
    %v12 = vpop.permute.xlu0 %11
    %vm13 = vcmask 31744
    %s14 = scalar_lea.vmem [#allocation0], 8
    %15 = vst.msk [vmem:[%s14] sm:$0x1] %vm13, %v12
    %vm16 = vcmask 1048560
    %17 = vst.msk [vmem:[#allocation0] sm:$0x1] %vm16, %v12
    %s18 = scalar_lea.vmem %s0, 20
    %v19 = vld [vmem:[%s18] sm:$0x1]
    %20 = vrot.lane.b32.xlu0 %v19, 120
    %v21 = vpop.permute.xlu0 %20
    %vm22 = vcmask 1032128
    %23 = vst.msk [vmem:[#allocation0] sm:$0x1] %vm22, %v21
    %s24 = scalar_lea.vmem %s0, 19
    %v25 = vld [vmem:[%s24] sm:$0x1]
    %26 = vrot.lane.b32.xlu0 %v25, 114
    %v27 = vpop.permute.xlu0 %26
    %vm28 = vcmask 982928
    %29 = vst.msk [vmem:[#allocation0] sm:$0x1] %vm28, %v27
    %s30 = scalar_lea.vmem %s0, 18
    %v31 = vld [vmem:[%s30] sm:$0x1]
    %32 = vrot.lane.b32.xlu0 %v31, 108
    %v33 = vpop.permute.xlu0 %32
    %vm34 = vcmask 933728
    %35 = vst.msk [vmem:[#allocation0] sm:$0x1] %vm34, %v33
    %s36 = scalar_lea.vmem %s0, 17
    %v37 = vld [vmem:[%s36] sm:$0x1]
    %38 = vrot.lane.b32.xlu0 %v37, 102
    %v39 = vpop.permute.xlu0 %38
    %vm40 = vcmask 884528
    %41 = vst.msk [vmem:[#allocation0] sm:$0x1] %vm40, %v39
    %s42 = scalar_lea.vmem %s0, 16
    %v43 = vld [vmem:[%s42] sm:$0x1]
    %44 = vrot.lane.b32.xlu0 %v43, 96
    %v45 = vpop.permute.xlu0 %44
    %vm46 = vcmask 835328
    %47 = vst.msk [vmem:[#allocation0] sm:$0x1] %vm46, %v45
    %s48 = scalar_lea.vmem %s0, 15
    %v49 = vld [vmem:[%s48] sm:$0x1]
    %50 = vrot.lane.b32.xlu0 %v49, 90
    %v51 = vpop.permute.xlu0 %50
    %vm52 = vcmask 786128
    %53 = vst.msk [vmem:[#allocation0] sm:$0x1] %vm52, %v51
    %s54 = scalar_lea.vmem %s0, 14
    %v55 = vld [vmem:[%s54] sm:$0x1]
    %56 = vrot.lane.b32.xlu0 %v55, 84
    %v57 = vpop.permute.xlu0 %56
    %vm58 = vcmask 736928
    %59 = vst.msk [vmem:[#allocation0] sm:$0x1] %vm58, %v57
    %s60 = scalar_lea.vmem %s0, 13
    %v61 = vld [vmem:[%s60] sm:$0x1]
    %62 = vrot.lane.b32.xlu0 %v61, 78
    %v63 = vpop.permute.xlu0 %62
    %vm64 = vcmask 687728
    %65 = vst.msk [vmem:[#allocation0] sm:$0x1] %vm64, %v63
    %s66 = scalar_lea.vmem %s0, 12
    %v67 = vld [vmem:[%s66] sm:$0x1]
    %68 = vrot.lane.b32.xlu0 %v67, 72
    %v69 = vpop.permute.xlu0 %68
    %vm70 = vcmask 638528
    %71 = vst.msk [vmem:[#allocation0] sm:$0x1] %vm70, %v69
    %s72 = scalar_lea.vmem %s0, 11
    %v73 = vld [vmem:[%s72] sm:$0x1]
    %74 = vrot.lane.b32.xlu0 %v73, 66
    %v75 = vpop.permute.xlu0 %74
    %vm76 = vcmask 589328
    %77 = vst.msk [vmem:[#allocation0] sm:$0x1] %vm76, %v75
    %s78 = scalar_lea.vmem %s0, 10
    %v79 = vld [vmem:[%s78] sm:$0x1]
    %80 = vrot.lane.b32.xlu0 %v79, 60
    %v81 = vpop.permute.xlu0 %80
    %vm82 = vcmask 540128
    %83 = vst.msk [vmem:[#allocation0] sm:$0x1] %vm82, %v81
    %s84 = scalar_lea.vmem %s0, 9
    %v85 = vld [vmem:[%s84] sm:$0x1]
    %86 = vrot.lane.b32.xlu0 %v85, 54
    %v87 = vpop.permute.xlu0 %86
    %vm88 = vcmask 490928
    %89 = vst.msk [vmem:[#allocation0] sm:$0x1] %vm88, %v87
    %s90 = scalar_lea.vmem %s0, 8
    %v91 = vld [vmem:[%s90] sm:$0x1]
    %92 = vrot.lane.b32.xlu0 %v91, 48
    %v93 = vpop.permute.xlu0 %92
    %vm94 = vcmask 441728
    %95 = vst.msk [vmem:[#allocation0] sm:$0x1] %vm94, %v93
    %s96 = scalar_lea.vmem %s0, 7
    %v97 = vld [vmem:[%s96] sm:$0x1]
    %98 = vrot.lane.b32.xlu0 %v97, 42
    %v99 = vpop.permute.xlu0 %98
    %vm100 = vcmask 392528
    %101 = vst.msk [vmem:[#allocation0] sm:$0x1] %vm100, %v99
    %s102 = scalar_lea.vmem %s0, 6
    %v103 = vld [vmem:[%s102] sm:$0x1]
    %104 = vrot.lane.b32.xlu0 %v103, 36
    %v105 = vpop.permute.xlu0 %104
    %vm106 = vcmask 343328
    %107 = vst.msk [vmem:[#allocation0] sm:$0x1] %vm106, %v105
    %s108 = scalar_lea.vmem %s0, 27
    %v109 = vld [vmem:[%s108] sm:$0x1]
    %110 = vrot.lane.b32.xlu0 %v109, 34
    %v111 = vpop.permute.xlu0 %110
    %vm112 = vcmask 326928
    %s113 = scalar_lea.vmem [#allocation0], 8
    %114 = vst.msk [vmem:[%s113] sm:$0x1] %vm112, %v111
    %s115 = scalar_lea.vmem %s0, 5
    %v116 = vld [vmem:[%s115] sm:$0x1]
    %117 = vrot.lane.b32.xlu0 %v116, 30
    %v118 = vpop.permute.xlu0 %117
    %vm119 = vcmask 294128
    %120 = vst.msk [vmem:[#allocation0] sm:$0x1] %vm119, %v118
    %s121 = scalar_lea.vmem %s0, 26
    %v122 = vld [vmem:[%s121] sm:$0x1]
    %123 = vrot.lane.b32.xlu0 %v122, 28
    %v124 = vpop.permute.xlu0 %123
    %vm125 = vcmask 277728
    %s126 = scalar_lea.vmem [#allocation0], 8
    %127 = vst.msk [vmem:[%s126] sm:$0x1] %vm125, %v124
    %s128 = scalar_lea.vmem %s0, 4
    %v129 = vld [vmem:[%s128] sm:$0x1]
    %130 = vrot.lane.b32.xlu0 %v129, 24
    %v131 = vpop.permute.xlu0 %130
    %vm132 = vcmask 244928
    %133 = vst.msk [vmem:[#allocation0] sm:$0x1] %vm132, %v131
    %s134 = scalar_lea.vmem %s0, 25
    %v135 = vld [vmem:[%s134] sm:$0x1]
    %136 = vrot.lane.b32.xlu0 %v135, 22
    %v137 = vpop.permute.xlu0 %136
    %vm138 = vcmask 228528
    %s139 = scalar_lea.vmem [#allocation0], 8
    %140 = vst.msk [vmem:[%s139] sm:$0x1] %vm138, %v137
    %s141 = scalar_lea.vmem %s0, 3
    %v142 = vld [vmem:[%s141] sm:$0x1]
    %143 = vrot.lane.b32.xlu0 %v142, 18
    %v144 = vpop.permute.xlu0 %143
    %vm145 = vcmask 195728
    %146 = vst.msk [vmem:[#allocation0] sm:$0x1] %vm145, %v144
    %s147 = scalar_lea.vmem %s0, 24
    %v148 = vld [vmem:[%s147] sm:$0x1]
    %149 = vrot.lane.b32.xlu0 %v148, 16
    %v150 = vpop.permute.xlu0 %149
    %vm151 = vcmask 179328
    %s152 = scalar_lea.vmem [#allocation0], 8
    %153 = vst.msk [vmem:[%s152] sm:$0x1] %vm151, %v150
    %s154 = scalar_lea.vmem %s0, 2
    %v155 = vld [vmem:[%s154] sm:$0x1]
    %156 = vrot.lane.b32.xlu0 %v155, 12
    %v157 = vpop.permute.xlu0 %156
    %vm158 = vcmask 146528
    %159 = vst.msk [vmem:[#allocation0] sm:$0x1] %vm158, %v157
    %s160 = scalar_lea.vmem %s0, 23
    %v161 = vld [vmem:[%s160] sm:$0x1]
    %162 = vrot.lane.b32.xlu0 %v161, 10
    %v163 = vpop.permute.xlu0 %162
    %vm164 = vcmask 130128
    %s165 = scalar_lea.vmem [#allocation0], 8
    %166 = vst.msk [vmem:[%s165] sm:$0x1] %vm164, %v163
    %s167 = scalar_lea.vmem %s0, 1
    %v168 = vld [vmem:[%s167] sm:$0x1]
    %169 = vrot.lane.b32.xlu0 %v168, 6
    %v170 = vpop.permute.xlu0 %169
    %vm171 = vcmask 97328
    %172 = vst.msk [vmem:[#allocation0] sm:$0x1] %vm171, %v170
    %s173 = scalar_lea.vmem %s0, 22
    %v174 = vld [vmem:[%s173] sm:$0x1]
    %175 = vrot.lane.b32.xlu0 %v174, 4
    %v176 = vpop.permute.xlu0 %175
    %vm177 = vcmask 80928
    %s178 = scalar_lea.vmem [#allocation0], 8
    %179 = vst.msk [vmem:[%s178] sm:$0x1] %vm177, %v176
    %s181 = sshllo.u32 0, 1
    %v183 = vld [vmem:[#allocation0] sm:%s181]
    %s184 = sshllo.u32 0, 1
    %185 = vst [vmem:[%s1] sm:%s184] %v183
    %s186 = scalar_lea.vmem [#allocation0], 8
    %v187 = vld [vmem:[%s186] sm:%s181]
    %s188 = sshllo.u32 0, 1
    %s189 = scalar_lea.vmem %s1, 1
    %190 = vst [vmem:[%s189] sm:%s188] %v187

// kernel: tile.19
$region0: #{tile.19}
  %s0 = inlined_call_operand.vmem [shape: f32[10,16], index: 0, kind: input, shape index: {}]
  %s1 = inlined_call_operand.vmem [shape: f32[1,160], index: 1, kind: output, shape index: {}]
  $region1: #{tile.19} parent=0
    #allocation0 [shape = 'u8[8192]{0}', space=vmem, size = 0x2000, scoped, tag = 'scoped mem for output reshape']
    %s2 = smov 3
    %v3 = vld [vmem:[%s0] ss:$8 sm:%s2]
    %vm4 = vcmask 130048
    %5 = vst.msk [vmem:[#allocation0] ss:$8 sm:$0x3] %vm4, %v3
    %s6 = scalar_lea.vmem %s0, 7
    %v7 = vld [vmem:[%s6] sm:$0x1]
    %8 = vrot.lane.b32.xlu0 %v7, 112
    %v9 = vpop.permute.xlu0 %8
    %vm10 = vcmask 1048448
    %11 = vst.msk [vmem:[#allocation0] sm:$0x1] %vm10, %v9
    %s12 = scalar_lea.vmem %s0, 6
    %v13 = vld [vmem:[%s12] sm:$0x1]
    %14 = vrot.lane.b32.xlu0 %v13, 96
    %v15 = vpop.permute.xlu0 %14
    %vm16 = vcmask 917248
    %17 = vst.msk [vmem:[#allocation0] sm:$0x1] %vm16, %v15
    %s18 = scalar_lea.vmem %s0, 5
    %v19 = vld [vmem:[%s18] sm:$0x1]
    %20 = vrot.lane.b32.xlu0 %v19, 80
    %v21 = vpop.permute.xlu0 %20
    %vm22 = vcmask 786048
    %23 = vst.msk [vmem:[#allocation0] sm:$0x1] %vm22, %v21
    %s24 = scalar_lea.vmem %s0, 4
    %v25 = vld [vmem:[%s24] sm:$0x1]
    %26 = vrot.lane.b32.xlu0 %v25, 64
    %v27 = vpop.permute.xlu0 %26
    %vm28 = vcmask 654848
    %29 = vst.msk [vmem:[#allocation0] sm:$0x1] %vm28, %v27
    %s30 = scalar_lea.vmem %s0, 3
    %v31 = vld [vmem:[%s30] sm:$0x1]
    %32 = vrot.lane.b32.xlu0 %v31, 48
    %v33 = vpop.permute.xlu0 %32
    %vm34 = vcmask 523648
    %35 = vst.msk [vmem:[#allocation0] sm:$0x1] %vm34, %v33
    %s36 = scalar_lea.vmem %s0, 2
    %v37 = vld [vmem:[%s36] sm:$0x1]
    %38 = vrot.lane.b32.xlu0 %v37, 32
    %v39 = vpop.permute.xlu0 %38
    %vm40 = vcmask 392448
    %41 = vst.msk [vmem:[#allocation0] sm:$0x1] %vm40, %v39
    %s42 = scalar_lea.vmem %s0, 1
    %s43 = smov 3
    %v44 = vld [vmem:[%s42] ss:$8 sm:%s43]
    %45 = vrot.lane.b32.xlu0 %v44, 16
    %v46 = vpop.permute.xlu0 %45
    %vm47 = vcmask 261248
    %48 = vst.msk [vmem:[#allocation0] ss:$8 sm:$0x3] %vm47, %v46
    %s50 = sshllo.u32 0, 1
    %v52 = vld [vmem:[#allocation0] sm:%s50]
    %s53 = sshllo.u32 0, 1
    %54 = vst [vmem:[%s1] sm:%s53] %v52
    %s55 = scalar_lea.vmem [#allocation0], 8
    %v56 = vld [vmem:[%s55] sm:%s50]
    %s57 = sshllo.u32 0, 1
    %s58 = scalar_lea.vmem %s1, 1
    %59 = vst [vmem:[%s58] sm:%s57] %v56

// kernel: net_forward.1
$region0: #{net_forward.1}
  #allocation0 [shape = 'u32[]', space=smem, size = 0x4, offset = 0x4, fixed_abs, tag = 'smem constant byte address 0x4 - core index']
  #allocation1 [shape = 'u32[144,128]{1,0:T(1,128)}', space=vmem, size = 0x12000, scoped, tag = 'internal scratch']
  %s0 = inlined_call_operand.vmem [shape: f32[2,32,96], index: 0, kind: input, shape index: {}]
  %s1 = inlined_call_operand.vmem [shape: f32[5,96,168], index: 1, kind: input, shape index: {}]
  %s2 = inlined_call_operand.vmem [shape: f32[1,168], index: 2, kind: input, shape index: {}]
  %s3 = inlined_call_operand.vmem [shape: f32[5,162,160], index: 3, kind: input, shape index: {}]
  %s4 = inlined_call_operand.vmem [shape: f32[1,160], index: 4, kind: input, shape index: {}]
  %s5 = inlined_call_operand.vmem [shape: f32[5,144,120], index: 5, kind: input, shape index: {}]
  %s6 = inlined_call_operand.vmem [shape: f32[1,120], index: 6, kind: input, shape index: {}]
  %s7 = inlined_call_operand.vmem [shape: f32[120,84], index: 7, kind: input, shape index: {}]
  %s8 = inlined_call_operand.vmem [shape: f32[1,84], index: 8, kind: input, shape index: {}]
  %s9 = inlined_call_operand.vmem [shape: f32[84,128], index: 9, kind: input, shape index: {}]
  %s10 = inlined_call_operand.vmem [shape: f32[1,128], index: 10, kind: input, shape index: {}]
  %s11 = inlined_call_operand.hbm [shape: f32[2,1,128], index: 11, kind: output, shape index: {}]
  %s12 = sld [smem:[#allocation0]]
  $region77: #{net_forward.1} parent=0
    _
  %s14 = ssub.s32 1, %s12
  %s15 = scalar_select 0, %s14, %s12
  $region1: #{net_forward.1} parent=0
    #allocation2 [shape = 'u8[1024]{0}', space=vmem, size = 0x400, scoped, tag = 'output window, operand 0']
    #allocation3 [shape = 's32[2]{0}', space=sflag, size = 0x8, scoped, tag = 'scoped memory for net_forward.1']
    %16 = vsyncpa [#allocation3], 0
    %s17 = scalar_lea.sflag [#allocation3], 1
    %18 = vsyncpa %s17, 0
    loop: start=0, step=1, limit=4
    $region2: #{net_forward.1} parent=1 // loop_pre_header
      _
    $region3: #{net_forward.1} parent=1 // loop_header
      %s20 = sphi 0, %s24
      %p21 = scmp.ge.s32.totalorder %s20, 4
      %s30 = sphi 0, %s32
      %s33 = sphi 0, %s30
      %s34 = sphi 0, %s33
      %s50 = sphi 0, %s34
      %s54 = sphi 0, %s54
      %s56 = sphi 0, %s54
      %s57 = sphi 0, %s56
      %s71 = sphi 0, %s57
      %s75 = sphi 0, %s75
      %s77 = sphi 0, %s75
      %s78 = sphi 0, %s77
      %s92 = sphi 0, %s78
      %s96 = sphi 0, %s96
      %s98 = sphi 0, %s96
      %s99 = sphi 0, %s98
      %s113 = sphi 0, %s99
      %s117 = sphi 0, %s117
      %s119 = sphi 0, %s117
      %s120 = sphi 0, %s119
      %s134 = sphi 0, %s120
      %s138 = sphi 0, %s138
      %s140 = sphi 0, %s138
      %s141 = sphi 0, %s140
      %s155 = sphi 0, %s141
      %s159 = sphi 0, %s159
      %s161 = sphi 0, %s159
      %s162 = sphi 0, %s161
      %s176 = sphi 0, %s162
      %s180 = sphi 0, %s180
      %s182 = sphi 0, %s180
      %s183 = sphi 0, %s182
      %s197 = sphi 0, %s183
      %s201 = sphi 0, %s201
      %s203 = sphi 0, %s201
      %s204 = sphi 0, %s203
      %s218 = sphi 0, %s204
      %s222 = sphi 0, %s222
      %s224 = sphi 0, %s222
      %s225 = sphi 0, %s224
      %s239 = sphi 0, %s225
      %s243 = sphi 0, %s243
      %s245 = sphi 0, %s243
      %s246 = sphi 0, %s245
      %s260 = sphi 0, %s246
      %s266 = sphi 0, %s268
      %s269 = sphi 0, %s266
      %s270 = sphi 0, %s269
      %s286 = sphi 0, %s270
    $region4: #{net_forward.1} parent=1 // loop_header_branch
      %23 = sbr.rel (%p21) target = $region8
    $region5: #{net_forward.1} parent=1 // loop_body
      %s25 = ssub.s32 %s20, 1
      %s26 = ssub.s32 %s20, 2
      %s27 = sadd.s32 %s20, 1
      %s28 = ssub.s32 %s20, %s27
      %p29 = scmp.eq.s32.totalorder %s28, 0
      %s31 = sadd.s32 %s30, 1
      %s32 = scalar_select %p29, %s30, %s31
      %p35 = pneg %p29
      %p36 = scmp.eq.s32.totalorder %s20, 1
      %p37 = por %p35, %p36
      %p38 = scmp.ne.s32.totalorder %s30, %s33
      %p39 = scmp.eq.s32.totalorder %s20, 0
      %p40 = por %p38, %p39
      %p41 = scmp.ne.s32.totalorder %s30, %s33
      %p42 = scmp.eq.s32.totalorder %s25, 1
      %p43 = por %p41, %p42
      %p44 = scmp.ne.s32.totalorder %s33, %s34
      %p45 = scmp.eq.s32.totalorder %s25, 0
      %p46 = por %p44, %p45
      %p47 = scmp.ne.s32.totalorder %s33, %s34
      %p48 = scmp.eq.s32.totalorder %s26, 1
      %p49 = por %p47, %p48
      %p51 = scmp.ne.s32.totalorder %s34, %s50
      %p52 = scmp.eq.s32.totalorder %s26, 0
      %p53 = por %p51, %p52
      %s55 = sadd.s32 %s54, 1
      %p58 = scmp.eq.s32.totalorder %s20, 1
      %p59 = scmp.ne.s32.totalorder %s54, %s56
      %p60 = scmp.eq.s32.totalorder %s20, 0
      %p61 = por %p59, %p60
      %p62 = scmp.ne.s32.totalorder %s54, %s56
      %p63 = scmp.eq.s32.totalorder %s25, 1
      %p64 = por %p62, %p63
      %p65 = scmp.ne.s32.totalorder %s56, %s57
      %p66 = scmp.eq.s32.totalorder %s25, 0
      %p67 = por %p65, %p66
      %p68 = scmp.ne.s32.totalorder %s56, %s57
      %p69 = scmp.eq.s32.totalorder %s26, 1
      %p70 = por %p68, %p69
      %p72 = scmp.ne.s32.totalorder %s57, %s71
      %p73 = scmp.eq.s32.totalorder %s26, 0
      %p74 = por %p72, %p73
      %s76 = sadd.s32 %s75, 1
      %p79 = scmp.eq.s32.totalorder %s20, 1
      %p80 = scmp.ne.s32.totalorder %s75, %s77
      %p81 = scmp.eq.s32.totalorder %s20, 0
      %p82 = por %p80, %p81
      %p83 = scmp.ne.s32.totalorder %s75, %s77
      %p84 = scmp.eq.s32.totalorder %s25, 1
      %p85 = por %p83, %p84
      %p86 = scmp.ne.s32.totalorder %s77, %s78
      %p87 = scmp.eq.s32.totalorder %s25, 0
      %p88 = por %p86, %p87
      %p89 = scmp.ne.s32.totalorder %s77, %s78
      %p90 = scmp.eq.s32.totalorder %s26, 1
      %p91 = por %p89, %p90
      %p93 = scmp.ne.s32.totalorder %s78, %s92
      %p94 = scmp.eq.s32.totalorder %s26, 0
      %p95 = por %p93, %p94
      %s97 = sadd.s32 %s96, 1
      %p100 = scmp.eq.s32.totalorder %s20, 1
      %p101 = scmp.ne.s32.totalorder %s96, %s98
      %p102 = scmp.eq.s32.totalorder %s20, 0
      %p103 = por %p101, %p102
      %p104 = scmp.ne.s32.totalorder %s96, %s98
      %p105 = scmp.eq.s32.totalorder %s25, 1
      %p106 = por %p104, %p105
      %p107 = scmp.ne.s32.totalorder %s98, %s99
      %p108 = scmp.eq.s32.totalorder %s25, 0
      %p109 = por %p107, %p108
      %p110 = scmp.ne.s32.totalorder %s98, %s99
      %p111 = scmp.eq.s32.totalorder %s26, 1
      %p112 = por %p110, %p111
      %p114 = scmp.ne.s32.totalorder %s99, %s113
      %p115 = scmp.eq.s32.totalorder %s26, 0
      %p116 = por %p114, %p115
      %s118 = sadd.s32 %s117, 1
      %p121 = scmp.eq.s32.totalorder %s20, 1
      %p122 = scmp.ne.s32.totalorder %s117, %s119
      %p123 = scmp.eq.s32.totalorder %s20, 0
      %p124 = por %p122, %p123
      %p125 = scmp.ne.s32.totalorder %s117, %s119
      %p126 = scmp.eq.s32.totalorder %s25, 1
      %p127 = por %p125, %p126
      %p128 = scmp.ne.s32.totalorder %s119, %s120
      %p129 = scmp.eq.s32.totalorder %s25, 0
      %p130 = por %p128, %p129
      %p131 = scmp.ne.s32.totalorder %s119, %s120
      %p132 = scmp.eq.s32.totalorder %s26, 1
      %p133 = por %p131, %p132
      %p135 = scmp.ne.s32.totalorder %s120, %s134
      %p136 = scmp.eq.s32.totalorder %s26, 0
      %p137 = por %p135, %p136
      %s139 = sadd.s32 %s138, 1
      %p142 = scmp.eq.s32.totalorder %s20, 1
      %p143 = scmp.ne.s32.totalorder %s138, %s140
      %p144 = scmp.eq.s32.totalorder %s20, 0
      %p145 = por %p143, %p144
      %p146 = scmp.ne.s32.totalorder %s138, %s140
      %p147 = scmp.eq.s32.totalorder %s25, 1
      %p148 = por %p146, %p147
      %p149 = scmp.ne.s32.totalorder %s140, %s141
      %p150 = scmp.eq.s32.totalorder %s25, 0
      %p151 = por %p149, %p150
      %p152 = scmp.ne.s32.totalorder %s140, %s141
      %p153 = scmp.eq.s32.totalorder %s26, 1
      %p154 = por %p152, %p153
      %p156 = scmp.ne.s32.totalorder %s141, %s155
      %p157 = scmp.eq.s32.totalorder %s26, 0
      %p158 = por %p156, %p157
      %s160 = sadd.s32 %s159, 1
      %p163 = scmp.eq.s32.totalorder %s20, 1
      %p164 = scmp.ne.s32.totalorder %s159, %s161
      %p165 = scmp.eq.s32.totalorder %s20, 0
      %p166 = por %p164, %p165
      %p167 = scmp.ne.s32.totalorder %s159, %s161
      %p168 = scmp.eq.s32.totalorder %s25, 1
      %p169 = por %p167, %p168
      %p170 = scmp.ne.s32.totalorder %s161, %s162
      %p171 = scmp.eq.s32.totalorder %s25, 0
      %p172 = por %p170, %p171
      %p173 = scmp.ne.s32.totalorder %s161, %s162
      %p174 = scmp.eq.s32.totalorder %s26, 1
      %p175 = por %p173, %p174
      %p177 = scmp.ne.s32.totalorder %s162, %s176
      %p178 = scmp.eq.s32.totalorder %s26, 0
      %p179 = por %p177, %p178
      %s181 = sadd.s32 %s180, 1
      %p184 = scmp.eq.s32.totalorder %s20, 1
      %p185 = scmp.ne.s32.totalorder %s180, %s182
      %p186 = scmp.eq.s32.totalorder %s20, 0
      %p187 = por %p185, %p186
      %p188 = scmp.ne.s32.totalorder %s180, %s182
      %p189 = scmp.eq.s32.totalorder %s25, 1
      %p190 = por %p188, %p189
      %p191 = scmp.ne.s32.totalorder %s182, %s183
      %p192 = scmp.eq.s32.totalorder %s25, 0
      %p193 = por %p191, %p192
      %p194 = scmp.ne.s32.totalorder %s182, %s183
      %p195 = scmp.eq.s32.totalorder %s26, 1
      %p196 = por %p194, %p195
      %p198 = scmp.ne.s32.totalorder %s183, %s197
      %p199 = scmp.eq.s32.totalorder %s26, 0
      %p200 = por %p198, %p199
      %s202 = sadd.s32 %s201, 1
      %p205 = scmp.eq.s32.totalorder %s20, 1
      %p206 = scmp.ne.s32.totalorder %s201, %s203
      %p207 = scmp.eq.s32.totalorder %s20, 0
      %p208 = por %p206, %p207
      %p209 = scmp.ne.s32.totalorder %s201, %s203
      %p210 = scmp.eq.s32.totalorder %s25, 1
      %p211 = por %p209, %p210
      %p212 = scmp.ne.s32.totalorder %s203, %s204
      %p213 = scmp.eq.s32.totalorder %s25, 0
      %p214 = por %p212, %p213
      %p215 = scmp.ne.s32.totalorder %s203, %s204
      %p216 = scmp.eq.s32.totalorder %s26, 1
      %p217 = por %p215, %p216
      %p219 = scmp.ne.s32.totalorder %s204, %s218
      %p220 = scmp.eq.s32.totalorder %s26, 0
      %p221 = por %p219, %p220
      %s223 = sadd.s32 %s222, 1
      %p226 = scmp.eq.s32.totalorder %s20, 1
      %p227 = scmp.ne.s32.totalorder %s222, %s224
      %p228 = scmp.eq.s32.totalorder %s20, 0
      %p229 = por %p227, %p228
      %p230 = scmp.ne.s32.totalorder %s222, %s224
      %p231 = scmp.eq.s32.totalorder %s25, 1
      %p232 = por %p230, %p231
      %p233 = scmp.ne.s32.totalorder %s224, %s225
      %p234 = scmp.eq.s32.totalorder %s25, 0
      %p235 = por %p233, %p234
      %p236 = scmp.ne.s32.totalorder %s224, %s225
      %p237 = scmp.eq.s32.totalorder %s26, 1
      %p238 = por %p236, %p237
      %p240 = scmp.ne.s32.totalorder %s225, %s239
      %p241 = scmp.eq.s32.totalorder %s26, 0
      %p242 = por %p240, %p241
      %s244 = sadd.s32 %s243, 1
      %p247 = scmp.eq.s32.totalorder %s20, 1
      %p248 = scmp.ne.s32.totalorder %s243, %s245
      %p249 = scmp.eq.s32.totalorder %s20, 0
      %p250 = por %p248, %p249
      %p251 = scmp.ne.s32.totalorder %s243, %s245
      %p252 = scmp.eq.s32.totalorder %s25, 1
      %p253 = por %p251, %p252
      %p254 = scmp.ne.s32.totalorder %s245, %s246
      %p255 = scmp.eq.s32.totalorder %s25, 0
      %p256 = por %p254, %p255
      %p257 = scmp.ne.s32.totalorder %s245, %s246
      %p258 = scmp.eq.s32.totalorder %s26, 1
      %p259 = por %p257, %p258
      %p261 = scmp.ne.s32.totalorder %s246, %s260
      %p262 = scmp.eq.s32.totalorder %s26, 0
      %p263 = por %p261, %p262
      %s264 = ssub.s32 %s20, %s27
      %p265 = scmp.eq.s32.totalorder %s264, 0
      %s267 = sadd.s32 %s266, 1
      %s268 = scalar_select %p265, %s266, %s267
      %p271 = pneg %p265
      %p272 = scmp.eq.s32.totalorder %s20, 1
      %p273 = por %p271, %p272
      %p274 = scmp.ne.s32.totalorder %s266, %s269
      %p275 = scmp.eq.s32.totalorder %s20, 0
      %p276 = por %p274, %p275
      %p277 = scmp.ne.s32.totalorder %s266, %s269
      %p278 = scmp.eq.s32.totalorder %s25, 1
      %p279 = por %p277, %p278
      %p280 = scmp.ne.s32.totalorder %s269, %s270
      %p281 = scmp.eq.s32.totalorder %s25, 0
      %p282 = por %p280, %p281
      %p283 = scmp.ne.s32.totalorder %s269, %s270
      %p284 = scmp.eq.s32.totalorder %s26, 1
      %p285 = por %p283, %p284
      %p287 = scmp.ne.s32.totalorder %s270, %s286
      %p288 = scmp.eq.s32.totalorder %s26, 0
      %p289 = por %p287, %p288
      %p290 = scmp.le.s32.totalorder 1, %s20
      %p291 = scmp.lt.s32.totalorder %s20, 3
      %p292 = pnand %p290, %p291
      %p293 = pneg %p292
      // Predicated region
      $region9: #{net_forward.1} parent=5 // pred_check
        _
      $region10: #{net_forward.1} parent=5 // pred_check_branch
        %295 = sbr.rel (%p292) target = $region12
      $region11: #{net_forward.1} parent=5 // pred_region
        %s296 = ssub.s32 %s20, 1
        // Predicated region
        $region13: #{net_forward.1} parent=11 // pred_check
          %p297 = pneg %p67
        $region14: #{net_forward.1} parent=11 // pred_check_branch
          %299 = sbr.rel (%p297) target = $region16
        $region15: #{net_forward.1} parent=11 // pred_region
          _
        $region16: #{net_forward.1} parent=11 // pred_fallthru
          _
        // Predicated region
        $region17: #{net_forward.1} parent=11 // pred_check
          %p300 = pneg %p88
        $region18: #{net_forward.1} parent=11 // pred_check_branch
          %302 = sbr.rel (%p300) target = $region20
        $region19: #{net_forward.1} parent=11 // pred_region
          _
        $region20: #{net_forward.1} parent=11 // pred_fallthru
          _
        // Predicated region
        $region21: #{net_forward.1} parent=11 // pred_check
          %p303 = pneg %p109
        $region22: #{net_forward.1} parent=11 // pred_check_branch
          %305 = sbr.rel (%p303) target = $region24
        $region23: #{net_forward.1} parent=11 // pred_region
          _
        $region24: #{net_forward.1} parent=11 // pred_fallthru
          _
        // Predicated region
        $region25: #{net_forward.1} parent=11 // pred_check
          %p306 = pneg %p130
        $region26: #{net_forward.1} parent=11 // pred_check_branch
          %308 = sbr.rel (%p306) target = $region28
        $region27: #{net_forward.1} parent=11 // pred_region
          _
        $region28: #{net_forward.1} parent=11 // pred_fallthru
          _
        // Predicated region
        $region29: #{net_forward.1} parent=11 // pred_check
          %p309 = pneg %p151
        $region30: #{net_forward.1} parent=11 // pred_check_branch
          %311 = sbr.rel (%p309) target = $region32
        $region31: #{net_forward.1} parent=11 // pred_region
          _
        $region32: #{net_forward.1} parent=11 // pred_fallthru
          _
        // Predicated region
        $region33: #{net_forward.1} parent=11 // pred_check
          %p312 = pneg %p172
        $region34: #{net_forward.1} parent=11 // pred_check_branch
          %314 = sbr.rel (%p312) target = $region36
        $region35: #{net_forward.1} parent=11 // pred_region
          _
        $region36: #{net_forward.1} parent=11 // pred_fallthru
          _
        // Predicated region
        $region37: #{net_forward.1} parent=11 // pred_check
          %p315 = pneg %p193
        $region38: #{net_forward.1} parent=11 // pred_check_branch
          %317 = sbr.rel (%p315) target = $region40
        $region39: #{net_forward.1} parent=11 // pred_region
          _
        $region40: #{net_forward.1} parent=11 // pred_fallthru
          _
        // Predicated region
        $region41: #{net_forward.1} parent=11 // pred_check
          %p318 = pneg %p214
        $region42: #{net_forward.1} parent=11 // pred_check_branch
          %320 = sbr.rel (%p318) target = $region44
        $region43: #{net_forward.1} parent=11 // pred_region
          _
        $region44: #{net_forward.1} parent=11 // pred_fallthru
          _
        // Predicated region
        $region45: #{net_forward.1} parent=11 // pred_check
          %p321 = pneg %p235
        $region46: #{net_forward.1} parent=11 // pred_check_branch
          %323 = sbr.rel (%p321) target = $region48
        $region47: #{net_forward.1} parent=11 // pred_region
          _
        $region48: #{net_forward.1} parent=11 // pred_fallthru
          _
        // Predicated region
        $region49: #{net_forward.1} parent=11 // pred_check
          %p324 = pneg %p256
        $region50: #{net_forward.1} parent=11 // pred_check_branch
          %326 = sbr.rel (%p324) target = $region52
        $region51: #{net_forward.1} parent=11 // pred_region
          _
        $region52: #{net_forward.1} parent=11 // pred_fallthru
          _
      $region12: #{net_forward.1} parent=5 // pred_fallthru
        _
      %p327 = scmp.lt.s32.totalorder %s20, 2
      // Predicated region
      $region53: #{net_forward.1} parent=5 // pred_check
        %p328 = pneg %p327
      $region54: #{net_forward.1} parent=5 // pred_check_branch
        %330 = sbr.rel (%p328) target = $region56
      $region55: #{net_forward.1} parent=5 // pred_region
        // Predicated region
        $region57: #{net_forward.1} parent=55 // pred_check
          %p331 = pneg %p40
        $region58: #{net_forward.1} parent=55 // pred_check_branch
          %333 = sbr.rel (%p331) target = $region60
        $region59: #{net_forward.1} parent=55 // pred_region
          %p334 = scmp.lt.s32.totalorder %s20, 1
          %s335 = scalar_select %p334, %s20, 1
          %s336 = smul.addr %s335, 4
          %s337 = smul.addr %s336, 8
          %s338 = scalar_lea.vmem %s0, %s337
        $region60: #{net_forward.1} parent=55 // pred_fallthru
          _
      $region56: #{net_forward.1} parent=5 // pred_fallthru
        _
      %p339 = scmp.le.s32.totalorder 1, %s20
      %p340 = scmp.lt.s32.totalorder %s20, 3
      %p341 = pnand %p339, %p340
      %p342 = pneg %p341
      // Predicated region
      $region61: #{net_forward.1} parent=5 // pred_check
        _
      $region62: #{net_forward.1} parent=5 // pred_check_branch
        %344 = sbr.rel (%p341) target = $region64
      $region63: #{net_forward.1} parent=5 // pred_region
        %s345 = ssub.s32 %s20, 1
        %p346 = scmp.lt.s32.totalorder %s25, 1
        %s347 = scalar_select %p346, %s25, 1
        %s348 = smul.addr %s347, 4
        %s349 = smul.addr %s348, 8
        %s350 = scalar_lea.vmem %s0, %s349
        %p351 = pneg %p46
        %p352 = pneg %p43
        %p353 = pneg %p67
        %p354 = pneg %p64
        %p355 = pneg %p88
        %p356 = pneg %p85
        %p357 = pneg %p109
        %p358 = pneg %p106
        %p359 = pneg %p130
        %p360 = pneg %p127
        %p361 = pneg %p151
        %p362 = pneg %p148
        %p363 = pneg %p172
        %p364 = pneg %p169
        %p365 = pneg %p193
        %p366 = pneg %p190
        %p367 = pneg %p214
        %p368 = pneg %p211
        %p369 = pneg %p235
        %p370 = pneg %p232
        %p371 = pneg %p256
        %p372 = pneg %p253
        %p373 = pneg %p282
        %p374 = pneg %p279
        %s375 = sand.u32 %s269, 1
        %s376 = scalar_lea.sflag [#allocation3], %s375
        %s377 = sand.u32 %s269, 1
        %s378 = scalar_lea.vmem [#allocation2], %s377
        %p379 = scmp.lt.s32.totalorder %s25, 1
        %s380 = scalar_select %p379, %s25, 1
        %s381 = smul.addr %s380, 4
        %s382 = smul.addr %s381, 8
        %s383 = scalar_lea.vmem %s0, %s382
        %v384 = vld [vmem:[%s383] sm:$0xff]
        %v385 = vld [vmem:[%s383 + $0x8] sm:$0xff]
        %v386 = vld [vmem:[%s383 + $0x10] sm:$0xff]
        %v387 = vld [vmem:[%s383 + $0x18] sm:$0xff]
        %v388 = vld [vmem:[%s1] sm:$0xff]
        %v389 = vld [vmem:[%s1 + $0x8] sm:$0xff]
        %v390 = vld [vmem:[%s1 + $0x10] sm:$0xff]
        %v391 = vld [vmem:[%s1 + $0x18] sm:$0xff]
        %v392 = vld [vmem:[%s1 + $0x20] sm:$0xff]
        %v393 = vld [vmem:[%s1 + $0x28] sm:$0xff]
        %v394 = vld [vmem:[%s1 + $0x30] sm:$0xff]
        %v395 = vld [vmem:[%s1 + $0x38] sm:$0xff]
        %v396 = vld [vmem:[%s1 + $0x40] sm:$0xff]
        %v397 = vld [vmem:[%s1 + $0x48] sm:$0xff]
        %v398 = vld [vmem:[%s1 + $0x50] sm:$0xff]
        %v399 = vld [vmem:[%s1 + $0x58] sm:$0xff]
        %v400 = vld [vmem:[%s1 + $0x60] sm:$0xff]
        %v401 = vld [vmem:[%s1 + $0x68] sm:$0xff]
        %v402 = vld [vmem:[%s1 + $0x70] sm:$0xff]
        %v403 = vld [vmem:[%s1 + $0x78] sm:$0xff]
        %v404 = vld [vmem:[%s1 + $0x80] sm:$0xff]
        %v405 = vld [vmem:[%s1 + $0x88] sm:$0xff]
        %v406 = vld [vmem:[%s1 + $0x90] sm:$0xff]
        %v407 = vld [vmem:[%s1 + $0x98] sm:$0xff]
        %v408 = vld [vmem:[%s1 + $0xa0] sm:$0xff]
        %v409 = vld [vmem:[%s1 + $0xa8] sm:$0xff]
        %v410 = vld [vmem:[%s1 + $0xb0] sm:$0xff]
        %v411 = vld [vmem:[%s1 + $0xb8] sm:$0xff]
        %s412 = scalar_lea.vmem %s1, 192
        %v413 = vld [vmem:[%s412] sm:$0xff]
        %v414 = vld [vmem:[%s412 + $0x8] sm:$0xff]
        %v415 = vld [vmem:[%s412 + $0x10] sm:$0xff]
        %v416 = vld [vmem:[%s412 + $0x18] sm:$0xff]
        %v417 = vld [vmem:[%s412 + $0x20] sm:$0xff]
        %v418 = vld [vmem:[%s412 + $0x28] sm:$0xff]
        %v419 = vld [vmem:[%s412 + $0x30] sm:$0xff]
        %v420 = vld [vmem:[%s412 + $0x38] sm:$0xff]
        %v421 = vld [vmem:[%s412 + $0x40] sm:$0xff]
        %v422 = vld [vmem:[%s412 + $0x48] sm:$0xff]
        %v423 = vld [vmem:[%s412 + $0x50] sm:$0xff]
        %v424 = vld [vmem:[%s412 + $0x58] sm:$0xff]
        %v425 = vld [vmem:[%s412 + $0x60] sm:$0xff]
        %v426 = vld [vmem:[%s412 + $0x68] sm:$0xff]
        %v427 = vld [vmem:[%s412 + $0x70] sm:$0xff]
        %v428 = vld [vmem:[%s412 + $0x78] sm:$0xff]
        %v429 = vld [vmem:[%s412 + $0x80] sm:$0xff]
        %v430 = vld [vmem:[%s412 + $0x88] sm:$0xff]
        %v431 = vld [vmem:[%s412 + $0x90] sm:$0xff]
        %v432 = vld [vmem:[%s412 + $0x98] sm:$0xff]
        %v433 = vld [vmem:[%s412 + $0xa0] sm:$0xff]
        %v434 = vld [vmem:[%s412 + $0xa8] sm:$0xff]
        %v435 = vld [vmem:[%s412 + $0xb0] sm:$0xff]
        %v436 = vld [vmem:[%s412 + $0xb8] sm:$0xff]
        %vm441 = vcmask 1046528
        %v442 = vrot.slane %v384, 1
        %v443 = vrot.slane %v385, 1
        %v444 = vsel %vm441, %v442, %v443
        %v445 = vrot.slane %v386, 1
        %v446 = vsel %vm441, %v443, %v445
        %v447 = vrot.slane %v387, 1
        %v448 = vsel %vm441, %v445, %v447
        %vm449 = vcmask 785408
        %v450 = vsel %vm449, %v444, 0
        %v452 = vsel %vm449, %v446, 0
        %v454 = vsel %vm449, %v448, 0
        %v456 = vsel %vm449, %v447, 0
        %458 = vmatprep.subr.mxu0 %v414
        %459 = vmatpush1.msra.mxu0 %v413
        %460 = vmatprep.subr.mxu0 %v416
        %461 = vmatpush1.msra.mxu0 %v415
        %462 = vmatprep.subr.mxu0 %v418
        %463 = vmatpush1.msra.mxu0 %v417
        %464 = vmatprep.subr.mxu0 %v420
        %465 = vmatpush1.msra.mxu0 %v419
        %466 = vmatprep.subr.mxu0 %v422
        %467 = vmatpush1.msra.mxu0 %v421
        %468 = vmatprep.subr.mxu0 %v424
        %469 = vmatpush1.msra.mxu0 %v423
        %470 = vmatprep.subr.mxu0 %v426
        %471 = vmatpush1.msra.mxu0 %v425
        %472 = vmatprep.subr.mxu0 %v428
        %473 = vmatpush1.msra.mxu0 %v427
        %474 = vmatprep.subr.mxu0 %v430
        %475 = vmatpush1.msra.mxu0 %v429
        %476 = vmatprep.subr.mxu0 %v432
        %477 = vmatpush1.msra.mxu0 %v431
        %478 = vmatprep.subr.mxu0 %v434
        %479 = vmatpush1.msra.mxu0 %v433
        %480 = vmatprep.subr.mxu0 %v436
        %481 = vmatpush1.msra.mxu0 %v435
        %482 = vmatprep.subr.mxu0 0.0
        %483 = vmatpush1.msra.mxu0 0.0
        %484 = vmatprep.subr.mxu0 0.0
        %485 = vmatpush1.msra.mxu0 0.0
        %486 = vmatprep.subr.mxu0 0.0
        %487 = vmatpush1.msra.mxu0 0.0
        %488 = vmatprep.subr.mxu0 0.0
        %489 = vmatpush1.msra.mxu0 0.0
        %490 = vmatprep.subr.mxu0 0.0
        %491 = vmatpush1.msra.mxu0 0.0
        %492 = vmatprep.subr.mxu0 0.0
        %493 = vmatpush1.msra.mxu0 0.0
        %494 = vmatprep.subr.mxu0 0.0
        %495 = vmatpush1.msra.mxu0 0.0
        %496 = vmatprep.subr.mxu0 0.0
        %497 = vmatpush1.msra.mxu0 0.0
        %498 = vmatprep.subr.mxu0 0.0
        %499 = vmatpush1.msra.mxu0 0.0
        %500 = vmatprep.subr.mxu0 0.0
        %501 = vmatpush1.msra.mxu0 0.0
        %502 = vmatprep.subr.mxu0 0.0
        %503 = vmatpush1.msra.mxu0 0.0
        %504 = vmatprep.subr.mxu0 0.0
        %505 = vmatpush1.msra.mxu0 0.0
        %506 = vmatprep.subr.mxu0 0.0
        %507 = vmatpush1.msra.mxu0 0.0
        %508 = vmatprep.subr.mxu0 0.0
        %509 = vmatpush1.msra.mxu0 0.0
        %510 = vmatprep.subr.mxu0 0.0
        %511 = vmatpush1.msra.mxu0 0.0
        %512 = vmatprep.subr.mxu0 0.0
        %513 = vmatpush1.msra.mxu0 0.0
        %514 = vmatprep.subr.mxu0 0.0
        %515 = vmatpush1.msra.mxu0 0.0
        %516 = vmatprep.subr.mxu0 0.0
        %517 = vmatpush1.msra.mxu0 0.0
        %518 = vmatprep.subr.mxu0 0.0
        %519 = vmatpush1.msra.mxu0 0.0
        %520 = vmatprep.subr.mxu0 0.0
        %521 = vmatpush1.msra.mxu0 0.0
        %522 = vmatprep.mubr.f32.mxu0 0.0
        %523 = vmatmul.mubr.f32.gmra.mrb[0].mxu0 %v450
        %v524 = vpop.f32.mrb[0].mxu0
        %v525 = vadd.f32 0.0, %v524
        %v526 = vpop.f32.mrb[0].mxu0
        %v527 = vadd.f32 0.0, %v526
        %528 = vmatprep.mubr.f32.mxu0 0.0
        %529 = vmatmul.mubr.f32.gmra.mrb[0].mxu0 %v452
        %v530 = vpop.f32.mrb[0].mxu0
        %v531 = vadd.f32 0.0, %v530
        %v532 = vpop.f32.mrb[0].mxu0
        %v533 = vadd.f32 0.0, %v532
        %534 = vmatprep.mubr.f32.mxu0 0.0
        %535 = vmatmul.mubr.f32.gmra.mrb[0].mxu0 %v454
        %v536 = vpop.f32.mrb[0].mxu0
        %v537 = vadd.f32 0.0, %v536
        %v538 = vpop.f32.mrb[0].mxu0
        %v539 = vadd.f32 0.0, %v538
        %540 = vmatprep.mubr.f32.mxu0 0.0
        %541 = vmatmul.mubr.f32.gmra.mrb[0].mxu0 %v456
        %v542 = vpop.f32.mrb[0].mxu0
        %v543 = vadd.f32 0.0, %v542
        %v544 = vpop.f32.mrb[0].mxu0
        %v545 = vadd.f32 0.0, %v544
        %546 = vdwg.mxu0
        %v547 = vsel %vm449, %v384, 0
        %v549 = vsel %vm449, %v385, 0
        %v551 = vsel %vm449, %v386, 0
        %v553 = vsel %vm449, %v387, 0
        %555 = vmatprep.subr.mxu0 %v389
        %556 = vmatpush1.msra.mxu0 %v388
        %557 = vmatprep.subr.mxu0 %v391
        %558 = vmatpush1.msra.mxu0 %v390
        %559 = vmatprep.subr.mxu0 %v393
        %560 = vmatpush1.msra.mxu0 %v392
        %561 = vmatprep.subr.mxu0 %v395
        %562 = vmatpush1.msra.mxu0 %v394
        %563 = vmatprep.subr.mxu0 %v397
        %564 = vmatpush1.msra.mxu0 %v396
        %565 = vmatprep.subr.mxu0 %v399
        %566 = vmatpush1.msra.mxu0 %v398
        %567 = vmatprep.subr.mxu0 %v401
        %568 = vmatpush1.msra.mxu0 %v400
        %569 = vmatprep.subr.mxu0 %v403
        %570 = vmatpush1.msra.mxu0 %v402
        %571 = vmatprep.subr.mxu0 %v405
        %572 = vmatpush1.msra.mxu0 %v404
        %573 = vmatprep.subr.mxu0 %v407
        %574 = vmatpush1.msra.mxu0 %v406
        %575 = vmatprep.subr.mxu0 %v409
        %576 = vmatpush1.msra.mxu0 %v408
        %577 = vmatprep.subr.mxu0 %v411
        %578 = vmatpush1.msra.mxu0 %v410
        %579 = vmatprep.subr.mxu0 0.0
        %580 = vmatpush1.msra.mxu0 0.0
        %581 = vmatprep.subr.mxu0 0.0
        %582 = vmatpush1.msra.mxu0 0.0
        %583 = vmatprep.subr.mxu0 0.0
        %584 = vmatpush1.msra.mxu0 0.0
        %585 = vmatprep.subr.mxu0 0.0
        %586 = vmatpush1.msra.mxu0 0.0
        %587 = vmatprep.subr.mxu0 0.0
        %588 = vmatpush1.msra.mxu0 0.0
        %589 = vmatprep.subr.mxu0 0.0
        %590 = vmatpush1.msra.mxu0 0.0
        %591 = vmatprep.subr.mxu0 0.0
        %592 = vmatpush1.msra.mxu0 0.0
        %593 = vmatprep.subr.mxu0 0.0
        %594 = vmatpush1.msra.mxu0 0.0
        %595 = vmatprep.subr.mxu0 0.0
        %596 = vmatpush1.msra.mxu0 0.0
        %597 = vmatprep.subr.mxu0 0.0
        %598 = vmatpush1.msra.mxu0 0.0
        %599 = vmatprep.subr.mxu0 0.0
        %600 = vmatpush1.msra.mxu0 0.0
        %601 = vmatprep.subr.mxu0 0.0
        %602 = vmatpush1.msra.mxu0 0.0
        %603 = vmatprep.subr.mxu0 0.0
        %604 = vmatpush1.msra.mxu0 0.0
        %605 = vmatprep.subr.mxu0 0.0
        %606 = vmatpush1.msra.mxu0 0.0
        %607 = vmatprep.subr.mxu0 0.0
        %608 = vmatpush1.msra.mxu0 0.0
        %609 = vmatprep.subr.mxu0 0.0
        %610 = vmatpush1.msra.mxu0 0.0
        %611 = vmatprep.subr.mxu0 0.0
        %612 = vmatpush1.msra.mxu0 0.0
        %613 = vmatprep.subr.mxu0 0.0
        %614 = vmatpush1.msra.mxu0 0.0
        %615 = vmatprep.subr.mxu0 0.0
        %616 = vmatpush1.msra.mxu0 0.0
        %617 = vmatprep.subr.mxu0 0.0
        %618 = vmatpush1.msra.mxu0 0.0
        %619 = vmatprep.mubr.f32.mxu0 0.0
        %620 = vmatmul.mubr.f32.gmra.mrb[0].mxu0 %v547
        %v621 = vpop.f32.mrb[0].mxu0
        %v622 = vadd.f32 %v525, %v621
        %v623 = vpop.f32.mrb[0].mxu0
        %v624 = vadd.f32 %v527, %v623
        %625 = vmatprep.mubr.f32.mxu0 0.0
        %626 = vmatmul.mubr.f32.gmra.mrb[0].mxu0 %v549
        %v627 = vpop.f32.mrb[0].mxu0
        %v628 = vadd.f32 %v531, %v627
        %v629 = vpop.f32.mrb[0].mxu0
        %v630 = vadd.f32 %v533, %v629
        %631 = vmatprep.mubr.f32.mxu0 0.0
        %632 = vmatmul.mubr.f32.gmra.mrb[0].mxu0 %v551
        %v633 = vpop.f32.mrb[0].mxu0
        %v634 = vadd.f32 %v537, %v633
        %v635 = vpop.f32.mrb[0].mxu0
        %v636 = vadd.f32 %v539, %v635
        %637 = vmatprep.mubr.f32.mxu0 0.0
        %638 = vmatmul.mubr.f32.gmra.mrb[0].mxu0 %v553
        %v639 = vpop.f32.mrb[0].mxu0
        %v640 = vadd.f32 %v543, %v639
        %v641 = vpop.f32.mrb[0].mxu0
        %v642 = vadd.f32 %v545, %v641
        %643 = vdwg.mxu0
        %s644 = scalar_lea.vmem %s1, 384
        %v645 = vld [vmem:[%s644] sm:$0xff]
        %v646 = vld [vmem:[%s644 + $0x8] sm:$0xff]
        %v647 = vld [vmem:[%s644 + $0x10] sm:$0xff]
        %v648 = vld [vmem:[%s644 + $0x18] sm:$0xff]
        %v649 = vld [vmem:[%s644 + $0x20] sm:$0xff]
        %v650 = vld [vmem:[%s644 + $0x28] sm:$0xff]
        %v651 = vld [vmem:[%s644 + $0x30] sm:$0xff]
        %v652 = vld [vmem:[%s644 + $0x38] sm:$0xff]
        %v653 = vld [vmem:[%s644 + $0x40] sm:$0xff]
        %v654 = vld [vmem:[%s644 + $0x48] sm:$0xff]
        %v655 = vld [vmem:[%s644 + $0x50] sm:$0xff]
        %v656 = vld [vmem:[%s644 + $0x58] sm:$0xff]
        %v657 = vld [vmem:[%s644 + $0x60] sm:$0xff]
        %v658 = vld [vmem:[%s644 + $0x68] sm:$0xff]
        %v659 = vld [vmem:[%s644 + $0x70] sm:$0xff]
        %v660 = vld [vmem:[%s644 + $0x78] sm:$0xff]
        %v661 = vld [vmem:[%s644 + $0x80] sm:$0xff]
        %v662 = vld [vmem:[%s644 + $0x88] sm:$0xff]
        %v663 = vld [vmem:[%s644 + $0x90] sm:$0xff]
        %v664 = vld [vmem:[%s644 + $0x98] sm:$0xff]
        %v665 = vld [vmem:[%s644 + $0xa0] sm:$0xff]
        %v666 = vld [vmem:[%s644 + $0xa8] sm:$0xff]
        %v667 = vld [vmem:[%s644 + $0xb0] sm:$0xff]
        %v668 = vld [vmem:[%s644 + $0xb8] sm:$0xff]
        %vm669 = vcmask 1045504
        %v670 = vrot.slane %v384, 2
        %v671 = vrot.slane %v385, 2
        %v672 = vsel %vm669, %v670, %v671
        %v673 = vrot.slane %v386, 2
        %v674 = vsel %vm669, %v671, %v673
        %v675 = vrot.slane %v387, 2
        %v676 = vsel %vm669, %v673, %v675
        %v677 = vsel %vm449, %v672, 0
        %v679 = vsel %vm449, %v674, 0
        %v681 = vsel %vm449, %v676, 0
        %v683 = vsel %vm449, %v675, 0
        %685 = vmatprep.subr.mxu0 %v646
        %686 = vmatpush1.msra.mxu0 %v645
        %687 = vmatprep.subr.mxu0 %v648
        %688 = vmatpush1.msra.mxu0 %v647
        %689 = vmatprep.subr.mxu0 %v650
        %690 = vmatpush1.msra.mxu0 %v649
        %691 = vmatprep.subr.mxu0 %v652
        %692 = vmatpush1.msra.mxu0 %v651
        %693 = vmatprep.subr.mxu0 %v654
        %694 = vmatpush1.msra.mxu0 %v653
        %695 = vmatprep.subr.mxu0 %v656
        %696 = vmatpush1.msra.mxu0 %v655
        %697 = vmatprep.subr.mxu0 %v658
        %698 = vmatpush1.msra.mxu0 %v657
        %699 = vmatprep.subr.mxu0 %v660
        %700 = vmatpush1.msra.mxu0 %v659
        %701 = vmatprep.subr.mxu0 %v662
        %702 = vmatpush1.msra.mxu0 %v661
        %703 = vmatprep.subr.mxu0 %v664
        %704 = vmatpush1.msra.mxu0 %v663
        %705 = vmatprep.subr.mxu0 %v666
        %706 = vmatpush1.msra.mxu0 %v665
        %707 = vmatprep.subr.mxu0 %v668
        %708 = vmatpush1.msra.mxu0 %v667
        %709 = vmatprep.subr.mxu0 0.0
        %710 = vmatpush1.msra.mxu0 0.0
        %711 = vmatprep.subr.mxu0 0.0
        %712 = vmatpush1.msra.mxu0 0.0
        %713 = vmatprep.subr.mxu0 0.0
        %714 = vmatpush1.msra.mxu0 0.0
        %715 = vmatprep.subr.mxu0 0.0
        %716 = vmatpush1.msra.mxu0 0.0
        %717 = vmatprep.subr.mxu0 0.0
        %718 = vmatpush1.msra.mxu0 0.0
        %719 = vmatprep.subr.mxu0 0.0
        %720 = vmatpush1.msra.mxu0 0.0
        %721 = vmatprep.subr.mxu0 0.0
        %722 = vmatpush1.msra.mxu0 0.0
        %723 = vmatprep.subr.mxu0 0.0
        %724 = vmatpush1.msra.mxu0 0.0
        %725 = vmatprep.subr.mxu0 0.0
        %726 = vmatpush1.msra.mxu0 0.0
        %727 = vmatprep.subr.mxu0 0.0
        %728 = vmatpush1.msra.mxu0 0.0
        %729 = vmatprep.subr.mxu0 0.0
        %730 = vmatpush1.msra.mxu0 0.0
        %731 = vmatprep.subr.mxu0 0.0
        %732 = vmatpush1.msra.mxu0 0.0
        %733 = vmatprep.subr.mxu0 0.0
        %734 = vmatpush1.msra.mxu0 0.0
        %735 = vmatprep.subr.mxu0 0.0
        %736 = vmatpush1.msra.mxu0 0.0
        %737 = vmatprep.subr.mxu0 0.0
        %738 = vmatpush1.msra.mxu0 0.0
        %739 = vmatprep.subr.mxu0 0.0
        %740 = vmatpush1.msra.mxu0 0.0
        %741 = vmatprep.subr.mxu0 0.0
        %742 = vmatpush1.msra.mxu0 0.0
        %743 = vmatprep.subr.mxu0 0.0
        %744 = vmatpush1.msra.mxu0 0.0
        %745 = vmatprep.subr.mxu0 0.0
        %746 = vmatpush1.msra.mxu0 0.0
        %747 = vmatprep.subr.mxu0 0.0
        %748 = vmatpush1.msra.mxu0 0.0
        %749 = vmatprep.mubr.f32.mxu0 0.0
        %750 = vmatmul.mubr.f32.gmra.mrb[0].mxu0 %v677
        %v751 = vpop.f32.mrb[0].mxu0
        %v752 = vadd.f32 0.0, %v751
        %v753 = vpop.f32.mrb[0].mxu0
        %v754 = vadd.f32 0.0, %v753
        %755 = vmatprep.mubr.f32.mxu0 0.0
        %756 = vmatmul.mubr.f32.gmra.mrb[0].mxu0 %v679
        %v757 = vpop.f32.mrb[0].mxu0
        %v758 = vadd.f32 0.0, %v757
        %v759 = vpop.f32.mrb[0].mxu0
        %v760 = vadd.f32 0.0, %v759
        %761 = vmatprep.mubr.f32.mxu0 0.0
        %762 = vmatmul.mubr.f32.gmra.mrb[0].mxu0 %v681
        %v763 = vpop.f32.mrb[0].mxu0
        %v764 = vadd.f32 0.0, %v763
        %v765 = vpop.f32.mrb[0].mxu0
        %v766 = vadd.f32 0.0, %v765
        %767 = vmatprep.mubr.f32.mxu0 0.0
        %768 = vmatmul.mubr.f32.gmra.mrb[0].mxu0 %v683
        %v769 = vpop.f32.mrb[0].mxu0
        %v770 = vadd.f32 0.0, %v769
        %v771 = vpop.f32.mrb[0].mxu0
        %v772 = vadd.f32 0.0, %v771
        %773 = vdwg.mxu0
        %v774 = vadd.f32 %v622, %v752
        %v775 = vadd.f32 %v624, %v754
        %v776 = vadd.f32 %v628, %v758
        %v777 = vadd.f32 %v630, %v760
        %v778 = vadd.f32 %v634, %v764
        %v779 = vadd.f32 %v636, %v766
        %v780 = vadd.f32 %v640, %v770
        %v781 = vadd.f32 %v642, %v772
        %s782 = scalar_lea.vmem %s1, 576
        %v783 = vld [vmem:[%s782] sm:$0xff]
        %v784 = vld [vmem:[%s782 + $0x8] sm:$0xff]
        %v785 = vld [vmem:[%s782 + $0x10] sm:$0xff]
        %v786 = vld [vmem:[%s782 + $0x18] sm:$0xff]
        %v787 = vld [vmem:[%s782 + $0x20] sm:$0xff]
        %v788 = vld [vmem:[%s782 + $0x28] sm:$0xff]
        %v789 = vld [vmem:[%s782 + $0x30] sm:$0xff]
        %v790 = vld [vmem:[%s782 + $0x38] sm:$0xff]
        %v791 = vld [vmem:[%s782 + $0x40] sm:$0xff]
        %v792 = vld [vmem:[%s782 + $0x48] sm:$0xff]
        %v793 = vld [vmem:[%s782 + $0x50] sm:$0xff]
        %v794 = vld [vmem:[%s782 + $0x58] sm:$0xff]
        %v795 = vld [vmem:[%s782 + $0x60] sm:$0xff]
        %v796 = vld [vmem:[%s782 + $0x68] sm:$0xff]
        %v797 = vld [vmem:[%s782 + $0x70] sm:$0xff]
        %v798 = vld [vmem:[%s782 + $0x78] sm:$0xff]
        %v799 = vld [vmem:[%s782 + $0x80] sm:$0xff]
        %v800 = vld [vmem:[%s782 + $0x88] sm:$0xff]
        %v801 = vld [vmem:[%s782 + $0x90] sm:$0xff]
        %v802 = vld [vmem:[%s782 + $0x98] sm:$0xff]
        %v803 = vld [vmem:[%s782 + $0xa0] sm:$0xff]
        %v804 = vld [vmem:[%s782 + $0xa8] sm:$0xff]
        %v805 = vld [vmem:[%s782 + $0xb0] sm:$0xff]
        %v806 = vld [vmem:[%s782 + $0xb8] sm:$0xff]
        %vm807 = vcmask 1044480
        %v808 = vrot.slane %v384, 3
        %v809 = vrot.slane %v385, 3
        %v810 = vsel %vm807, %v808, %v809
        %v811 = vrot.slane %v386, 3
        %v812 = vsel %vm807, %v809, %v811
        %v813 = vrot.slane %v387, 3
        %v814 = vsel %vm807, %v811, %v813
        %v815 = vsel %vm449, %v810, 0
        %v817 = vsel %vm449, %v812, 0
        %v819 = vsel %vm449, %v814, 0
        %v821 = vsel %vm449, %v813, 0
        %823 = vmatprep.subr.mxu0 %v784
        %824 = vmatpush1.msra.mxu0 %v783
        %825 = vmatprep.subr.mxu0 %v786
        %826 = vmatpush1.msra.mxu0 %v785
        %827 = vmatprep.subr.mxu0 %v788
        %828 = vmatpush1.msra.mxu0 %v787
        %829 = vmatprep.subr.mxu0 %v790
        %830 = vmatpush1.msra.mxu0 %v789
        %831 = vmatprep.subr.mxu0 %v792
        %832 = vmatpush1.msra.mxu0 %v791
        %833 = vmatprep.subr.mxu0 %v794
        %834 = vmatpush1.msra.mxu0 %v793
        %835 = vmatprep.subr.mxu0 %v796
        %836 = vmatpush1.msra.mxu0 %v795
        %837 = vmatprep.subr.mxu0 %v798
        %838 = vmatpush1.msra.mxu0 %v797
        %839 = vmatprep.subr.mxu0 %v800
        %840 = vmatpush1.msra.mxu0 %v799
        %841 = vmatprep.subr.mxu0 %v802
        %842 = vmatpush1.msra.mxu0 %v801
        %843 = vmatprep.subr.mxu0 %v804
        %844 = vmatpush1.msra.mxu0 %v803
        %845 = vmatprep.subr.mxu0 %v806
        %846 = vmatpush1.msra.mxu0 %v805
        %847 = vmatprep.subr.mxu0 0.0
        %848 = vmatpush1.msra.mxu0 0.0
        %849 = vmatprep.subr.mxu0 0.0
        %850 = vmatpush1.msra.mxu0 0.0
        %851 = vmatprep.subr.mxu0 0.0
        %852 = vmatpush1.msra.mxu0 0.0
        %853 = vmatprep.subr.mxu0 0.0
        %854 = vmatpush1.msra.mxu0 0.0
        %855 = vmatprep.subr.mxu0 0.0
        %856 = vmatpush1.msra.mxu0 0.0
        %857 = vmatprep.subr.mxu0 0.0
        %858 = vmatpush1.msra.mxu0 0.0
        %859 = vmatprep.subr.mxu0 0.0
        %860 = vmatpush1.msra.mxu0 0.0
        %861 = vmatprep.subr.mxu0 0.0
        %862 = vmatpush1.msra.mxu0 0.0
        %863 = vmatprep.subr.mxu0 0.0
        %864 = vmatpush1.msra.mxu0 0.0
        %865 = vmatprep.subr.mxu0 0.0
        %866 = vmatpush1.msra.mxu0 0.0
        %867 = vmatprep.subr.mxu0 0.0
        %868 = vmatpush1.msra.mxu0 0.0
        %869 = vmatprep.subr.mxu0 0.0
        %870 = vmatpush1.msra.mxu0 0.0
        %871 = vmatprep.subr.mxu0 0.0
        %872 = vmatpush1.msra.mxu0 0.0
        %873 = vmatprep.subr.mxu0 0.0
        %874 = vmatpush1.msra.mxu0 0.0
        %875 = vmatprep.subr.mxu0 0.0
        %876 = vmatpush1.msra.mxu0 0.0
        %877 = vmatprep.subr.mxu0 0.0
        %878 = vmatpush1.msra.mxu0 0.0
        %879 = vmatprep.subr.mxu0 0.0
        %880 = vmatpush1.msra.mxu0 0.0
        %881 = vmatprep.subr.mxu0 0.0
        %882 = vmatpush1.msra.mxu0 0.0
        %883 = vmatprep.subr.mxu0 0.0
        %884 = vmatpush1.msra.mxu0 0.0
        %885 = vmatprep.subr.mxu0 0.0
        %886 = vmatpush1.msra.mxu0 0.0
        %887 = vmatprep.mubr.f32.mxu0 0.0
        %888 = vmatmul.mubr.f32.gmra.mrb[0].mxu0 %v815
        %v889 = vpop.f32.mrb[0].mxu0
        %v890 = vadd.f32 0.0, %v889
        %v891 = vpop.f32.mrb[0].mxu0
        %v892 = vadd.f32 0.0, %v891
        %893 = vmatprep.mubr.f32.mxu0 0.0
        %894 = vmatmul.mubr.f32.gmra.mrb[0].mxu0 %v817
        %v895 = vpop.f32.mrb[0].mxu0
        %v896 = vadd.f32 0.0, %v895
        %v897 = vpop.f32.mrb[0].mxu0
        %v898 = vadd.f32 0.0, %v897
        %899 = vmatprep.mubr.f32.mxu0 0.0
        %900 = vmatmul.mubr.f32.gmra.mrb[0].mxu0 %v819
        %v901 = vpop.f32.mrb[0].mxu0
        %v902 = vadd.f32 0.0, %v901
        %v903 = vpop.f32.mrb[0].mxu0
        %v904 = vadd.f32 0.0, %v903
        %905 = vmatprep.mubr.f32.mxu0 0.0
        %906 = vmatmul.mubr.f32.gmra.mrb[0].mxu0 %v821
        %v907 = vpop.f32.mrb[0].mxu0
        %v908 = vadd.f32 0.0, %v907
        %v909 = vpop.f32.mrb[0].mxu0
        %v910 = vadd.f32 0.0, %v909
        %911 = vdwg.mxu0
        %v912 = vadd.f32 %v774, %v890
        %v913 = vadd.f32 %v775, %v892
        %v914 = vadd.f32 %v776, %v896
        %v915 = vadd.f32 %v777, %v898
        %v916 = vadd.f32 %v778, %v902
        %v917 = vadd.f32 %v779, %v904
        %v918 = vadd.f32 %v780, %v908
        %v919 = vadd.f32 %v781, %v910
        %s920 = scalar_lea.vmem %s1, 768
        %v921 = vld [vmem:[%s920] sm:$0xff]
        %v922 = vld [vmem:[%s920 + $0x8] sm:$0xff]
        %v923 = vld [vmem:[%s920 + $0x10] sm:$0xff]
        %v924 = vld [vmem:[%s920 + $0x18] sm:$0xff]
        %v925 = vld [vmem:[%s920 + $0x20] sm:$0xff]
        %v926 = vld [vmem:[%s920 + $0x28] sm:$0xff]
        %v927 = vld [vmem:[%s920 + $0x30] sm:$0xff]
        %v928 = vld [vmem:[%s920 + $0x38] sm:$0xff]
        %v929 = vld [vmem:[%s920 + $0x40] sm:$0xff]
        %v930 = vld [vmem:[%s920 + $0x48] sm:$0xff]
        %v931 = vld [vmem:[%s920 + $0x50] sm:$0xff]
        %v932 = vld [vmem:[%s920 + $0x58] sm:$0xff]
        %v933 = vld [vmem:[%s920 + $0x60] sm:$0xff]
        %v934 = vld [vmem:[%s920 + $0x68] sm:$0xff]
        %v935 = vld [vmem:[%s920 + $0x70] sm:$0xff]
        %v936 = vld [vmem:[%s920 + $0x78] sm:$0xff]
        %v937 = vld [vmem:[%s920 + $0x80] sm:$0xff]
        %v938 = vld [vmem:[%s920 + $0x88] sm:$0xff]
        %v939 = vld [vmem:[%s920 + $0x90] sm:$0xff]
        %v940 = vld [vmem:[%s920 + $0x98] sm:$0xff]
        %v941 = vld [vmem:[%s920 + $0xa0] sm:$0xff]
        %v942 = vld [vmem:[%s920 + $0xa8] sm:$0xff]
        %v943 = vld [vmem:[%s920 + $0xb0] sm:$0xff]
        %v944 = vld [vmem:[%s920 + $0xb8] sm:$0xff]
        %vm945 = vcmask 1043456
        %v946 = vrot.slane %v384, 4
        %v947 = vrot.slane %v385, 4
        %v948 = vsel %vm945, %v946, %v947
        %v949 = vrot.slane %v386, 4
        %v950 = vsel %vm945, %v947, %v949
        %v951 = vrot.slane %v387, 4
        %v952 = vsel %vm945, %v949, %v951
        %v953 = vsel %vm449, %v948, 0
        %v955 = vsel %vm449, %v950, 0
        %v957 = vsel %vm449, %v952, 0
        %v959 = vsel %vm449, %v951, 0
        %961 = vmatprep.subr.mxu0 %v922
        %962 = vmatpush1.msra.mxu0 %v921
        %963 = vmatprep.subr.mxu0 %v924
        %964 = vmatpush1.msra.mxu0 %v923
        %965 = vmatprep.subr.mxu0 %v926
        %966 = vmatpush1.msra.mxu0 %v925
        %967 = vmatprep.subr.mxu0 %v928
        %968 = vmatpush1.msra.mxu0 %v927
        %969 = vmatprep.subr.mxu0 %v930
        %970 = vmatpush1.msra.mxu0 %v929
        %971 = vmatprep.subr.mxu0 %v932
        %972 = vmatpush1.msra.mxu0 %v931
        %973 = vmatprep.subr.mxu0 %v934
        %974 = vmatpush1.msra.mxu0 %v933
        %975 = vmatprep.subr.mxu0 %v936
        %976 = vmatpush1.msra.mxu0 %v935
        %977 = vmatprep.subr.mxu0 %v938
        %978 = vmatpush1.msra.mxu0 %v937
        %979 = vmatprep.subr.mxu0 %v940
        %980 = vmatpush1.msra.mxu0 %v939
        %981 = vmatprep.subr.mxu0 %v942
        %982 = vmatpush1.msra.mxu0 %v941
        %983 = vmatprep.subr.mxu0 %v944
        %984 = vmatpush1.msra.mxu0 %v943
        %985 = vmatprep.subr.mxu0 0.0
        %986 = vmatpush1.msra.mxu0 0.0
        %987 = vmatprep.subr.mxu0 0.0
        %988 = vmatpush1.msra.mxu0 0.0
        %989 = vmatprep.subr.mxu0 0.0
        %990 = vmatpush1.msra.mxu0 0.0
        %991 = vmatprep.subr.mxu0 0.0
        %992 = vmatpush1.msra.mxu0 0.0
        %993 = vmatprep.subr.mxu0 0.0
        %994 = vmatpush1.msra.mxu0 0.0
        %995 = vmatprep.subr.mxu0 0.0
        %996 = vmatpush1.msra.mxu0 0.0
        %997 = vmatprep.subr.mxu0 0.0
        %998 = vmatpush1.msra.mxu0 0.0
        %999 = vmatprep.subr.mxu0 0.0
        %1000 = vmatpush1.msra.mxu0 0.0
        %1001 = vmatprep.subr.mxu0 0.0
        %1002 = vmatpush1.msra.mxu0 0.0
        %1003 = vmatprep.subr.mxu0 0.0
        %1004 = vmatpush1.msra.mxu0 0.0
        %1005 = vmatprep.subr.mxu0 0.0
        %1006 = vmatpush1.msra.mxu0 0.0
        %1007 = vmatprep.subr.mxu0 0.0
        %1008 = vmatpush1.msra.mxu0 0.0
        %1009 = vmatprep.subr.mxu0 0.0
        %1010 = vmatpush1.msra.mxu0 0.0
        %1011 = vmatprep.subr.mxu0 0.0
        %1012 = vmatpush1.msra.mxu0 0.0
        %1013 = vmatprep.subr.mxu0 0.0
        %1014 = vmatpush1.msra.mxu0 0.0
        %1015 = vmatprep.subr.mxu0 0.0
        %1016 = vmatpush1.msra.mxu0 0.0
        %1017 = vmatprep.subr.mxu0 0.0
        %1018 = vmatpush1.msra.mxu0 0.0
        %1019 = vmatprep.subr.mxu0 0.0
        %1020 = vmatpush1.msra.mxu0 0.0
        %1021 = vmatprep.subr.mxu0 0.0
        %1022 = vmatpush1.msra.mxu0 0.0
        %1023 = vmatprep.subr.mxu0 0.0
        %1024 = vmatpush1.msra.mxu0 0.0
        %1025 = vmatprep.mubr.f32.mxu0 0.0
        %1026 = vmatmul.mubr.f32.gmra.mrb[0].mxu0 %v953
        %v1027 = vpop.f32.mrb[0].mxu0
        %v1028 = vadd.f32 0.0, %v1027
        %v1029 = vpop.f32.mrb[0].mxu0
        %v1030 = vadd.f32 0.0, %v1029
        %1031 = vmatprep.mubr.f32.mxu0 0.0
        %1032 = vmatmul.mubr.f32.gmra.mrb[0].mxu0 %v955
        %v1033 = vpop.f32.mrb[0].mxu0
        %v1034 = vadd.f32 0.0, %v1033
        %v1035 = vpop.f32.mrb[0].mxu0
        %v1036 = vadd.f32 0.0, %v1035
        %1037 = vmatprep.mubr.f32.mxu0 0.0
        %1038 = vmatmul.mubr.f32.gmra.mrb[0].mxu0 %v957
        %v1039 = vpop.f32.mrb[0].mxu0
        %v1040 = vadd.f32 0.0, %v1039
        %v1041 = vpop.f32.mrb[0].mxu0
        %v1042 = vadd.f32 0.0, %v1041
        %1043 = vmatprep.mubr.f32.mxu0 0.0
        %1044 = vmatmul.mubr.f32.gmra.mrb[0].mxu0 %v959
        %v1045 = vpop.f32.mrb[0].mxu0
        %v1046 = vadd.f32 0.0, %v1045
        %v1047 = vpop.f32.mrb[0].mxu0
        %v1048 = vadd.f32 0.0, %v1047
        %1049 = vdwg.mxu0
        %v1050 = vadd.f32 %v912, %v1028
        %v1051 = vadd.f32 %v913, %v1030
        %v1052 = vadd.f32 %v914, %v1034
        %v1053 = vadd.f32 %v915, %v1036
        %v1054 = vadd.f32 %v916, %v1040
        %v1055 = vadd.f32 %v917, %v1042
        %v1056 = vadd.f32 %v918, %v1046
        %v1057 = vadd.f32 %v919, %v1048
        %v1058 = vld [vmem:[%s2] sm:$0x3]
        %v1060 = vlaneseq
        %v1061 = vshrl.u32 %v1060, 7
        %v1062 = vsub.s32 0, %v1061
        %v1063 = vrot.slane %v1058, %v1062
        %v1064 = vlaneseq
        %v1065 = vshrl.u32 %v1064, 7
        %v1066 = vsub.s32 1, %v1065
        %v1067 = vrot.slane %v1058, %v1066
        %v1070 = vadd.f32 %v1050, %v1063
        %v1071 = vadd.f32 %v1051, %v1067
        %v1072 = vadd.f32 %v1052, %v1063
        %v1073 = vadd.f32 %v1053, %v1067
        %v1074 = vadd.f32 %v1054, %v1063
        %v1075 = vadd.f32 %v1055, %v1067
        %v1076 = vadd.f32 %v1056, %v1063
        %v1077 = vadd.f32 %v1057, %v1067
        %v1078 = vmax.f32 %v1070, 0.0
        %v1079 = vmax.f32 %v1071, 0.0
        %v1080 = vmax.f32 %v1072, 0.0
        %v1081 = vmax.f32 %v1073, 0.0
        %v1082 = vmax.f32 %v1074, 0.0
        %v1083 = vmax.f32 %v1075, 0.0
        %v1084 = vmax.f32 %v1076, 0.0
        %v1085 = vmax.f32 %v1077, 0.0
        %v1094 = vrot.slane %v1078, 1
        %v1095 = vrot.slane %v1080, 1
        %v1096 = vsel %vm441, %v1094, %v1095
        %v1097 = vrot.slane %v1079, 1
        %v1098 = vrot.slane %v1081, 1
        %v1099 = vsel %vm441, %v1097, %v1098
        %v1100 = vrot.slane %v1082, 1
        %v1101 = vsel %vm441, %v1095, %v1100
        %v1102 = vrot.slane %v1083, 1
        %v1103 = vsel %vm441, %v1098, %v1102
        %v1104 = vrot.slane %v1084, 1
        %v1105 = vsel %vm441, %v1100, %v1104
        %v1106 = vrot.slane %v1085, 1
        %v1107 = vsel %vm441, %v1102, %v1106
        %v1116 = vmax.f32 %v1078, %v1096
        %v1117 = vmax.f32 %v1079, %v1099
        %v1118 = vmax.f32 %v1080, %v1101
        %v1119 = vmax.f32 %v1081, %v1103
        %v1120 = vmax.f32 %v1082, %v1105
        %v1121 = vmax.f32 %v1083, %v1107
        %v1122 = vmax.f32 %v1084, %v1104
        %v1123 = vmax.f32 %v1085, %v1106
        %1132 = vrot.lane.b32.xlu0 %v1116, 122
        %v1133 = vpop.permute.xlu0 %1132
        %1134 = vrot.lane.b32.xlu0 %v1117, 122
        %v1135 = vpop.permute.xlu0 %1134
        %1136 = vrot.lane.b32.xlu0 %v1118, 122
        %v1137 = vpop.permute.xlu0 %1136
        %1138 = vrot.lane.b32.xlu0 %v1119, 122
        %v1139 = vpop.permute.xlu0 %1138
        %1140 = vrot.lane.b32.xlu0 %v1120, 122
        %v1141 = vpop.permute.xlu0 %1140
        %1142 = vrot.lane.b32.xlu0 %v1121, 122
        %v1143 = vpop.permute.xlu0 %1142
        %1144 = vrot.lane.b32.xlu0 %v1122, 122
        %v1145 = vpop.permute.xlu0 %1144
        %1146 = vrot.lane.b32.xlu0 %v1123, 122
        %v1147 = vpop.permute.xlu0 %1146
        %vm1148 = vcmask 998400
        %v1149 = vsel %vm1148, %v1133, %v1135
        %v1150 = vsel %vm1148, %v1137, %v1139
        %v1151 = vsel %vm1148, %v1141, %v1143
        %v1152 = vsel %vm1148, %v1145, %v1147
        %v1161 = vmax.f32 %v1116, %v1149
        %v1162 = vmax.f32 %v1117, %v1135
        %v1163 = vmax.f32 %v1118, %v1150
        %v1164 = vmax.f32 %v1119, %v1139
        %v1165 = vmax.f32 %v1120, %v1151
        %v1166 = vmax.f32 %v1121, %v1143
        %v1167 = vmax.f32 %v1122, %v1152
        %v1168 = vmax.f32 %v1123, %v1147
        %v1169 = vld [vmem:[%s3] sm:$0xff]
        %v1170 = vld [vmem:[%s3 + $0x8] sm:$0xff]
        %v1171 = vld [vmem:[%s3 + $0x10] sm:$0xff]
        %v1172 = vld [vmem:[%s3 + $0x18] sm:$0xff]
        %v1173 = vld [vmem:[%s3 + $0x20] sm:$0xff]
        %v1174 = vld [vmem:[%s3 + $0x28] sm:$0xff]
        %v1175 = vld [vmem:[%s3 + $0x30] sm:$0xff]
        %v1176 = vld [vmem:[%s3 + $0x38] sm:$0xff]
        %v1177 = vld [vmem:[%s3 + $0x40] sm:$0xff]
        %v1178 = vld [vmem:[%s3 + $0x48] sm:$0xff]
        %v1179 = vld [vmem:[%s3 + $0x50] sm:$0xff]
        %v1180 = vld [vmem:[%s3 + $0x58] sm:$0xff]
        %v1181 = vld [vmem:[%s3 + $0x60] sm:$0xff]
        %v1182 = vld [vmem:[%s3 + $0x68] sm:$0xff]
        %v1183 = vld [vmem:[%s3 + $0x70] sm:$0xff]
        %v1184 = vld [vmem:[%s3 + $0x78] sm:$0xff]
        %v1185 = vld [vmem:[%s3 + $0x80] sm:$0xff]
        %v1186 = vld [vmem:[%s3 + $0x88] sm:$0xff]
        %v1187 = vld [vmem:[%s3 + $0x90] sm:$0xff]
        %v1188 = vld [vmem:[%s3 + $0x98] sm:$0xff]
        %v1189 = vld [vmem:[%s3 + $0xa0] sm:$0xff]
        %v1190 = vld [vmem:[%s3 + $0xa8] sm:$0xff]
        %v1191 = vld [vmem:[%s3 + $0xb0] sm:$0xff]
        %v1192 = vld [vmem:[%s3 + $0xb8] sm:$0xff]
        %v1193 = vld [vmem:[%s3 + $0xc0] sm:$0xff]
        %v1194 = vld [vmem:[%s3 + $0xc8] sm:$0xff]
        %v1195 = vld [vmem:[%s3 + $0xd0] sm:$0xff]
        %v1196 = vld [vmem:[%s3 + $0xd8] sm:$0xff]
        %v1197 = vld [vmem:[%s3 + $0xe0] sm:$0xff]
        %v1198 = vld [vmem:[%s3 + $0xe8] sm:$0xff]
        %v1199 = vld [vmem:[%s3 + $0xf0] sm:$0xff]
        %v1200 = vld [vmem:[%s3 + $0xf8] sm:$0xff]
        %v1201 = vld [vmem:[%s3 + $0x100] sm:$0xff]
        %v1202 = vld [vmem:[%s3 + $0x108] sm:$0xff]
        %v1203 = vld [vmem:[%s3 + $0x110] sm:$0xff]
        %v1204 = vld [vmem:[%s3 + $0x118] sm:$0xff]
        %v1205 = vld [vmem:[%s3 + $0x120] sm:$0xff]
        %v1206 = vld [vmem:[%s3 + $0x128] sm:$0xff]
        %v1207 = vld [vmem:[%s3 + $0x130] sm:$0xff]
        %v1208 = vld [vmem:[%s3 + $0x138] sm:$0xff]
        %v1209 = vld [vmem:[%s3 + $0x140] sm:$0x3]
        %v1210 = vld [vmem:[%s3 + $0x148] sm:$0x3]
        %s1211 = scalar_lea.vmem %s3, 336
        %v1212 = vld [vmem:[%s1211] sm:$0xff]
        %v1213 = vld [vmem:[%s1211 + $0x8] sm:$0xff]
        %v1214 = vld [vmem:[%s1211 + $0x10] sm:$0xff]
        %v1215 = vld [vmem:[%s1211 + $0x18] sm:$0xff]
        %v1216 = vld [vmem:[%s1211 + $0x20] sm:$0xff]
        %v1217 = vld [vmem:[%s1211 + $0x28] sm:$0xff]
        %v1218 = vld [vmem:[%s1211 + $0x30] sm:$0xff]
        %v1219 = vld [vmem:[%s1211 + $0x38] sm:$0xff]
        %v1220 = vld [vmem:[%s1211 + $0x40] sm:$0xff]
        %v1221 = vld [vmem:[%s1211 + $0x48] sm:$0xff]
        %v1222 = vld [vmem:[%s1211 + $0x50] sm:$0xff]
        %v1223 = vld [vmem:[%s1211 + $0x58] sm:$0xff]
        %v1224 = vld [vmem:[%s1211 + $0x60] sm:$0xff]
        %v1225 = vld [vmem:[%s1211 + $0x68] sm:$0xff]
        %v1226 = vld [vmem:[%s1211 + $0x70] sm:$0xff]
        %v1227 = vld [vmem:[%s1211 + $0x78] sm:$0xff]
        %v1228 = vld [vmem:[%s1211 + $0x80] sm:$0xff]
        %v1229 = vld [vmem:[%s1211 + $0x88] sm:$0xff]
        %v1230 = vld [vmem:[%s1211 + $0x90] sm:$0xff]
        %v1231 = vld [vmem:[%s1211 + $0x98] sm:$0xff]
        %v1232 = vld [vmem:[%s1211 + $0xa0] sm:$0xff]
        %v1233 = vld [vmem:[%s1211 + $0xa8] sm:$0xff]
        %v1234 = vld [vmem:[%s1211 + $0xb0] sm:$0xff]
        %v1235 = vld [vmem:[%s1211 + $0xb8] sm:$0xff]
        %v1236 = vld [vmem:[%s1211 + $0xc0] sm:$0xff]
        %v1237 = vld [vmem:[%s1211 + $0xc8] sm:$0xff]
        %v1238 = vld [vmem:[%s1211 + $0xd0] sm:$0xff]
        %v1239 = vld [vmem:[%s1211 + $0xd8] sm:$0xff]
        %v1240 = vld [vmem:[%s1211 + $0xe0] sm:$0xff]
        %v1241 = vld [vmem:[%s1211 + $0xe8] sm:$0xff]
        %v1242 = vld [vmem:[%s1211 + $0xf0] sm:$0xff]
        %v1243 = vld [vmem:[%s1211 + $0xf8] sm:$0xff]
        %v1244 = vld [vmem:[%s1211 + $0x100] sm:$0xff]
        %v1245 = vld [vmem:[%s1211 + $0x108] sm:$0xff]
        %v1246 = vld [vmem:[%s1211 + $0x110] sm:$0xff]
        %v1247 = vld [vmem:[%s1211 + $0x118] sm:$0xff]
        %v1248 = vld [vmem:[%s1211 + $0x120] sm:$0xff]
        %v1249 = vld [vmem:[%s1211 + $0x128] sm:$0xff]
        %v1250 = vld [vmem:[%s1211 + $0x130] sm:$0xff]
        %v1251 = vld [vmem:[%s1211 + $0x138] sm:$0xff]
        %v1252 = vld [vmem:[%s1211 + $0x140] sm:$0x3]
        %v1253 = vld [vmem:[%s1211 + $0x148] sm:$0x3]
        %v1260 = vrot.slane %v1161, 2
        %v1261 = vrot.slane %v1163, 2
        %v1262 = vsel %vm669, %v1260, %v1261
        %v1263 = vrot.slane %v1162, 2
        %v1264 = vrot.slane %v1164, 2
        %v1265 = vsel %vm669, %v1263, %v1264
        %v1266 = vrot.slane %v1165, 2
        %v1267 = vsel %vm669, %v1261, %v1266
        %v1268 = vrot.slane %v1166, 2
        %v1269 = vsel %vm669, %v1264, %v1268
        %vm1273 = vcmask 277504
        %v1274 = vsel %vm1273, %v1265, 0
        %v1276 = vsel %vm1273, %v1269, 0
        %v1278 = vsel %vm1273, %v1268, 0
        %vm1280 = vcmask 1041408
        %v1282 = vsel %vm1280, %v1252, 0
        %v1285 = vsel %vm1280, %v1253, 0
        %1287 = vmatprep.subr.mxu0 %v1213
        %1288 = vmatpush1.msra.mxu0 %v1212
        %1289 = vmatprep.subr.mxu0 %v1215
        %1290 = vmatpush1.msra.mxu0 %v1214
        %1291 = vmatprep.subr.mxu0 %v1217
        %1292 = vmatpush1.msra.mxu0 %v1216
        %1293 = vmatprep.subr.mxu0 %v1219
        %1294 = vmatpush1.msra.mxu0 %v1218
        %1295 = vmatprep.subr.mxu0 %v1221
        %1296 = vmatpush1.msra.mxu0 %v1220
        %1297 = vmatprep.subr.mxu0 %v1223
        %1298 = vmatpush1.msra.mxu0 %v1222
        %1299 = vmatprep.subr.mxu0 %v1225
        %1300 = vmatpush1.msra.mxu0 %v1224
        %1301 = vmatprep.subr.mxu0 %v1227
        %1302 = vmatpush1.msra.mxu0 %v1226
        %1303 = vmatprep.subr.mxu0 %v1229
        %1304 = vmatpush1.msra.mxu0 %v1228
        %1305 = vmatprep.subr.mxu0 %v1231
        %1306 = vmatpush1.msra.mxu0 %v1230
        %1307 = vmatprep.subr.mxu0 %v1233
        %1308 = vmatpush1.msra.mxu0 %v1232
        %1309 = vmatprep.subr.mxu0 %v1235
        %1310 = vmatpush1.msra.mxu0 %v1234
        %1311 = vmatprep.subr.mxu0 %v1237
        %1312 = vmatpush1.msra.mxu0 %v1236
        %1313 = vmatprep.subr.mxu0 %v1239
        %1314 = vmatpush1.msra.mxu0 %v1238
        %1315 = vmatprep.subr.mxu0 %v1241
        %1316 = vmatpush1.msra.mxu0 %v1240
        %1317 = vmatprep.subr.mxu0 %v1243
        %1318 = vmatpush1.msra.mxu0 %v1242
        %1319 = vmatprep.subr.mxu0 %v1245
        %1320 = vmatpush1.msra.mxu0 %v1244
        %1321 = vmatprep.subr.mxu0 %v1247
        %1322 = vmatpush1.msra.mxu0 %v1246
        %1323 = vmatprep.subr.mxu0 %v1249
        %1324 = vmatpush1.msra.mxu0 %v1248
        %1325 = vmatprep.subr.mxu0 %v1251
        %1326 = vmatpush1.msra.mxu0 %v1250
        %1327 = vmatprep.subr.mxu0 %v1285
        %1328 = vmatpush1.msra.mxu0 %v1282
        %1329 = vmatprep.subr.mxu0 0.0
        %1330 = vmatpush1.msra.mxu0 0.0
        %1331 = vmatprep.subr.mxu0 0.0
        %1332 = vmatpush1.msra.mxu0 0.0
        %1333 = vmatprep.subr.mxu0 0.0
        %1334 = vmatpush1.msra.mxu0 0.0
        %1335 = vmatprep.subr.mxu0 0.0
        %1336 = vmatpush1.msra.mxu0 0.0
        %1337 = vmatprep.subr.mxu0 0.0
        %1338 = vmatpush1.msra.mxu0 0.0
        %1339 = vmatprep.subr.mxu0 0.0
        %1340 = vmatpush1.msra.mxu0 0.0
        %1341 = vmatprep.subr.mxu0 0.0
        %1342 = vmatpush1.msra.mxu0 0.0
        %1343 = vmatprep.subr.mxu0 0.0
        %1344 = vmatpush1.msra.mxu0 0.0
        %1345 = vmatprep.subr.mxu0 0.0
        %1346 = vmatpush1.msra.mxu0 0.0
        %1347 = vmatprep.subr.mxu0 0.0
        %1348 = vmatpush1.msra.mxu0 0.0
        %1349 = vmatprep.subr.mxu0 0.0
        %1350 = vmatpush1.msra.mxu0 0.0
        %1351 = vmatprep.mubr.f32.mxu0 %v1274
        %1352 = vmatmul.mubr.f32.gmra.mrb[0].mxu0 %v1262
        %v1353 = vpop.f32.mrb[0].mxu0
        %v1354 = vadd.f32 0.0, %v1353
        %v1355 = vpop.f32.mrb[0].mxu0
        %v1356 = vadd.f32 0.0, %v1355
        %1357 = vmatprep.mubr.f32.mxu0 %v1276
        %1358 = vmatmul.mubr.f32.gmra.mrb[0].mxu0 %v1267
        %v1359 = vpop.f32.mrb[0].mxu0
        %v1360 = vadd.f32 0.0, %v1359
        %v1361 = vpop.f32.mrb[0].mxu0
        %v1362 = vadd.f32 0.0, %v1361
        %1363 = vmatprep.mubr.f32.mxu0 %v1278
        %1364 = vmatmul.mubr.f32.gmra.mrb[0].mxu0 %v1266
        %v1365 = vpop.f32.mrb[0].mxu0
        %v1366 = vadd.f32 0.0, %v1365
        %v1367 = vpop.f32.mrb[0].mxu0
        %v1368 = vadd.f32 0.0, %v1367
        %1369 = vdwg.mxu0
        %v1370 = vsel %vm1273, %v1162, 0
        %v1372 = vsel %vm1273, %v1164, 0
        %v1374 = vsel %vm1273, %v1166, 0
        %v1377 = vsel %vm1280, %v1209, 0
        %v1380 = vsel %vm1280, %v1210, 0
        %1382 = vmatprep.subr.mxu0 %v1170
        %1383 = vmatpush1.msra.mxu0 %v1169
        %1384 = vmatprep.subr.mxu0 %v1172
        %1385 = vmatpush1.msra.mxu0 %v1171
        %1386 = vmatprep.subr.mxu0 %v1174
        %1387 = vmatpush1.msra.mxu0 %v1173
        %1388 = vmatprep.subr.mxu0 %v1176
        %1389 = vmatpush1.msra.mxu0 %v1175
        %1390 = vmatprep.subr.mxu0 %v1178
        %1391 = vmatpush1.msra.mxu0 %v1177
        %1392 = vmatprep.subr.mxu0 %v1180
        %1393 = vmatpush1.msra.mxu0 %v1179
        %1394 = vmatprep.subr.mxu0 %v1182
        %1395 = vmatpush1.msra.mxu0 %v1181
        %1396 = vmatprep.subr.mxu0 %v1184
        %1397 = vmatpush1.msra.mxu0 %v1183
        %1398 = vmatprep.subr.mxu0 %v1186
        %1399 = vmatpush1.msra.mxu0 %v1185
        %1400 = vmatprep.subr.mxu0 %v1188
        %1401 = vmatpush1.msra.mxu0 %v1187
        %1402 = vmatprep.subr.mxu0 %v1190
        %1403 = vmatpush1.msra.mxu0 %v1189
        %1404 = vmatprep.subr.mxu0 %v1192
        %1405 = vmatpush1.msra.mxu0 %v1191
        %1406 = vmatprep.subr.mxu0 %v1194
        %1407 = vmatpush1.msra.mxu0 %v1193
        %1408 = vmatprep.subr.mxu0 %v1196
        %1409 = vmatpush1.msra.mxu0 %v1195
        %1410 = vmatprep.subr.mxu0 %v1198
        %1411 = vmatpush1.msra.mxu0 %v1197
        %1412 = vmatprep.subr.mxu0 %v1200
        %1413 = vmatpush1.msra.mxu0 %v1199
        %1414 = vmatprep.subr.mxu0 %v1202
        %1415 = vmatpush1.msra.mxu0 %v1201
        %1416 = vmatprep.subr.mxu0 %v1204
        %1417 = vmatpush1.msra.mxu0 %v1203
        %1418 = vmatprep.subr.mxu0 %v1206
        %1419 = vmatpush1.msra.mxu0 %v1205
        %1420 = vmatprep.subr.mxu0 %v1208
        %1421 = vmatpush1.msra.mxu0 %v1207
        %1422 = vmatprep.subr.mxu0 %v1380
        %1423 = vmatpush1.msra.mxu0 %v1377
        %1424 = vmatprep.subr.mxu0 0.0
        %1425 = vmatpush1.msra.mxu0 0.0
        %1426 = vmatprep.subr.mxu0 0.0
        %1427 = vmatpush1.msra.mxu0 0.0
        %1428 = vmatprep.subr.mxu0 0.0
        %1429 = vmatpush1.msra.mxu0 0.0
        %1430 = vmatprep.subr.mxu0 0.0
        %1431 = vmatpush1.msra.mxu0 0.0
        %1432 = vmatprep.subr.mxu0 0.0
        %1433 = vmatpush1.msra.mxu0 0.0
        %1434 = vmatprep.subr.mxu0 0.0
        %1435 = vmatpush1.msra.mxu0 0.0
        %1436 = vmatprep.subr.mxu0 0.0
        %1437 = vmatpush1.msra.mxu0 0.0
        %1438 = vmatprep.subr.mxu0 0.0
        %1439 = vmatpush1.msra.mxu0 0.0
        %1440 = vmatprep.subr.mxu0 0.0
        %1441 = vmatpush1.msra.mxu0 0.0
        %1442 = vmatprep.subr.mxu0 0.0
        %1443 = vmatpush1.msra.mxu0 0.0
        %1444 = vmatprep.subr.mxu0 0.0
        %1445 = vmatpush1.msra.mxu0 0.0
        %1446 = vmatprep.mubr.f32.mxu0 %v1370
        %1447 = vmatmul.mubr.f32.gmra.mrb[0].mxu0 %v1161
        %v1448 = vpop.f32.mrb[0].mxu0
        %v1449 = vadd.f32 %v1354, %v1448
        %v1450 = vpop.f32.mrb[0].mxu0
        %v1451 = vadd.f32 %v1356, %v1450
        %1452 = vmatprep.mubr.f32.mxu0 %v1372
        %1453 = vmatmul.mubr.f32.gmra.mrb[0].mxu0 %v1163
        %v1454 = vpop.f32.mrb[0].mxu0
        %v1455 = vadd.f32 %v1360, %v1454
        %v1456 = vpop.f32.mrb[0].mxu0
        %v1457 = vadd.f32 %v1362, %v1456
        %1458 = vmatprep.mubr.f32.mxu0 %v1374
        %1459 = vmatmul.mubr.f32.gmra.mrb[0].mxu0 %v1165
        %v1460 = vpop.f32.mrb[0].mxu0
        %v1461 = vadd.f32 %v1366, %v1460
        %v1462 = vpop.f32.mrb[0].mxu0
        %v1463 = vadd.f32 %v1368, %v1462
        %1464 = vdwg.mxu0
        %s1465 = scalar_lea.vmem %s3, 672
        %v1466 = vld [vmem:[%s1465] sm:$0xff]
        %v1467 = vld [vmem:[%s1465 + $0x8] sm:$0xff]
        %v1468 = vld [vmem:[%s1465 + $0x10] sm:$0xff]
        %v1469 = vld [vmem:[%s1465 + $0x18] sm:$0xff]
        %v1470 = vld [vmem:[%s1465 + $0x20] sm:$0xff]
        %v1471 = vld [vmem:[%s1465 + $0x28] sm:$0xff]
        %v1472 = vld [vmem:[%s1465 + $0x30] sm:$0xff]
        %v1473 = vld [vmem:[%s1465 + $0x38] sm:$0xff]
        %v1474 = vld [vmem:[%s1465 + $0x40] sm:$0xff]
        %v1475 = vld [vmem:[%s1465 + $0x48] sm:$0xff]
        %v1476 = vld [vmem:[%s1465 + $0x50] sm:$0xff]
        %v1477 = vld [vmem:[%s1465 + $0x58] sm:$0xff]
        %v1478 = vld [vmem:[%s1465 + $0x60] sm:$0xff]
        %v1479 = vld [vmem:[%s1465 + $0x68] sm:$0xff]
        %v1480 = vld [vmem:[%s1465 + $0x70] sm:$0xff]
        %v1481 = vld [vmem:[%s1465 + $0x78] sm:$0xff]
        %v1482 = vld [vmem:[%s1465 + $0x80] sm:$0xff]
        %v1483 = vld [vmem:[%s1465 + $0x88] sm:$0xff]
        %v1484 = vld [vmem:[%s1465 + $0x90] sm:$0xff]
        %v1485 = vld [vmem:[%s1465 + $0x98] sm:$0xff]
        %v1486 = vld [vmem:[%s1465 + $0xa0] sm:$0xff]
        %v1487 = vld [vmem:[%s1465 + $0xa8] sm:$0xff]
        %v1488 = vld [vmem:[%s1465 + $0xb0] sm:$0xff]
        %v1489 = vld [vmem:[%s1465 + $0xb8] sm:$0xff]
        %v1490 = vld [vmem:[%s1465 + $0xc0] sm:$0xff]
        %v1491 = vld [vmem:[%s1465 + $0xc8] sm:$0xff]
        %v1492 = vld [vmem:[%s1465 + $0xd0] sm:$0xff]
        %v1493 = vld [vmem:[%s1465 + $0xd8] sm:$0xff]
        %v1494 = vld [vmem:[%s1465 + $0xe0] sm:$0xff]
        %v1495 = vld [vmem:[%s1465 + $0xe8] sm:$0xff]
        %v1496 = vld [vmem:[%s1465 + $0xf0] sm:$0xff]
        %v1497 = vld [vmem:[%s1465 + $0xf8] sm:$0xff]
        %v1498 = vld [vmem:[%s1465 + $0x100] sm:$0xff]
        %v1499 = vld [vmem:[%s1465 + $0x108] sm:$0xff]
        %v1500 = vld [vmem:[%s1465 + $0x110] sm:$0xff]
        %v1501 = vld [vmem:[%s1465 + $0x118] sm:$0xff]
        %v1502 = vld [vmem:[%s1465 + $0x120] sm:$0xff]
        %v1503 = vld [vmem:[%s1465 + $0x128] sm:$0xff]
        %v1504 = vld [vmem:[%s1465 + $0x130] sm:$0xff]
        %v1505 = vld [vmem:[%s1465 + $0x138] sm:$0xff]
        %v1506 = vld [vmem:[%s1465 + $0x140] sm:$0x3]
        %v1507 = vld [vmem:[%s1465 + $0x148] sm:$0x3]
        %v1508 = vrot.slane %v1161, 4
        %v1509 = vrot.slane %v1163, 4
        %v1510 = vsel %vm945, %v1508, %v1509
        %v1511 = vrot.slane %v1162, 4
        %v1512 = vrot.slane %v1164, 4
        %v1513 = vsel %vm945, %v1511, %v1512
        %v1514 = vrot.slane %v1165, 4
        %v1515 = vsel %vm945, %v1509, %v1514
        %v1516 = vrot.slane %v1166, 4
        %v1517 = vsel %vm945, %v1512, %v1516
        %v1521 = vsel %vm1273, %v1513, 0
        %v1523 = vsel %vm1273, %v1517, 0
        %v1525 = vsel %vm1273, %v1516, 0
        %v1528 = vsel %vm1280, %v1506, 0
        %v1531 = vsel %vm1280, %v1507, 0
        %1533 = vmatprep.subr.mxu0 %v1467
        %1534 = vmatpush1.msra.mxu0 %v1466
        %1535 = vmatprep.subr.mxu0 %v1469
        %1536 = vmatpush1.msra.mxu0 %v1468
        %1537 = vmatprep.subr.mxu0 %v1471
        %1538 = vmatpush1.msra.mxu0 %v1470
        %1539 = vmatprep.subr.mxu0 %v1473
        %1540 = vmatpush1.msra.mxu0 %v1472
        %1541 = vmatprep.subr.mxu0 %v1475
        %1542 = vmatpush1.msra.mxu0 %v1474
        %1543 = vmatprep.subr.mxu0 %v1477
        %1544 = vmatpush1.msra.mxu0 %v1476
        %1545 = vmatprep.subr.mxu0 %v1479
        %1546 = vmatpush1.msra.mxu0 %v1478
        %1547 = vmatprep.subr.mxu0 %v1481
        %1548 = vmatpush1.msra.mxu0 %v1480
        %1549 = vmatprep.subr.mxu0 %v1483
        %1550 = vmatpush1.msra.mxu0 %v1482
        %1551 = vmatprep.subr.mxu0 %v1485
        %1552 = vmatpush1.msra.mxu0 %v1484
        %1553 = vmatprep.subr.mxu0 %v1487
        %1554 = vmatpush1.msra.mxu0 %v1486
        %1555 = vmatprep.subr.mxu0 %v1489
        %1556 = vmatpush1.msra.mxu0 %v1488
        %1557 = vmatprep.subr.mxu0 %v1491
        %1558 = vmatpush1.msra.mxu0 %v1490
        %1559 = vmatprep.subr.mxu0 %v1493
        %1560 = vmatpush1.msra.mxu0 %v1492
        %1561 = vmatprep.subr.mxu0 %v1495
        %1562 = vmatpush1.msra.mxu0 %v1494
        %1563 = vmatprep.subr.mxu0 %v1497
        %1564 = vmatpush1.msra.mxu0 %v1496
        %1565 = vmatprep.subr.mxu0 %v1499
        %1566 = vmatpush1.msra.mxu0 %v1498
        %1567 = vmatprep.subr.mxu0 %v1501
        %1568 = vmatpush1.msra.mxu0 %v1500
        %1569 = vmatprep.subr.mxu0 %v1503
        %1570 = vmatpush1.msra.mxu0 %v1502
        %1571 = vmatprep.subr.mxu0 %v1505
        %1572 = vmatpush1.msra.mxu0 %v1504
        %1573 = vmatprep.subr.mxu0 %v1531
        %1574 = vmatpush1.msra.mxu0 %v1528
        %1575 = vmatprep.subr.mxu0 0.0
        %1576 = vmatpush1.msra.mxu0 0.0
        %1577 = vmatprep.subr.mxu0 0.0
        %1578 = vmatpush1.msra.mxu0 0.0
        %1579 = vmatprep.subr.mxu0 0.0
        %1580 = vmatpush1.msra.mxu0 0.0
        %1581 = vmatprep.subr.mxu0 0.0
        %1582 = vmatpush1.msra.mxu0 0.0
        %1583 = vmatprep.subr.mxu0 0.0
        %1584 = vmatpush1.msra.mxu0 0.0
        %1585 = vmatprep.subr.mxu0 0.0
        %1586 = vmatpush1.msra.mxu0 0.0
        %1587 = vmatprep.subr.mxu0 0.0
        %1588 = vmatpush1.msra.mxu0 0.0
        %1589 = vmatprep.subr.mxu0 0.0
        %1590 = vmatpush1.msra.mxu0 0.0
        %1591 = vmatprep.subr.mxu0 0.0
        %1592 = vmatpush1.msra.mxu0 0.0
        %1593 = vmatprep.subr.mxu0 0.0
        %1594 = vmatpush1.msra.mxu0 0.0
        %1595 = vmatprep.subr.mxu0 0.0
        %1596 = vmatpush1.msra.mxu0 0.0
        %1597 = vmatprep.mubr.f32.mxu0 %v1521
        %1598 = vmatmul.mubr.f32.gmra.mrb[0].mxu0 %v1510
        %v1599 = vpop.f32.mrb[0].mxu0
        %v1600 = vadd.f32 0.0, %v1599
        %v1601 = vpop.f32.mrb[0].mxu0
        %v1602 = vadd.f32 0.0, %v1601
        %1603 = vmatprep.mubr.f32.mxu0 %v1523
        %1604 = vmatmul.mubr.f32.gmra.mrb[0].mxu0 %v1515
        %v1605 = vpop.f32.mrb[0].mxu0
        %v1606 = vadd.f32 0.0, %v1605
        %v1607 = vpop.f32.mrb[0].mxu0
        %v1608 = vadd.f32 0.0, %v1607
        %1609 = vmatprep.mubr.f32.mxu0 %v1525
        %1610 = vmatmul.mubr.f32.gmra.mrb[0].mxu0 %v1514
        %v1611 = vpop.f32.mrb[0].mxu0
        %v1612 = vadd.f32 0.0, %v1611
        %v1613 = vpop.f32.mrb[0].mxu0
        %v1614 = vadd.f32 0.0, %v1613
        %1615 = vdwg.mxu0
        %v1616 = vadd.f32 %v1449, %v1600
        %v1617 = vadd.f32 %v1451, %v1602
        %v1618 = vadd.f32 %v1455, %v1606
        %v1619 = vadd.f32 %v1457, %v1608
        %v1620 = vadd.f32 %v1461, %v1612
        %v1621 = vadd.f32 %v1463, %v1614
        %s1622 = scalar_lea.vmem %s3, 1008
        %v1623 = vld [vmem:[%s1622] sm:$0xff]
        %v1624 = vld [vmem:[%s1622 + $0x8] sm:$0xff]
        %v1625 = vld [vmem:[%s1622 + $0x10] sm:$0xff]
        %v1626 = vld [vmem:[%s1622 + $0x18] sm:$0xff]
        %v1627 = vld [vmem:[%s1622 + $0x20] sm:$0xff]
        %v1628 = vld [vmem:[%s1622 + $0x28] sm:$0xff]
        %v1629 = vld [vmem:[%s1622 + $0x30] sm:$0xff]
        %v1630 = vld [vmem:[%s1622 + $0x38] sm:$0xff]
        %v1631 = vld [vmem:[%s1622 + $0x40] sm:$0xff]
        %v1632 = vld [vmem:[%s1622 + $0x48] sm:$0xff]
        %v1633 = vld [vmem:[%s1622 + $0x50] sm:$0xff]
        %v1634 = vld [vmem:[%s1622 + $0x58] sm:$0xff]
        %v1635 = vld [vmem:[%s1622 + $0x60] sm:$0xff]
        %v1636 = vld [vmem:[%s1622 + $0x68] sm:$0xff]
        %v1637 = vld [vmem:[%s1622 + $0x70] sm:$0xff]
        %v1638 = vld [vmem:[%s1622 + $0x78] sm:$0xff]
        %v1639 = vld [vmem:[%s1622 + $0x80] sm:$0xff]
        %v1640 = vld [vmem:[%s1622 + $0x88] sm:$0xff]
        %v1641 = vld [vmem:[%s1622 + $0x90] sm:$0xff]
        %v1642 = vld [vmem:[%s1622 + $0x98] sm:$0xff]
        %v1643 = vld [vmem:[%s1622 + $0xa0] sm:$0xff]
        %v1644 = vld [vmem:[%s1622 + $0xa8] sm:$0xff]
        %v1645 = vld [vmem:[%s1622 + $0xb0] sm:$0xff]
        %v1646 = vld [vmem:[%s1622 + $0xb8] sm:$0xff]
        %v1647 = vld [vmem:[%s1622 + $0xc0] sm:$0xff]
        %v1648 = vld [vmem:[%s1622 + $0xc8] sm:$0xff]
        %v1649 = vld [vmem:[%s1622 + $0xd0] sm:$0xff]
        %v1650 = vld [vmem:[%s1622 + $0xd8] sm:$0xff]
        %v1651 = vld [vmem:[%s1622 + $0xe0] sm:$0xff]
        %v1652 = vld [vmem:[%s1622 + $0xe8] sm:$0xff]
        %v1653 = vld [vmem:[%s1622 + $0xf0] sm:$0xff]
        %v1654 = vld [vmem:[%s1622 + $0xf8] sm:$0xff]
        %v1655 = vld [vmem:[%s1622 + $0x100] sm:$0xff]
        %v1656 = vld [vmem:[%s1622 + $0x108] sm:$0xff]
        %v1657 = vld [vmem:[%s1622 + $0x110] sm:$0xff]
        %v1658 = vld [vmem:[%s1622 + $0x118] sm:$0xff]
        %v1659 = vld [vmem:[%s1622 + $0x120] sm:$0xff]
        %v1660 = vld [vmem:[%s1622 + $0x128] sm:$0xff]
        %v1661 = vld [vmem:[%s1622 + $0x130] sm:$0xff]
        %v1662 = vld [vmem:[%s1622 + $0x138] sm:$0xff]
        %v1663 = vld [vmem:[%s1622 + $0x140] sm:$0x3]
        %v1664 = vld [vmem:[%s1622 + $0x148] sm:$0x3]
        %v1667 = vrot.slane %v1161, 6
        %v1668 = vrot.slane %v1163, 6
        %v1669 = vsel %vm1280, %v1667, %v1668
        %v1670 = vrot.slane %v1162, 6
        %v1671 = vrot.slane %v1164, 6
        %v1672 = vsel %vm1280, %v1670, %v1671
        %v1673 = vrot.slane %v1165, 6
        %v1674 = vsel %vm1280, %v1668, %v1673
        %v1675 = vrot.slane %v1166, 6
        %v1676 = vsel %vm1280, %v1671, %v1675
        %v1677 = vrot.slane %v1167, 6
        %v1678 = vsel %vm1280, %v1673, %v1677
        %v1679 = vrot.slane %v1168, 6
        %v1680 = vsel %vm1280, %v1675, %v1679
        %v1684 = vsel %vm1273, %v1672, 0
        %v1686 = vsel %vm1273, %v1676, 0
        %v1688 = vsel %vm1273, %v1680, 0
        %v1691 = vsel %vm1280, %v1663, 0
        %v1694 = vsel %vm1280, %v1664, 0
        %1696 = vmatprep.subr.mxu0 %v1624
        %1697 = vmatpush1.msra.mxu0 %v1623
        %1698 = vmatprep.subr.mxu0 %v1626
        %1699 = vmatpush1.msra.mxu0 %v1625
        %1700 = vmatprep.subr.mxu0 %v1628
        %1701 = vmatpush1.msra.mxu0 %v1627
        %1702 = vmatprep.subr.mxu0 %v1630
        %1703 = vmatpush1.msra.mxu0 %v1629
        %1704 = vmatprep.subr.mxu0 %v1632
        %1705 = vmatpush1.msra.mxu0 %v1631
        %1706 = vmatprep.subr.mxu0 %v1634
        %1707 = vmatpush1.msra.mxu0 %v1633
        %1708 = vmatprep.subr.mxu0 %v1636
        %1709 = vmatpush1.msra.mxu0 %v1635
        %1710 = vmatprep.subr.mxu0 %v1638
        %1711 = vmatpush1.msra.mxu0 %v1637
        %1712 = vmatprep.subr.mxu0 %v1640
        %1713 = vmatpush1.msra.mxu0 %v1639
        %1714 = vmatprep.subr.mxu0 %v1642
        %1715 = vmatpush1.msra.mxu0 %v1641
        %1716 = vmatprep.subr.mxu0 %v1644
        %1717 = vmatpush1.msra.mxu0 %v1643
        %1718 = vmatprep.subr.mxu0 %v1646
        %1719 = vmatpush1.msra.mxu0 %v1645
        %1720 = vmatprep.subr.mxu0 %v1648
        %1721 = vmatpush1.msra.mxu0 %v1647
        %1722 = vmatprep.subr.mxu0 %v1650
        %1723 = vmatpush1.msra.mxu0 %v1649
        %1724 = vmatprep.subr.mxu0 %v1652
        %1725 = vmatpush1.msra.mxu0 %v1651
        %1726 = vmatprep.subr.mxu0 %v1654
        %1727 = vmatpush1.msra.mxu0 %v1653
        %1728 = vmatprep.subr.mxu0 %v1656
        %1729 = vmatpush1.msra.mxu0 %v1655
        %1730 = vmatprep.subr.mxu0 %v1658
        %1731 = vmatpush1.msra.mxu0 %v1657
        %1732 = vmatprep.subr.mxu0 %v1660
        %1733 = vmatpush1.msra.mxu0 %v1659
        %1734 = vmatprep.subr.mxu0 %v1662
        %1735 = vmatpush1.msra.mxu0 %v1661
        %1736 = vmatprep.subr.mxu0 %v1694
        %1737 = vmatpush1.msra.mxu0 %v1691
        %1738 = vmatprep.subr.mxu0 0.0
        %1739 = vmatpush1.msra.mxu0 0.0
        %1740 = vmatprep.subr.mxu0 0.0
        %1741 = vmatpush1.msra.mxu0 0.0
        %1742 = vmatprep.subr.mxu0 0.0
        %1743 = vmatpush1.msra.mxu0 0.0
        %1744 = vmatprep.subr.mxu0 0.0
        %1745 = vmatpush1.msra.mxu0 0.0
        %1746 = vmatprep.subr.mxu0 0.0
        %1747 = vmatpush1.msra.mxu0 0.0
        %1748 = vmatprep.subr.mxu0 0.0
        %1749 = vmatpush1.msra.mxu0 0.0
        %1750 = vmatprep.subr.mxu0 0.0
        %1751 = vmatpush1.msra.mxu0 0.0
        %1752 = vmatprep.subr.mxu0 0.0
        %1753 = vmatpush1.msra.mxu0 0.0
        %1754 = vmatprep.subr.mxu0 0.0
        %1755 = vmatpush1.msra.mxu0 0.0
        %1756 = vmatprep.subr.mxu0 0.0
        %1757 = vmatpush1.msra.mxu0 0.0
        %1758 = vmatprep.subr.mxu0 0.0
        %1759 = vmatpush1.msra.mxu0 0.0
        %1760 = vmatprep.mubr.f32.mxu0 %v1684
        %1761 = vmatmul.mubr.f32.gmra.mrb[0].mxu0 %v1669
        %v1762 = vpop.f32.mrb[0].mxu0
        %v1763 = vadd.f32 0.0, %v1762
        %v1764 = vpop.f32.mrb[0].mxu0
        %v1765 = vadd.f32 0.0, %v1764
        %1766 = vmatprep.mubr.f32.mxu0 %v1686
        %1767 = vmatmul.mubr.f32.gmra.mrb[0].mxu0 %v1674
        %v1768 = vpop.f32.mrb[0].mxu0
        %v1769 = vadd.f32 0.0, %v1768
        %v1770 = vpop.f32.mrb[0].mxu0
        %v1771 = vadd.f32 0.0, %v1770
        %1772 = vmatprep.mubr.f32.mxu0 %v1688
        %1773 = vmatmul.mubr.f32.gmra.mrb[0].mxu0 %v1678
        %v1774 = vpop.f32.mrb[0].mxu0
        %v1775 = vadd.f32 0.0, %v1774
        %v1776 = vpop.f32.mrb[0].mxu0
        %v1777 = vadd.f32 0.0, %v1776
        %1778 = vdwg.mxu0
        %v1779 = vadd.f32 %v1616, %v1763
        %v1780 = vadd.f32 %v1617, %v1765
        %v1781 = vadd.f32 %v1618, %v1769
        %v1782 = vadd.f32 %v1619, %v1771
        %v1783 = vadd.f32 %v1620, %v1775
        %v1784 = vadd.f32 %v1621, %v1777
        %s1785 = scalar_lea.vmem %s3, 1344
        %v1786 = vld [vmem:[%s1785] sm:$0xff]
        %v1787 = vld [vmem:[%s1785 + $0x8] sm:$0xff]
        %v1788 = vld [vmem:[%s1785 + $0x10] sm:$0xff]
        %v1789 = vld [vmem:[%s1785 + $0x18] sm:$0xff]
        %v1790 = vld [vmem:[%s1785 + $0x20] sm:$0xff]
        %v1791 = vld [vmem:[%s1785 + $0x28] sm:$0xff]
        %v1792 = vld [vmem:[%s1785 + $0x30] sm:$0xff]
        %v1793 = vld [vmem:[%s1785 + $0x38] sm:$0xff]
        %v1794 = vld [vmem:[%s1785 + $0x40] sm:$0xff]
        %v1795 = vld [vmem:[%s1785 + $0x48] sm:$0xff]
        %v1796 = vld [vmem:[%s1785 + $0x50] sm:$0xff]
        %v1797 = vld [vmem:[%s1785 + $0x58] sm:$0xff]
        %v1798 = vld [vmem:[%s1785 + $0x60] sm:$0xff]
        %v1799 = vld [vmem:[%s1785 + $0x68] sm:$0xff]
        %v1800 = vld [vmem:[%s1785 + $0x70] sm:$0xff]
        %v1801 = vld [vmem:[%s1785 + $0x78] sm:$0xff]
        %v1802 = vld [vmem:[%s1785 + $0x80] sm:$0xff]
        %v1803 = vld [vmem:[%s1785 + $0x88] sm:$0xff]
        %v1804 = vld [vmem:[%s1785 + $0x90] sm:$0xff]
        %v1805 = vld [vmem:[%s1785 + $0x98] sm:$0xff]
        %v1806 = vld [vmem:[%s1785 + $0xa0] sm:$0xff]
        %v1807 = vld [vmem:[%s1785 + $0xa8] sm:$0xff]
        %v1808 = vld [vmem:[%s1785 + $0xb0] sm:$0xff]
        %v1809 = vld [vmem:[%s1785 + $0xb8] sm:$0xff]
        %v1810 = vld [vmem:[%s1785 + $0xc0] sm:$0xff]
        %v1811 = vld [vmem:[%s1785 + $0xc8] sm:$0xff]
        %v1812 = vld [vmem:[%s1785 + $0xd0] sm:$0xff]
        %v1813 = vld [vmem:[%s1785 + $0xd8] sm:$0xff]
        %v1814 = vld [vmem:[%s1785 + $0xe0] sm:$0xff]
        %v1815 = vld [vmem:[%s1785 + $0xe8] sm:$0xff]
        %v1816 = vld [vmem:[%s1785 + $0xf0] sm:$0xff]
        %v1817 = vld [vmem:[%s1785 + $0xf8] sm:$0xff]
        %v1818 = vld [vmem:[%s1785 + $0x100] sm:$0xff]
        %v1819 = vld [vmem:[%s1785 + $0x108] sm:$0xff]
        %v1820 = vld [vmem:[%s1785 + $0x110] sm:$0xff]
        %v1821 = vld [vmem:[%s1785 + $0x118] sm:$0xff]
        %v1822 = vld [vmem:[%s1785 + $0x120] sm:$0xff]
        %v1823 = vld [vmem:[%s1785 + $0x128] sm:$0xff]
        %v1824 = vld [vmem:[%s1785 + $0x130] sm:$0xff]
        %v1825 = vld [vmem:[%s1785 + $0x138] sm:$0xff]
        %v1826 = vld [vmem:[%s1785 + $0x140] sm:$0x3]
        %v1827 = vld [vmem:[%s1785 + $0x148] sm:$0x3]
        %v1828 = vsel %vm1273, %v1168, 0
        %v1831 = vsel %vm1280, %v1826, 0
        %v1834 = vsel %vm1280, %v1827, 0
        %1836 = vmatprep.subr.mxu0 %v1787
        %1837 = vmatpush1.msra.mxu0 %v1786
        %1838 = vmatprep.subr.mxu0 %v1789
        %1839 = vmatpush1.msra.mxu0 %v1788
        %1840 = vmatprep.subr.mxu0 %v1791
        %1841 = vmatpush1.msra.mxu0 %v1790
        %1842 = vmatprep.subr.mxu0 %v1793
        %1843 = vmatpush1.msra.mxu0 %v1792
        %1844 = vmatprep.subr.mxu0 %v1795
        %1845 = vmatpush1.msra.mxu0 %v1794
        %1846 = vmatprep.subr.mxu0 %v1797
        %1847 = vmatpush1.msra.mxu0 %v1796
        %1848 = vmatprep.subr.mxu0 %v1799
        %1849 = vmatpush1.msra.mxu0 %v1798
        %1850 = vmatprep.subr.mxu0 %v1801
        %1851 = vmatpush1.msra.mxu0 %v1800
        %1852 = vmatprep.subr.mxu0 %v1803
        %1853 = vmatpush1.msra.mxu0 %v1802
        %1854 = vmatprep.subr.mxu0 %v1805
        %1855 = vmatpush1.msra.mxu0 %v1804
        %1856 = vmatprep.subr.mxu0 %v1807
        %1857 = vmatpush1.msra.mxu0 %v1806
        %1858 = vmatprep.subr.mxu0 %v1809
        %1859 = vmatpush1.msra.mxu0 %v1808
        %1860 = vmatprep.subr.mxu0 %v1811
        %1861 = vmatpush1.msra.mxu0 %v1810
        %1862 = vmatprep.subr.mxu0 %v1813
        %1863 = vmatpush1.msra.mxu0 %v1812
        %1864 = vmatprep.subr.mxu0 %v1815
        %1865 = vmatpush1.msra.mxu0 %v1814
        %1866 = vmatprep.subr.mxu0 %v1817
        %1867 = vmatpush1.msra.mxu0 %v1816
        %1868 = vmatprep.subr.mxu0 %v1819
        %1869 = vmatpush1.msra.mxu0 %v1818
        %1870 = vmatprep.subr.mxu0 %v1821
        %1871 = vmatpush1.msra.mxu0 %v1820
        %1872 = vmatprep.subr.mxu0 %v1823
        %1873 = vmatpush1.msra.mxu0 %v1822
        %1874 = vmatprep.subr.mxu0 %v1825
        %1875 = vmatpush1.msra.mxu0 %v1824
        %1876 = vmatprep.subr.mxu0 %v1834
        %1877 = vmatpush1.msra.mxu0 %v1831
        %1878 = vmatprep.subr.mxu0 0.0
        %1879 = vmatpush1.msra.mxu0 0.0
        %1880 = vmatprep.subr.mxu0 0.0
        %1881 = vmatpush1.msra.mxu0 0.0
        %1882 = vmatprep.subr.mxu0 0.0
        %1883 = vmatpush1.msra.mxu0 0.0
        %1884 = vmatprep.subr.mxu0 0.0
        %1885 = vmatpush1.msra.mxu0 0.0
        %1886 = vmatprep.subr.mxu0 0.0
        %1887 = vmatpush1.msra.mxu0 0.0
        %1888 = vmatprep.subr.mxu0 0.0
        %1889 = vmatpush1.msra.mxu0 0.0
        %1890 = vmatprep.subr.mxu0 0.0
        %1891 = vmatpush1.msra.mxu0 0.0
        %1892 = vmatprep.subr.mxu0 0.0
        %1893 = vmatpush1.msra.mxu0 0.0
        %1894 = vmatprep.subr.mxu0 0.0
        %1895 = vmatpush1.msra.mxu0 0.0
        %1896 = vmatprep.subr.mxu0 0.0
        %1897 = vmatpush1.msra.mxu0 0.0
        %1898 = vmatprep.subr.mxu0 0.0
        %1899 = vmatpush1.msra.mxu0 0.0
        %1900 = vmatprep.mubr.f32.mxu0 %v1372
        %1901 = vmatmul.mubr.f32.gmra.mrb[0].mxu0 %v1163
        %v1902 = vpop.f32.mrb[0].mxu0
        %v1903 = vadd.f32 0.0, %v1902
        %v1904 = vpop.f32.mrb[0].mxu0
        %v1905 = vadd.f32 0.0, %v1904
        %1906 = vmatprep.mubr.f32.mxu0 %v1374
        %1907 = vmatmul.mubr.f32.gmra.mrb[0].mxu0 %v1165
        %v1908 = vpop.f32.mrb[0].mxu0
        %v1909 = vadd.f32 0.0, %v1908
        %v1910 = vpop.f32.mrb[0].mxu0
        %v1911 = vadd.f32 0.0, %v1910
        %1912 = vmatprep.mubr.f32.mxu0 %v1828
        %1913 = vmatmul.mubr.f32.gmra.mrb[0].mxu0 %v1167
        %v1914 = vpop.f32.mrb[0].mxu0
        %v1915 = vadd.f32 0.0, %v1914
        %v1916 = vpop.f32.mrb[0].mxu0
        %v1917 = vadd.f32 0.0, %v1916
        %1918 = vdwg.mxu0
        %v1919 = vadd.f32 %v1779, %v1903
        %v1920 = vadd.f32 %v1780, %v1905
        %v1921 = vadd.f32 %v1781, %v1909
        %v1922 = vadd.f32 %v1782, %v1911
        %v1923 = vadd.f32 %v1783, %v1915
        %v1924 = vadd.f32 %v1784, %v1917
        %v1925 = vld [vmem:[%s4] sm:$0x3]
        %v1927 = vlaneseq
        %v1928 = vshrl.u32 %v1927, 7
        %v1929 = vsub.s32 0, %v1928
        %v1930 = vrot.slane %v1925, %v1929
        %v1931 = vlaneseq
        %v1932 = vshrl.u32 %v1931, 7
        %v1933 = vsub.s32 1, %v1932
        %v1934 = vrot.slane %v1925, %v1933
        %v1937 = vadd.f32 %v1919, %v1930
        %v1938 = vadd.f32 %v1920, %v1934
        %v1939 = vadd.f32 %v1921, %v1930
        %v1940 = vadd.f32 %v1922, %v1934
        %v1941 = vadd.f32 %v1923, %v1930
        %v1942 = vadd.f32 %v1924, %v1934
        %v1943 = vmax.f32 %v1937, 0.0
        %v1944 = vmax.f32 %v1938, 0.0
        %v1945 = vmax.f32 %v1939, 0.0
        %v1946 = vmax.f32 %v1940, 0.0
        %v1947 = vmax.f32 %v1941, 0.0
        %v1948 = vmax.f32 %v1942, 0.0
        %v1955 = vrot.slane %v1943, 2
        %v1956 = vrot.slane %v1945, 2
        %v1957 = vsel %vm669, %v1955, %v1956
        %v1958 = vrot.slane %v1944, 2
        %v1959 = vrot.slane %v1946, 2
        %v1960 = vsel %vm669, %v1958, %v1959
        %v1961 = vrot.slane %v1947, 2
        %v1962 = vsel %vm669, %v1956, %v1961
        %v1963 = vrot.slane %v1948, 2
        %v1964 = vsel %vm669, %v1959, %v1963
        %v1971 = vmax.f32 %v1943, %v1957
        %v1972 = vmax.f32 %v1944, %v1960
        %v1973 = vmax.f32 %v1945, %v1962
        %v1974 = vmax.f32 %v1946, %v1964
        %v1975 = vmax.f32 %v1947, %v1961
        %v1976 = vmax.f32 %v1948, %v1963
        %1983 = vrot.lane.b32.xlu0 %v1971, 112
        %v1984 = vpop.permute.xlu0 %1983
        %1985 = vrot.lane.b32.xlu0 %v1972, 112
        %v1986 = vpop.permute.xlu0 %1985
        %1987 = vrot.lane.b32.xlu0 %v1973, 112
        %v1988 = vpop.permute.xlu0 %1987
        %1989 = vrot.lane.b32.xlu0 %v1974, 112
        %v1990 = vpop.permute.xlu0 %1989
        %1991 = vrot.lane.b32.xlu0 %v1975, 112
        %v1992 = vpop.permute.xlu0 %1991
        %1993 = vrot.lane.b32.xlu0 %v1976, 112
        %v1994 = vpop.permute.xlu0 %1993
        %vm1995 = vcmask 916480
        %v1996 = vsel %vm1995, %v1984, %v1986
        %v1997 = vsel %vm1995, %v1988, %v1990
        %v1998 = vsel %vm1995, %v1992, %v1994
        %v2005 = vmax.f32 %v1971, %v1996
        %v2006 = vmax.f32 %v1972, %v1986
        %v2007 = vmax.f32 %v1973, %v1997
        %v2008 = vmax.f32 %v1974, %v1990
        %v2009 = vmax.f32 %v1975, %v1998
        %v2010 = vmax.f32 %v1976, %v1994
        %v2011 = vld [vmem:[%s6] sm:$0x1]
        %v2012 = vld [vmem:[%s5] sm:$0xff]
        %v2013 = vld [vmem:[%s5 + $0x8] sm:$0xff]
        %v2014 = vld [vmem:[%s5 + $0x10] sm:$0xff]
        %v2015 = vld [vmem:[%s5 + $0x18] sm:$0xff]
        %v2016 = vld [vmem:[%s5 + $0x20] sm:$0xff]
        %v2017 = vld [vmem:[%s5 + $0x28] sm:$0xff]
        %v2018 = vld [vmem:[%s5 + $0x30] sm:$0xff]
        %v2019 = vld [vmem:[%s5 + $0x38] sm:$0xff]
        %v2020 = vld [vmem:[%s5 + $0x40] sm:$0xff]
        %v2021 = vld [vmem:[%s5 + $0x48] sm:$0xff]
        %v2022 = vld [vmem:[%s5 + $0x50] sm:$0xff]
        %v2023 = vld [vmem:[%s5 + $0x58] sm:$0xff]
        %v2024 = vld [vmem:[%s5 + $0x60] sm:$0xff]
        %v2025 = vld [vmem:[%s5 + $0x68] sm:$0xff]
        %v2026 = vld [vmem:[%s5 + $0x70] sm:$0xff]
        %v2027 = vld [vmem:[%s5 + $0x78] sm:$0xff]
        %v2028 = vld [vmem:[%s5 + $0x80] sm:$0xff]
        %v2029 = vld [vmem:[%s5 + $0x88] sm:$0xff]
        %vm2030 = vcmask 130048
        %v2032 = vsel %vm2030, %v2006, 0
        %2034 = vmatprep.subr.mxu0 0.0
        %2035 = vmatpush1.msra.mxu0 %v2012
        %2036 = vmatprep.subr.mxu0 0.0
        %2037 = vmatpush1.msra.mxu0 %v2013
        %2038 = vmatprep.subr.mxu0 0.0
        %2039 = vmatpush1.msra.mxu0 %v2014
        %2040 = vmatprep.subr.mxu0 0.0
        %2041 = vmatpush1.msra.mxu0 %v2015
        %2042 = vmatprep.subr.mxu0 0.0
        %2043 = vmatpush1.msra.mxu0 %v2016
        %2044 = vmatprep.subr.mxu0 0.0
        %2045 = vmatpush1.msra.mxu0 %v2017
        %2046 = vmatprep.subr.mxu0 0.0
        %2047 = vmatpush1.msra.mxu0 %v2018
        %2048 = vmatprep.subr.mxu0 0.0
        %2049 = vmatpush1.msra.mxu0 %v2019
        %2050 = vmatprep.subr.mxu0 0.0
        %2051 = vmatpush1.msra.mxu0 %v2020
        %2052 = vmatprep.subr.mxu0 0.0
        %2053 = vmatpush1.msra.mxu0 %v2021
        %2054 = vmatprep.subr.mxu0 0.0
        %2055 = vmatpush1.msra.mxu0 %v2022
        %2056 = vmatprep.subr.mxu0 0.0
        %2057 = vmatpush1.msra.mxu0 %v2023
        %2058 = vmatprep.subr.mxu0 0.0
        %2059 = vmatpush1.msra.mxu0 %v2024
        %2060 = vmatprep.subr.mxu0 0.0
        %2061 = vmatpush1.msra.mxu0 %v2025
        %2062 = vmatprep.subr.mxu0 0.0
        %2063 = vmatpush1.msra.mxu0 %v2026
        %2064 = vmatprep.subr.mxu0 0.0
        %2065 = vmatpush1.msra.mxu0 %v2027
        %2066 = vmatprep.subr.mxu0 0.0
        %2067 = vmatpush1.msra.mxu0 %v2028
        %2068 = vmatprep.subr.mxu0 0.0
        %2069 = vmatpush1.msra.mxu0 %v2029
        %2070 = vmatprep.subr.mxu0 0.0
        %2071 = vmatpush1.msra.mxu0 0.0
        %2072 = vmatprep.subr.mxu0 0.0
        %2073 = vmatpush1.msra.mxu0 0.0
        %2074 = vmatprep.subr.mxu0 0.0
        %2075 = vmatpush1.msra.mxu0 0.0
        %2076 = vmatprep.subr.mxu0 0.0
        %2077 = vmatpush1.msra.mxu0 0.0
        %2078 = vmatprep.subr.mxu0 0.0
        %2079 = vmatpush1.msra.mxu0 0.0
        %2080 = vmatprep.subr.mxu0 0.0
        %2081 = vmatpush1.msra.mxu0 0.0
        %2082 = vmatprep.subr.mxu0 0.0
        %2083 = vmatpush1.msra.mxu0 0.0
        %2084 = vmatprep.subr.mxu0 0.0
        %2085 = vmatpush1.msra.mxu0 0.0
        %2086 = vmatprep.subr.mxu0 0.0
        %2087 = vmatpush1.msra.mxu0 0.0
        %2088 = vmatprep.subr.mxu0 0.0
        %2089 = vmatpush1.msra.mxu0 0.0
        %2090 = vmatprep.subr.mxu0 0.0
        %2091 = vmatpush1.msra.mxu0 0.0
        %2092 = vmatprep.subr.mxu0 0.0
        %2093 = vmatpush1.msra.mxu0 0.0
        %2094 = vmatprep.subr.mxu0 0.0
        %2095 = vmatpush1.msra.mxu0 0.0
        %2096 = vmatprep.subr.mxu0 0.0
        %2097 = vmatpush1.msra.mxu0 0.0
        %2098 = vmatprep.mubr.f32.mxu0 %v2032
        %2099 = vmatmul.mubr.f32.gmra.mrb[0].mxu0 %v2005
        %v2100 = vpop.f32.mrb[0].mxu0
        %v2101 = vadd.f32 0.0, %v2100
        %v2102 = vpop.f32.mrb[0].mxu0
        %2103 = vdwg.mxu0
        %v2104 = vadd.f32 %v2011, %v2101
        %s2105 = scalar_lea.vmem %s5, 144
        %v2106 = vld [vmem:[%s2105] sm:$0xff]
        %v2107 = vld [vmem:[%s2105 + $0x8] sm:$0xff]
        %v2108 = vld [vmem:[%s2105 + $0x10] sm:$0xff]
        %v2109 = vld [vmem:[%s2105 + $0x18] sm:$0xff]
        %v2110 = vld [vmem:[%s2105 + $0x20] sm:$0xff]
        %v2111 = vld [vmem:[%s2105 + $0x28] sm:$0xff]
        %v2112 = vld [vmem:[%s2105 + $0x30] sm:$0xff]
        %v2113 = vld [vmem:[%s2105 + $0x38] sm:$0xff]
        %v2114 = vld [vmem:[%s2105 + $0x40] sm:$0xff]
        %v2115 = vld [vmem:[%s2105 + $0x48] sm:$0xff]
        %v2116 = vld [vmem:[%s2105 + $0x50] sm:$0xff]
        %v2117 = vld [vmem:[%s2105 + $0x58] sm:$0xff]
        %v2118 = vld [vmem:[%s2105 + $0x60] sm:$0xff]
        %v2119 = vld [vmem:[%s2105 + $0x68] sm:$0xff]
        %v2120 = vld [vmem:[%s2105 + $0x70] sm:$0xff]
        %v2121 = vld [vmem:[%s2105 + $0x78] sm:$0xff]
        %v2122 = vld [vmem:[%s2105 + $0x80] sm:$0xff]
        %v2123 = vld [vmem:[%s2105 + $0x88] sm:$0xff]
        %v2125 = vrot.slane %v2005, 4
        %v2126 = vrot.slane %v2006, 4
        %v2128 = vsel %vm2030, %v2126, 0
        %2130 = vmatprep.subr.mxu0 0.0
        %2131 = vmatpush1.msra.mxu0 %v2106
        %2132 = vmatprep.subr.mxu0 0.0
        %2133 = vmatpush1.msra.mxu0 %v2107
        %2134 = vmatprep.subr.mxu0 0.0
        %2135 = vmatpush1.msra.mxu0 %v2108
        %2136 = vmatprep.subr.mxu0 0.0
        %2137 = vmatpush1.msra.mxu0 %v2109
        %2138 = vmatprep.subr.mxu0 0.0
        %2139 = vmatpush1.msra.mxu0 %v2110
        %2140 = vmatprep.subr.mxu0 0.0
        %2141 = vmatpush1.msra.mxu0 %v2111
        %2142 = vmatprep.subr.mxu0 0.0
        %2143 = vmatpush1.msra.mxu0 %v2112
        %2144 = vmatprep.subr.mxu0 0.0
        %2145 = vmatpush1.msra.mxu0 %v2113
        %2146 = vmatprep.subr.mxu0 0.0
        %2147 = vmatpush1.msra.mxu0 %v2114
        %2148 = vmatprep.subr.mxu0 0.0
        %2149 = vmatpush1.msra.mxu0 %v2115
        %2150 = vmatprep.subr.mxu0 0.0
        %2151 = vmatpush1.msra.mxu0 %v2116
        %2152 = vmatprep.subr.mxu0 0.0
        %2153 = vmatpush1.msra.mxu0 %v2117
        %2154 = vmatprep.subr.mxu0 0.0
        %2155 = vmatpush1.msra.mxu0 %v2118
        %2156 = vmatprep.subr.mxu0 0.0
        %2157 = vmatpush1.msra.mxu0 %v2119
        %2158 = vmatprep.subr.mxu0 0.0
        %2159 = vmatpush1.msra.mxu0 %v2120
        %2160 = vmatprep.subr.mxu0 0.0
        %2161 = vmatpush1.msra.mxu0 %v2121
        %2162 = vmatprep.subr.mxu0 0.0
        %2163 = vmatpush1.msra.mxu0 %v2122
        %2164 = vmatprep.subr.mxu0 0.0
        %2165 = vmatpush1.msra.mxu0 %v2123
        %2166 = vmatprep.subr.mxu0 0.0
        %2167 = vmatpush1.msra.mxu0 0.0
        %2168 = vmatprep.subr.mxu0 0.0
        %2169 = vmatpush1.msra.mxu0 0.0
        %2170 = vmatprep.subr.mxu0 0.0
        %2171 = vmatpush1.msra.mxu0 0.0
        %2172 = vmatprep.subr.mxu0 0.0
        %2173 = vmatpush1.msra.mxu0 0.0
        %2174 = vmatprep.subr.mxu0 0.0
        %2175 = vmatpush1.msra.mxu0 0.0
        %2176 = vmatprep.subr.mxu0 0.0
        %2177 = vmatpush1.msra.mxu0 0.0
        %2178 = vmatprep.subr.mxu0 0.0
        %2179 = vmatpush1.msra.mxu0 0.0
        %2180 = vmatprep.subr.mxu0 0.0
        %2181 = vmatpush1.msra.mxu0 0.0
        %2182 = vmatprep.subr.mxu0 0.0
        %2183 = vmatpush1.msra.mxu0 0.0
        %2184 = vmatprep.subr.mxu0 0.0
        %2185 = vmatpush1.msra.mxu0 0.0
        %2186 = vmatprep.subr.mxu0 0.0
        %2187 = vmatpush1.msra.mxu0 0.0
        %2188 = vmatprep.subr.mxu0 0.0
        %2189 = vmatpush1.msra.mxu0 0.0
        %2190 = vmatprep.subr.mxu0 0.0
        %2191 = vmatpush1.msra.mxu0 0.0
        %2192 = vmatprep.subr.mxu0 0.0
        %2193 = vmatpush1.msra.mxu0 0.0
        %2194 = vmatprep.mubr.f32.mxu0 %v2128
        %2195 = vmatmul.mubr.f32.gmra.mrb[0].mxu0 %v2125
        %v2196 = vpop.f32.mrb[0].mxu0
        %v2197 = vadd.f32 0.0, %v2196
        %v2198 = vpop.f32.mrb[0].mxu0
        %2199 = vdwg.mxu0
        %v2200 = vadd.f32 %v2104, %v2197
        %s2201 = scalar_lea.vmem %s5, 288
        %v2202 = vld [vmem:[%s2201] sm:$0xff]
        %v2203 = vld [vmem:[%s2201 + $0x8] sm:$0xff]
        %v2204 = vld [vmem:[%s2201 + $0x10] sm:$0xff]
        %v2205 = vld [vmem:[%s2201 + $0x18] sm:$0xff]
        %v2206 = vld [vmem:[%s2201 + $0x20] sm:$0xff]
        %v2207 = vld [vmem:[%s2201 + $0x28] sm:$0xff]
        %v2208 = vld [vmem:[%s2201 + $0x30] sm:$0xff]
        %v2209 = vld [vmem:[%s2201 + $0x38] sm:$0xff]
        %v2210 = vld [vmem:[%s2201 + $0x40] sm:$0xff]
        %v2211 = vld [vmem:[%s2201 + $0x48] sm:$0xff]
        %v2212 = vld [vmem:[%s2201 + $0x50] sm:$0xff]
        %v2213 = vld [vmem:[%s2201 + $0x58] sm:$0xff]
        %v2214 = vld [vmem:[%s2201 + $0x60] sm:$0xff]
        %v2215 = vld [vmem:[%s2201 + $0x68] sm:$0xff]
        %v2216 = vld [vmem:[%s2201 + $0x70] sm:$0xff]
        %v2217 = vld [vmem:[%s2201 + $0x78] sm:$0xff]
        %v2218 = vld [vmem:[%s2201 + $0x80] sm:$0xff]
        %v2219 = vld [vmem:[%s2201 + $0x88] sm:$0xff]
        %v2221 = vsel %vm2030, %v2008, 0
        %2223 = vmatprep.subr.mxu0 0.0
        %2224 = vmatpush1.msra.mxu0 %v2202
        %2225 = vmatprep.subr.mxu0 0.0
        %2226 = vmatpush1.msra.mxu0 %v2203
        %2227 = vmatprep.subr.mxu0 0.0
        %2228 = vmatpush1.msra.mxu0 %v2204
        %2229 = vmatprep.subr.mxu0 0.0
        %2230 = vmatpush1.msra.mxu0 %v2205
        %2231 = vmatprep.subr.mxu0 0.0
        %2232 = vmatpush1.msra.mxu0 %v2206
        %2233 = vmatprep.subr.mxu0 0.0
        %2234 = vmatpush1.msra.mxu0 %v2207
        %2235 = vmatprep.subr.mxu0 0.0
        %2236 = vmatpush1.msra.mxu0 %v2208
        %2237 = vmatprep.subr.mxu0 0.0
        %2238 = vmatpush1.msra.mxu0 %v2209
        %2239 = vmatprep.subr.mxu0 0.0
        %2240 = vmatpush1.msra.mxu0 %v2210
        %2241 = vmatprep.subr.mxu0 0.0
        %2242 = vmatpush1.msra.mxu0 %v2211
        %2243 = vmatprep.subr.mxu0 0.0
        %2244 = vmatpush1.msra.mxu0 %v2212
        %2245 = vmatprep.subr.mxu0 0.0
        %2246 = vmatpush1.msra.mxu0 %v2213
        %2247 = vmatprep.subr.mxu0 0.0
        %2248 = vmatpush1.msra.mxu0 %v2214
        %2249 = vmatprep.subr.mxu0 0.0
        %2250 = vmatpush1.msra.mxu0 %v2215
        %2251 = vmatprep.subr.mxu0 0.0
        %2252 = vmatpush1.msra.mxu0 %v2216
        %2253 = vmatprep.subr.mxu0 0.0
        %2254 = vmatpush1.msra.mxu0 %v2217
        %2255 = vmatprep.subr.mxu0 0.0
        %2256 = vmatpush1.msra.mxu0 %v2218
        %2257 = vmatprep.subr.mxu0 0.0
        %2258 = vmatpush1.msra.mxu0 %v2219
        %2259 = vmatprep.subr.mxu0 0.0
        %2260 = vmatpush1.msra.mxu0 0.0
        %2261 = vmatprep.subr.mxu0 0.0
        %2262 = vmatpush1.msra.mxu0 0.0
        %2263 = vmatprep.subr.mxu0 0.0
        %2264 = vmatpush1.msra.mxu0 0.0
        %2265 = vmatprep.subr.mxu0 0.0
        %2266 = vmatpush1.msra.mxu0 0.0
        %2267 = vmatprep.subr.mxu0 0.0
        %2268 = vmatpush1.msra.mxu0 0.0
        %2269 = vmatprep.subr.mxu0 0.0
        %2270 = vmatpush1.msra.mxu0 0.0
        %2271 = vmatprep.subr.mxu0 0.0
        %2272 = vmatpush1.msra.mxu0 0.0
        %2273 = vmatprep.subr.mxu0 0.0
        %2274 = vmatpush1.msra.mxu0 0.0
        %2275 = vmatprep.subr.mxu0 0.0
        %2276 = vmatpush1.msra.mxu0 0.0
        %2277 = vmatprep.subr.mxu0 0.0
        %2278 = vmatpush1.msra.mxu0 0.0
        %2279 = vmatprep.subr.mxu0 0.0
        %2280 = vmatpush1.msra.mxu0 0.0
        %2281 = vmatprep.subr.mxu0 0.0
        %2282 = vmatpush1.msra.mxu0 0.0
        %2283 = vmatprep.subr.mxu0 0.0
        %2284 = vmatpush1.msra.mxu0 0.0
        %2285 = vmatprep.subr.mxu0 0.0
        %2286 = vmatpush1.msra.mxu0 0.0
        %2287 = vmatprep.mubr.f32.mxu0 %v2221
        %2288 = vmatmul.mubr.f32.gmra.mrb[0].mxu0 %v2007
        %v2289 = vpop.f32.mrb[0].mxu0
        %v2290 = vadd.f32 0.0, %v2289
        %v2291 = vpop.f32.mrb[0].mxu0
        %2292 = vdwg.mxu0
        %v2293 = vadd.f32 %v2200, %v2290
        %s2294 = scalar_lea.vmem %s5, 432
        %v2295 = vld [vmem:[%s2294] sm:$0xff]
        %v2296 = vld [vmem:[%s2294 + $0x8] sm:$0xff]
        %v2297 = vld [vmem:[%s2294 + $0x10] sm:$0xff]
        %v2298 = vld [vmem:[%s2294 + $0x18] sm:$0xff]
        %v2299 = vld [vmem:[%s2294 + $0x20] sm:$0xff]
        %v2300 = vld [vmem:[%s2294 + $0x28] sm:$0xff]
        %v2301 = vld [vmem:[%s2294 + $0x30] sm:$0xff]
        %v2302 = vld [vmem:[%s2294 + $0x38] sm:$0xff]
        %v2303 = vld [vmem:[%s2294 + $0x40] sm:$0xff]
        %v2304 = vld [vmem:[%s2294 + $0x48] sm:$0xff]
        %v2305 = vld [vmem:[%s2294 + $0x50] sm:$0xff]
        %v2306 = vld [vmem:[%s2294 + $0x58] sm:$0xff]
        %v2307 = vld [vmem:[%s2294 + $0x60] sm:$0xff]
        %v2308 = vld [vmem:[%s2294 + $0x68] sm:$0xff]
        %v2309 = vld [vmem:[%s2294 + $0x70] sm:$0xff]
        %v2310 = vld [vmem:[%s2294 + $0x78] sm:$0xff]
        %v2311 = vld [vmem:[%s2294 + $0x80] sm:$0xff]
        %v2312 = vld [vmem:[%s2294 + $0x88] sm:$0xff]
        %v2314 = vrot.slane %v2007, 4
        %v2315 = vrot.slane %v2008, 4
        %v2317 = vsel %vm2030, %v2315, 0
        %2319 = vmatprep.subr.mxu0 0.0
        %2320 = vmatpush1.msra.mxu0 %v2295
        %2321 = vmatprep.subr.mxu0 0.0
        %2322 = vmatpush1.msra.mxu0 %v2296
        %2323 = vmatprep.subr.mxu0 0.0
        %2324 = vmatpush1.msra.mxu0 %v2297
        %2325 = vmatprep.subr.mxu0 0.0
        %2326 = vmatpush1.msra.mxu0 %v2298
        %2327 = vmatprep.subr.mxu0 0.0
        %2328 = vmatpush1.msra.mxu0 %v2299
        %2329 = vmatprep.subr.mxu0 0.0
        %2330 = vmatpush1.msra.mxu0 %v2300
        %2331 = vmatprep.subr.mxu0 0.0
        %2332 = vmatpush1.msra.mxu0 %v2301
        %2333 = vmatprep.subr.mxu0 0.0
        %2334 = vmatpush1.msra.mxu0 %v2302
        %2335 = vmatprep.subr.mxu0 0.0
        %2336 = vmatpush1.msra.mxu0 %v2303
        %2337 = vmatprep.subr.mxu0 0.0
        %2338 = vmatpush1.msra.mxu0 %v2304
        %2339 = vmatprep.subr.mxu0 0.0
        %2340 = vmatpush1.msra.mxu0 %v2305
        %2341 = vmatprep.subr.mxu0 0.0
        %2342 = vmatpush1.msra.mxu0 %v2306
        %2343 = vmatprep.subr.mxu0 0.0
        %2344 = vmatpush1.msra.mxu0 %v2307
        %2345 = vmatprep.subr.mxu0 0.0
        %2346 = vmatpush1.msra.mxu0 %v2308
        %2347 = vmatprep.subr.mxu0 0.0
        %2348 = vmatpush1.msra.mxu0 %v2309
        %2349 = vmatprep.subr.mxu0 0.0
        %2350 = vmatpush1.msra.mxu0 %v2310
        %2351 = vmatprep.subr.mxu0 0.0
        %2352 = vmatpush1.msra.mxu0 %v2311
        %2353 = vmatprep.subr.mxu0 0.0
        %2354 = vmatpush1.msra.mxu0 %v2312
        %2355 = vmatprep.subr.mxu0 0.0
        %2356 = vmatpush1.msra.mxu0 0.0
        %2357 = vmatprep.subr.mxu0 0.0
        %2358 = vmatpush1.msra.mxu0 0.0
        %2359 = vmatprep.subr.mxu0 0.0
        %2360 = vmatpush1.msra.mxu0 0.0
        %2361 = vmatprep.subr.mxu0 0.0
        %2362 = vmatpush1.msra.mxu0 0.0
        %2363 = vmatprep.subr.mxu0 0.0
        %2364 = vmatpush1.msra.mxu0 0.0
        %2365 = vmatprep.subr.mxu0 0.0
        %2366 = vmatpush1.msra.mxu0 0.0
        %2367 = vmatprep.subr.mxu0 0.0
        %2368 = vmatpush1.msra.mxu0 0.0
        %2369 = vmatprep.subr.mxu0 0.0
        %2370 = vmatpush1.msra.mxu0 0.0
        %2371 = vmatprep.subr.mxu0 0.0
        %2372 = vmatpush1.msra.mxu0 0.0
        %2373 = vmatprep.subr.mxu0 0.0
        %2374 = vmatpush1.msra.mxu0 0.0
        %2375 = vmatprep.subr.mxu0 0.0
        %2376 = vmatpush1.msra.mxu0 0.0
        %2377 = vmatprep.subr.mxu0 0.0
        %2378 = vmatpush1.msra.mxu0 0.0
        %2379 = vmatprep.subr.mxu0 0.0
        %2380 = vmatpush1.msra.mxu0 0.0
        %2381 = vmatprep.subr.mxu0 0.0
        %2382 = vmatpush1.msra.mxu0 0.0
        %2383 = vmatprep.mubr.f32.mxu0 %v2317
        %2384 = vmatmul.mubr.f32.gmra.mrb[0].mxu0 %v2314
        %v2385 = vpop.f32.mrb[0].mxu0
        %v2386 = vadd.f32 0.0, %v2385
        %v2387 = vpop.f32.mrb[0].mxu0
        %2388 = vdwg.mxu0
        %v2389 = vadd.f32 %v2293, %v2386
        %s2390 = scalar_lea.vmem %s5, 576
        %v2391 = vld [vmem:[%s2390] sm:$0xff]
        %v2392 = vld [vmem:[%s2390 + $0x8] sm:$0xff]
        %v2393 = vld [vmem:[%s2390 + $0x10] sm:$0xff]
        %v2394 = vld [vmem:[%s2390 + $0x18] sm:$0xff]
        %v2395 = vld [vmem:[%s2390 + $0x20] sm:$0xff]
        %v2396 = vld [vmem:[%s2390 + $0x28] sm:$0xff]
        %v2397 = vld [vmem:[%s2390 + $0x30] sm:$0xff]
        %v2398 = vld [vmem:[%s2390 + $0x38] sm:$0xff]
        %v2399 = vld [vmem:[%s2390 + $0x40] sm:$0xff]
        %v2400 = vld [vmem:[%s2390 + $0x48] sm:$0xff]
        %v2401 = vld [vmem:[%s2390 + $0x50] sm:$0xff]
        %v2402 = vld [vmem:[%s2390 + $0x58] sm:$0xff]
        %v2403 = vld [vmem:[%s2390 + $0x60] sm:$0xff]
        %v2404 = vld [vmem:[%s2390 + $0x68] sm:$0xff]
        %v2405 = vld [vmem:[%s2390 + $0x70] sm:$0xff]
        %v2406 = vld [vmem:[%s2390 + $0x78] sm:$0xff]
        %v2407 = vld [vmem:[%s2390 + $0x80] sm:$0xff]
        %v2408 = vld [vmem:[%s2390 + $0x88] sm:$0xff]
        %v2410 = vsel %vm2030, %v2010, 0
        %2412 = vmatprep.subr.mxu0 0.0
        %2413 = vmatpush1.msra.mxu0 %v2391
        %2414 = vmatprep.subr.mxu0 0.0
        %2415 = vmatpush1.msra.mxu0 %v2392
        %2416 = vmatprep.subr.mxu0 0.0
        %2417 = vmatpush1.msra.mxu0 %v2393
        %2418 = vmatprep.subr.mxu0 0.0
        %2419 = vmatpush1.msra.mxu0 %v2394
        %2420 = vmatprep.subr.mxu0 0.0
        %2421 = vmatpush1.msra.mxu0 %v2395
        %2422 = vmatprep.subr.mxu0 0.0
        %2423 = vmatpush1.msra.mxu0 %v2396
        %2424 = vmatprep.subr.mxu0 0.0
        %2425 = vmatpush1.msra.mxu0 %v2397
        %2426 = vmatprep.subr.mxu0 0.0
        %2427 = vmatpush1.msra.mxu0 %v2398
        %2428 = vmatprep.subr.mxu0 0.0
        %2429 = vmatpush1.msra.mxu0 %v2399
        %2430 = vmatprep.subr.mxu0 0.0
        %2431 = vmatpush1.msra.mxu0 %v2400
        %2432 = vmatprep.subr.mxu0 0.0
        %2433 = vmatpush1.msra.mxu0 %v2401
        %2434 = vmatprep.subr.mxu0 0.0
        %2435 = vmatpush1.msra.mxu0 %v2402
        %2436 = vmatprep.subr.mxu0 0.0
        %2437 = vmatpush1.msra.mxu0 %v2403
        %2438 = vmatprep.subr.mxu0 0.0
        %2439 = vmatpush1.msra.mxu0 %v2404
        %2440 = vmatprep.subr.mxu0 0.0
        %2441 = vmatpush1.msra.mxu0 %v2405
        %2442 = vmatprep.subr.mxu0 0.0
        %2443 = vmatpush1.msra.mxu0 %v2406
        %2444 = vmatprep.subr.mxu0 0.0
        %2445 = vmatpush1.msra.mxu0 %v2407
        %2446 = vmatprep.subr.mxu0 0.0
        %2447 = vmatpush1.msra.mxu0 %v2408
        %2448 = vmatprep.subr.mxu0 0.0
        %2449 = vmatpush1.msra.mxu0 0.0
        %2450 = vmatprep.subr.mxu0 0.0
        %2451 = vmatpush1.msra.mxu0 0.0
        %2452 = vmatprep.subr.mxu0 0.0
        %2453 = vmatpush1.msra.mxu0 0.0
        %2454 = vmatprep.subr.mxu0 0.0
        %2455 = vmatpush1.msra.mxu0 0.0
        %2456 = vmatprep.subr.mxu0 0.0
        %2457 = vmatpush1.msra.mxu0 0.0
        %2458 = vmatprep.subr.mxu0 0.0
        %2459 = vmatpush1.msra.mxu0 0.0
        %2460 = vmatprep.subr.mxu0 0.0
        %2461 = vmatpush1.msra.mxu0 0.0
        %2462 = vmatprep.subr.mxu0 0.0
        %2463 = vmatpush1.msra.mxu0 0.0
        %2464 = vmatprep.subr.mxu0 0.0
        %2465 = vmatpush1.msra.mxu0 0.0
        %2466 = vmatprep.subr.mxu0 0.0
        %2467 = vmatpush1.msra.mxu0 0.0
        %2468 = vmatprep.subr.mxu0 0.0
        %2469 = vmatpush1.msra.mxu0 0.0
        %2470 = vmatprep.subr.mxu0 0.0
        %2471 = vmatpush1.msra.mxu0 0.0
        %2472 = vmatprep.subr.mxu0 0.0
        %2473 = vmatpush1.msra.mxu0 0.0
        %2474 = vmatprep.subr.mxu0 0.0
        %2475 = vmatpush1.msra.mxu0 0.0
        %2476 = vmatprep.mubr.f32.mxu0 %v2410
        %2477 = vmatmul.mubr.f32.gmra.mrb[0].mxu0 %v2009
        %v2478 = vpop.f32.mrb[0].mxu0
        %v2479 = vadd.f32 0.0, %v2478
        %v2480 = vpop.f32.mrb[0].mxu0
        %2481 = vdwg.mxu0
        %v2482 = vadd.f32 %v2389, %v2479
        %v2483 = vmax.f32 %v2482, 0.0
        %v2484 = vld [vmem:[%s7] sm:$0xff]
        %v2485 = vld [vmem:[%s7 + $0x8] sm:$0xff]
        %v2486 = vld [vmem:[%s7 + $0x10] sm:$0xff]
        %v2487 = vld [vmem:[%s7 + $0x18] sm:$0xff]
        %v2488 = vld [vmem:[%s7 + $0x20] sm:$0xff]
        %v2489 = vld [vmem:[%s7 + $0x28] sm:$0xff]
        %v2490 = vld [vmem:[%s7 + $0x30] sm:$0xff]
        %v2491 = vld [vmem:[%s7 + $0x38] sm:$0xff]
        %v2492 = vld [vmem:[%s7 + $0x40] sm:$0xff]
        %v2493 = vld [vmem:[%s7 + $0x48] sm:$0xff]
        %v2494 = vld [vmem:[%s7 + $0x50] sm:$0xff]
        %v2495 = vld [vmem:[%s7 + $0x58] sm:$0xff]
        %v2496 = vld [vmem:[%s7 + $0x60] sm:$0xff]
        %v2497 = vld [vmem:[%s7 + $0x68] sm:$0xff]
        %v2498 = vld [vmem:[%s7 + $0x70] sm:$0xff]
        %v2499 = vld [vmem:[%s8] sm:$0x1]
        %vm2500 = vcmask 982016
        %v2502 = vsel %vm2500, %v2483, 0
        %2504 = vmatprep.subr.mxu0 0.0
        %2505 = vmatpush1.msra.mxu0 %v2484
        %2506 = vmatprep.subr.mxu0 0.0
        %2507 = vmatpush1.msra.mxu0 %v2485
        %2508 = vmatprep.subr.mxu0 0.0
        %2509 = vmatpush1.msra.mxu0 %v2486
        %2510 = vmatprep.subr.mxu0 0.0
        %2511 = vmatpush1.msra.mxu0 %v2487
        %2512 = vmatprep.subr.mxu0 0.0
        %2513 = vmatpush1.msra.mxu0 %v2488
        %2514 = vmatprep.subr.mxu0 0.0
        %2515 = vmatpush1.msra.mxu0 %v2489
        %2516 = vmatprep.subr.mxu0 0.0
        %2517 = vmatpush1.msra.mxu0 %v2490
        %2518 = vmatprep.subr.mxu0 0.0
        %2519 = vmatpush1.msra.mxu0 %v2491
        %2520 = vmatprep.subr.mxu0 0.0
        %2521 = vmatpush1.msra.mxu0 %v2492
        %2522 = vmatprep.subr.mxu0 0.0
        %2523 = vmatpush1.msra.mxu0 %v2493
        %2524 = vmatprep.subr.mxu0 0.0
        %2525 = vmatpush1.msra.mxu0 %v2494
        %2526 = vmatprep.subr.mxu0 0.0
        %2527 = vmatpush1.msra.mxu0 %v2495
        %2528 = vmatprep.subr.mxu0 0.0
        %2529 = vmatpush1.msra.mxu0 %v2496
        %2530 = vmatprep.subr.mxu0 0.0
        %2531 = vmatpush1.msra.mxu0 %v2497
        %2532 = vmatprep.subr.mxu0 0.0
        %2533 = vmatpush1.msra.mxu0 %v2498
        %2534 = vmatprep.subr.mxu0 0.0
        %2535 = vmatpush1.msra.mxu0 0.0
        %2536 = vmatprep.subr.mxu0 0.0
        %2537 = vmatpush1.msra.mxu0 0.0
        %2538 = vmatprep.subr.mxu0 0.0
        %2539 = vmatpush1.msra.mxu0 0.0
        %2540 = vmatprep.subr.mxu0 0.0
        %2541 = vmatpush1.msra.mxu0 0.0
        %2542 = vmatprep.subr.mxu0 0.0
        %2543 = vmatpush1.msra.mxu0 0.0
        %2544 = vmatprep.subr.mxu0 0.0
        %2545 = vmatpush1.msra.mxu0 0.0
        %2546 = vmatprep.subr.mxu0 0.0
        %2547 = vmatpush1.msra.mxu0 0.0
        %2548 = vmatprep.subr.mxu0 0.0
        %2549 = vmatpush1.msra.mxu0 0.0
        %2550 = vmatprep.subr.mxu0 0.0
        %2551 = vmatpush1.msra.mxu0 0.0
        %2552 = vmatprep.subr.mxu0 0.0
        %2553 = vmatpush1.msra.mxu0 0.0
        %2554 = vmatprep.subr.mxu0 0.0
        %2555 = vmatpush1.msra.mxu0 0.0
        %2556 = vmatprep.subr.mxu0 0.0
        %2557 = vmatpush1.msra.mxu0 0.0
        %2558 = vmatprep.subr.mxu0 0.0
        %2559 = vmatpush1.msra.mxu0 0.0
        %2560 = vmatprep.subr.mxu0 0.0
        %2561 = vmatpush1.msra.mxu0 0.0
        %2562 = vmatprep.subr.mxu0 0.0
        %2563 = vmatpush1.msra.mxu0 0.0
        %2564 = vmatprep.subr.mxu0 0.0
        %2565 = vmatpush1.msra.mxu0 0.0
        %2566 = vmatprep.subr.mxu0 0.0
        %2567 = vmatpush1.msra.mxu0 0.0
        %2568 = vmatprep.mubr.f32.mxu0 0.0
        %2569 = vmatmul.mubr.f32.gmra.mrb[0].mxu0 %v2502
        %v2570 = vpop.f32.mrb[0].mxu0
        %v2571 = vadd.f32 %v2499, %v2570
        %v2572 = vpop.f32.mrb[0].mxu0
        %2573 = vdwg.mxu0
        %v2574 = vmax.f32 %v2571, 0.0
        %v2575 = vld [vmem:[%s9] sm:$0xff]
        %v2576 = vld [vmem:[%s9 + $0x8] sm:$0xff]
        %v2577 = vld [vmem:[%s9 + $0x10] sm:$0xff]
        %v2578 = vld [vmem:[%s9 + $0x18] sm:$0xff]
        %v2579 = vld [vmem:[%s9 + $0x20] sm:$0xff]
        %v2580 = vld [vmem:[%s9 + $0x28] sm:$0xff]
        %v2581 = vld [vmem:[%s9 + $0x30] sm:$0xff]
        %v2582 = vld [vmem:[%s9 + $0x38] sm:$0xff]
        %v2583 = vld [vmem:[%s9 + $0x40] sm:$0xff]
        %v2584 = vld [vmem:[%s9 + $0x48] sm:$0xff]
        %v2585 = vld [vmem:[%s9 + $0x50] sm:$0xf]
        %v2586 = vld [vmem:[%s10] sm:$0x1]
        %vm2587 = vcmask 687104
        %v2589 = vsel %vm2587, %v2574, 0
        %v2592 = vsel %vm945, %v2585, 0
        %2594 = vmatprep.subr.mxu0 0.0
        %2595 = vmatpush1.msra.mxu0 %v2575
        %2596 = vmatprep.subr.mxu0 0.0
        %2597 = vmatpush1.msra.mxu0 %v2576
        %2598 = vmatprep.subr.mxu0 0.0
        %2599 = vmatpush1.msra.mxu0 %v2577
        %2600 = vmatprep.subr.mxu0 0.0
        %2601 = vmatpush1.msra.mxu0 %v2578
        %2602 = vmatprep.subr.mxu0 0.0
        %2603 = vmatpush1.msra.mxu0 %v2579
        %2604 = vmatprep.subr.mxu0 0.0
        %2605 = vmatpush1.msra.mxu0 %v2580
        %2606 = vmatprep.subr.mxu0 0.0
        %2607 = vmatpush1.msra.mxu0 %v2581
        %2608 = vmatprep.subr.mxu0 0.0
        %2609 = vmatpush1.msra.mxu0 %v2582
        %2610 = vmatprep.subr.mxu0 0.0
        %2611 = vmatpush1.msra.mxu0 %v2583
        %2612 = vmatprep.subr.mxu0 0.0
        %2613 = vmatpush1.msra.mxu0 %v2584
        %2614 = vmatprep.subr.mxu0 0.0
        %2615 = vmatpush1.msra.mxu0 %v2592
        %2616 = vmatprep.subr.mxu0 0.0
        %2617 = vmatpush1.msra.mxu0 0.0
        %2618 = vmatprep.subr.mxu0 0.0
        %2619 = vmatpush1.msra.mxu0 0.0
        %2620 = vmatprep.subr.mxu0 0.0
        %2621 = vmatpush1.msra.mxu0 0.0
        %2622 = vmatprep.subr.mxu0 0.0
        %2623 = vmatpush1.msra.mxu0 0.0
        %2624 = vmatprep.subr.mxu0 0.0
        %2625 = vmatpush1.msra.mxu0 0.0
        %2626 = vmatprep.subr.mxu0 0.0
        %2627 = vmatpush1.msra.mxu0 0.0
        %2628 = vmatprep.subr.mxu0 0.0
        %2629 = vmatpush1.msra.mxu0 0.0
        %2630 = vmatprep.subr.mxu0 0.0
        %2631 = vmatpush1.msra.mxu0 0.0
        %2632 = vmatprep.subr.mxu0 0.0
        %2633 = vmatpush1.msra.mxu0 0.0
        %2634 = vmatprep.subr.mxu0 0.0
        %2635 = vmatpush1.msra.mxu0 0.0
        %2636 = vmatprep.subr.mxu0 0.0
        %2637 = vmatpush1.msra.mxu0 0.0
        %2638 = vmatprep.subr.mxu0 0.0
        %2639 = vmatpush1.msra.mxu0 0.0
        %2640 = vmatprep.subr.mxu0 0.0
        %2641 = vmatpush1.msra.mxu0 0.0
        %2642 = vmatprep.subr.mxu0 0.0
        %2643 = vmatpush1.msra.mxu0 0.0
        %2644 = vmatprep.subr.mxu0 0.0
        %2645 = vmatpush1.msra.mxu0 0.0
        %2646 = vmatprep.subr.mxu0 0.0
        %2647 = vmatpush1.msra.mxu0 0.0
        %2648 = vmatprep.subr.mxu0 0.0
        %2649 = vmatpush1.msra.mxu0 0.0
        %2650 = vmatprep.subr.mxu0 0.0
        %2651 = vmatpush1.msra.mxu0 0.0
        %2652 = vmatprep.subr.mxu0 0.0
        %2653 = vmatpush1.msra.mxu0 0.0
        %2654 = vmatprep.subr.mxu0 0.0
        %2655 = vmatpush1.msra.mxu0 0.0
        %2656 = vmatprep.subr.mxu0 0.0
        %2657 = vmatpush1.msra.mxu0 0.0
        %2658 = vmatprep.mubr.f32.mxu0 0.0
        %2659 = vmatmul.mubr.f32.gmra.mrb[0].mxu0 %v2589
        %v2660 = vpop.f32.mrb[0].mxu0
        %v2661 = vadd.f32 %v2586, %v2660
        %v2662 = vpop.f32.mrb[0].mxu0
        %2663 = vdwg.mxu0
        %2664 = vst [vmem:[%s378] sm:$0x1] %v2661
        %s2665 = sand.u32 %s269, 1
        %s2666 = scalar_lea.sflag [#allocation3], %s2665
        %s2667 = sand.u32 %s269, 1
        %s2668 = scalar_lea.vmem [#allocation2], %s2667
        // Predicated region
        $region65: #{net_forward.1} parent=63 // pred_check
          %p2669 = pneg %p279
        $region66: #{net_forward.1} parent=63 // pred_check_branch
          %2671 = sbr.rel (%p2669) target = $region68
        $region67: #{net_forward.1} parent=63 // pred_region
          %s2673 = ssub.s32 16, 16
          %2674 = vsyncadd %s2666, %s2673
          %s2675 = smul.addr %s25, 16
          %s2676 = scalar_lea.hbm %s11, %s2675
          %s2678 = sshll.u32 %s2668, 4
          %s2679 = int_to_ptr.vmem [resolvable:$true] %s2678
          %2681 = dma.vmem_to_hbm [thread:$0]  %s2679, 16, %s2676, %s2666
        $region68: #{net_forward.1} parent=63 // pred_fallthru
          _
      $region64: #{net_forward.1} parent=5 // pred_fallthru
        _
      %p2682 = scmp.le.s32.totalorder 2, %s20
      // Predicated region
      $region69: #{net_forward.1} parent=5 // pred_check
        %p2683 = pneg %p2682
      $region70: #{net_forward.1} parent=5 // pred_check_branch
        %2685 = sbr.rel (%p2683) target = $region72
      $region71: #{net_forward.1} parent=5 // pred_region
        %s2686 = ssub.s32 %s20, 2
        // Predicated region
        $region73: #{net_forward.1} parent=71 // pred_check
          %p2687 = pneg %p285
        $region74: #{net_forward.1} parent=71 // pred_check_branch
          %2689 = sbr.rel (%p2687) target = $region76
        $region75: #{net_forward.1} parent=71 // pred_region
          %s2690 = sand.u32 %s270, 1
          %s2691 = scalar_lea.sflag [#allocation3], %s2690
          %s2692 = sand.u32 %s270, 1
          %s2693 = scalar_lea.vmem [#allocation2], %s2692
          %2694 = dma.done %s2691, 16
        $region76: #{net_forward.1} parent=71 // pred_fallthru
          _
      $region72: #{net_forward.1} parent=5 // pred_fallthru
        _
    $region6: #{net_forward.1} parent=1 // loop_footer
      %s24 = sadd.s32 1, %s20
    $region7: #{net_forward.1} parent=1 // loop_footer_branch
      %19 = sbr.rel target = $region3
    $region8: #{net_forward.1} parent=1 // loop_exit
      _
    %2695 = vsyncpa [#allocation3], 1
    %s2696 = scalar_lea.sflag [#allocation3], 1
    %2697 = vsyncpa %s2696, 1

</llo_original>
